<compile_context>
chip_gen: v5e
topology: v5e:2x2
jax: 0.10.0
libtpu: 0.0.40
codegen_flags: <defaults>
</compile_context>

<pallas_src>
import jax
import jax.numpy as jnp
from jax import lax
from jax.experimental import pallas as pl
from jax.experimental.pallas import tpu as pltpu

NUM_LMS = 68
NUM_NB = 10
C_IN = 1280


def _round_up(x, m):
    return -(-x // m) * m


def _is_v7x():
    try:
        kind = jax.devices()[0].device_kind.lower()
    except Exception:
        kind = ""
    return "v7" in kind


_IS_V7X = _is_v7x()
# v7x: 2 TensorCores/chip -> 2-way N split (outer parallel axis), tighter M tile.
# v5e/v6e: 1 TensorCore -> single resident W tile, bigger M tile.
_NUM_N_TILES = 2 if _IS_V7X else 1
_N_ALIGN = 128 * _NUM_N_TILES          # 256 on v7x, 128 otherwise
_TM_MAX = 512 if _IS_V7X else 1024     # VMEM budget: v7x has 64 MiB vs 128 MiB
_VMEM_LIMIT = 48 << 20                 # above v5e's 16 MiB default, below v7x physical


# ---------------------------------------------------------------------------
# Pallas kernel: fused five-head 1x1 convolution = one matmul + bias per tile
# ---------------------------------------------------------------------------
def _heads_kernel(x_ref, w_ref, b_ref, o_ref):
    # (tm, K) @ (K, tn) on the MXU with f32 accumulation, bias add, store.
    o_ref[...] = (
        jnp.dot(x_ref[...], w_ref[...], preferred_element_type=jnp.float32)
        + b_ref[...]
    ).astype(o_ref.dtype)


def _heads_matmul(x_mat, w_pad, b_pad):
    """x_mat: [M, K] bf16, w_pad: [K, N_pad] bf16 (pre-padded at init),
    b_pad: [1, N_pad] f32 (pre-padded at init)  ->  [M, N_pad] f32."""
    M, K = x_mat.shape
    Kw, N_pad = w_pad.shape
    assert K == Kw and N_pad % _N_ALIGN == 0

    tn = N_pad // _NUM_N_TILES  # full N on v5e/v6e, half on v7x (128-aligned)

    # M tiling: waste at most one sublane group per tile (no ~2x blowup).
    num_m_tiles = max(1, -(-M // _TM_MAX))
    tm = -(-M // num_m_tiles)
    tm = _round_up(tm, 16) if tm >= 16 else _round_up(tm, 8)
    M_pad = num_m_tiles * tm
    if M_pad != M:
        x_mat = jnp.pad(x_mat, ((0, M_pad - M), (0, 0)))

    # N outer, M inner: W's block index only changes across the outer axis,
    # so W is DMA'd once per N tile (== once per core), never per M tile.
    grid = (_NUM_N_TILES, num_m_tiles)

    flops = 2 * M_pad * K * N_pad
    bytes_accessed = (
        _NUM_N_TILES * M_pad * K * 2   # X streamed once per N tile (bf16)
        + K * N_pad * 2                # W read once total (bf16)
        + N_pad * 4                    # bias (f32)
        + M_pad * N_pad * 4            # out (f32)
    )

    out = pl.pallas_call(
        _heads_kernel,
        out_shape=jax.ShapeDtypeStruct((M_pad, N_pad), jnp.float32),
        grid_spec=pltpu.PrefetchScalarGridSpec(
            num_scalar_prefetch=0,
            grid=grid,
            in_specs=[
                pl.BlockSpec((tm, K), lambda j, i: (i, 0)),   # X strip
                pl.BlockSpec((K, tn), lambda j, i: (0, j)),   # resident W (per N tile)
                pl.BlockSpec((1, tn), lambda j, i: (0, j)),   # bias strip
            ],
            out_specs=pl.BlockSpec((tm, tn), lambda j, i: (i, j)),
        ),
        compiler_params=pltpu.CompilerParams(
            dimension_semantics=("parallel", "parallel"),
            vmem_limit_bytes=_VMEM_LIMIT,
        ),
        cost_estimate=pl.CostEstimate(
            flops=flops, transcendentals=0, bytes_accessed=bytes_accessed
        ),
    )(x_mat, w_pad, b_pad)

    return out[:M, :] if M_pad != M else out


# ---------------------------------------------------------------------------
# Backbone stand-in for `mbnet.features` (plain-JAX glue), run in NHWC.
# TODO(synk): the real MobileNetV2 inverted-residual backbone is an external
# injected module; this compact deterministic stride-2 conv stack reproduces
# its contract (net_stride=32, 1280-channel output, ReLU6).
# ---------------------------------------------------------------------------
def init_backbone_params(key):
    chans = [3, 16, 32, 64, 128, 1280]
    params = []
    for i in range(len(chans) - 1):
        key, sub = jax.random.split(key)
        w = jax.random.normal(sub, (3, 3, chans[i], chans[i + 1]), jnp.float32)
        w = w * (0.1 / jnp.sqrt(float(chans[i] * 9)))
        params.append(w)  # HWIO
    return params


def backbone_features_nhwc(x_nhwc, params):
    n = len(params)
    for idx, w in enumerate(params):
        x_nhwc = lax.conv_general_dilated(
            x_nhwc, w,
            window_strides=(2, 2),
            padding=[(1, 1), (1, 1)],
            dimension_numbers=("NHWC", "HWIO", "NHWC"),
        )
        x_nhwc = jnp.clip(x_nhwc, 0.0, 6.0)  # ReLU6
        if idx == n - 1:
            # Emit bf16 straight out of the last layer so the head matmul's
            # input needs no separate cast pass through HBM.
            x_nhwc = x_nhwc.astype(jnp.bfloat16)
    return x_nhwc  # [B, H/32, W/32, 1280] bf16


# ---------------------------------------------------------------------------
# Head parameter init (matches nn.init.normal_(std=0.001), bias = 0).
# Weights are concatenated, padded to the lane alignment, cast to bf16 ONCE.
# ---------------------------------------------------------------------------
def init_head_params(key, num_lms=NUM_LMS, num_nb=NUM_NB, c_in=C_IN):
    out_dims = [num_lms, num_lms, num_lms, num_nb * num_lms, num_nb * num_lms]
    ws = []
    for d in out_dims:
        key, sub = jax.random.split(key)
        # PyTorch conv weight shape [out, in, 1, 1] -> store as [in, out]
        w = jax.random.normal(sub, (d, c_in), jnp.float32) * 0.001
        ws.append(w.T)
    w_cat = jnp.concatenate(ws, axis=1)                 # [c_in, N_total] f32
    n_total = w_cat.shape[1]                            # 1564
    n_pad = _round_up(n_total, _N_ALIGN)                # 1664 (1792 on v7x)
    w_pad = (
        jnp.zeros((c_in, n_pad), jnp.bfloat16)
        .at[:, :n_total]
        .set(w_cat.astype(jnp.bfloat16))
    )
    b_pad = jnp.zeros((1, n_pad), jnp.float32)          # bias init = 0
    return w_pad, b_pad, out_dims


# ---------------------------------------------------------------------------
# Full forward (mirrors Pip_mbnetv2.forward; nn.Sigmoid is defined but unused
# in the PyTorch forward, so it is intentionally not applied here).
# ---------------------------------------------------------------------------
@jax.jit
def pip_mbnetv2_forward(x_nchw, backbone_params, head_w_pad, head_b_pad):
    x_nhwc = jnp.transpose(x_nchw, (0, 2, 3, 1))               # 3-channel: cheap
    feat = backbone_features_nhwc(x_nhwc, backbone_params)     # [B, H, W, 1280] bf16
    B, H, W, C = feat.shape
    M = B * H * W
    x_mat = feat.reshape(M, C)                                 # free view, already bf16

    out_mat = _heads_matmul(x_mat, head_w_pad, head_b_pad)     # [M, N_pad] f32

    out_dims = [NUM_LMS, NUM_LMS, NUM_LMS, NUM_NB * NUM_LMS, NUM_NB * NUM_LMS]
    outs = []
    start = 0
    for d in out_dims:
        o = out_mat[:, start:start + d].reshape(B, H, W, d)
        outs.append(jnp.transpose(o, (0, 3, 1, 2)))            # NCHW like PyTorch
        start += d
    return tuple(outs)


if __name__ == "__main__":
    key = jax.random.PRNGKey(0)
    k_in, k_bb, k_head = jax.random.split(key, 3)

    # Small input consistent with the module: NCHW image, stride-32 backbone.
    x = jax.random.normal(k_in, (2, 3, 64, 64), jnp.float32)

    backbone_params = init_backbone_params(k_bb)
    head_w_pad, head_b_pad, _ = init_head_params(k_head)

    x1, x2, x3, x4, x5 = pip_mbnetv2_forward(x, backbone_params, head_w_pad, head_b_pad)
    jax.block_until_ready((x1, x2, x3, x4, x5))

    assert x1.shape == (2, NUM_LMS, 2, 2)
    assert x2.shape == (2, NUM_LMS, 2, 2)
    assert x3.shape == (2, NUM_LMS, 2, 2)
    assert x4.shape == (2, NUM_NB * NUM_LMS, 2, 2)
    assert x5.shape == (2, NUM_NB * NUM_LMS, 2, 2)

    print("KERNEL_OK")
</pallas_src>

<mosaic_0001>
module attributes {stable_mosaic.version = 11 : i64} {
  func.func @_heads_kernel(%arg0: i32, %arg1: i32, %arg2: memref<8x1280xbf16, #tpu.memory_space<vmem>>, %arg3: memref<1280x1664xbf16, #tpu.memory_space<vmem>>, %arg4: memref<1x1664xf32, #tpu.memory_space<vmem>>, %arg5: memref<8x1664xf32, #tpu.memory_space<vmem>>) attributes {dimension_semantics = [#tpu.dimension_semantics<parallel>, #tpu.dimension_semantics<parallel>], iteration_bounds = array<i64: 1, 1>, scalar_prefetch = 0 : i64, scratch_operands = 0 : i64, tpu.core_type = #tpu.core_type<tc>, window_params = [{transform_indices = @transform_0, window_bounds = array<i64: 8, 1280>}, {transform_indices = @transform_1, window_bounds = array<i64: 1280, 1664>}, {transform_indices = @transform_2, window_bounds = array<i64: 1, 1664>}, {transform_indices = @transform_3, window_bounds = array<i64: 8, 1664>}]} {
    %c0 = arith.constant 0 : index
    %c0_0 = arith.constant 0 : index
    %0 = vector.load %arg2[%c0, %c0_0] : memref<8x1280xbf16, #tpu.memory_space<vmem>>, vector<8x1280xbf16>
    %c0_1 = arith.constant 0 : index
    %c0_2 = arith.constant 0 : index
    %1 = vector.load %arg3[%c0_1, %c0_2] : memref<1280x1664xbf16, #tpu.memory_space<vmem>>, vector<1280x1664xbf16>
    %cst = arith.constant dense<0.000000e+00> : vector<8x1664xf32>
    %2 = tpu.matmul %0, %1, %cst {dimension_numbers = #tpu.dot_dimension_numbers<[1], [0], [0], [1], [0, 0, 1, 1], [], []>} : vector<8x1280xbf16>, vector<1280x1664xbf16>, vector<8x1664xf32> -> vector<8x1664xf32>
    %c0_3 = arith.constant 0 : index
    %c0_4 = arith.constant 0 : index
    %3 = vector.load %arg4[%c0_3, %c0_4] : memref<1x1664xf32, #tpu.memory_space<vmem>>, vector<1x1664xf32>
    %4 = vector.broadcast %3 : vector<1x1664xf32> to vector<8x1664xf32>
    %5 = arith.addf %2, %4 : vector<8x1664xf32>
    %c0_5 = arith.constant 0 : index
    %c0_6 = arith.constant 0 : index
    %6 = vector.load %arg5[%c0_5, %c0_6] : memref<8x1664xf32, #tpu.memory_space<vmem>>, vector<8x1664xf32>
    tpu.vector_store %arg5[%c0_5, %c0_6], %5 {strides = array<i32>} : memref<8x1664xf32, #tpu.memory_space<vmem>>, vector<8x1664xf32>,
    return
  }
  func.func @transform_0(%arg0: i32, %arg1: i32) -> (i32, i32) {
    %c0_i32 = arith.constant 0 : i32
    %c0_i32_0 = arith.constant 0 : i32
    return %arg1, %c0_i32 : i32, i32
  }
  func.func @transform_1(%arg0: i32, %arg1: i32) -> (i32, i32) {
    %c0_i32 = arith.constant 0 : i32
    %c0_i32_0 = arith.constant 0 : i32
    return %c0_i32, %arg0 : i32, i32
  }
  func.func @transform_2(%arg0: i32, %arg1: i32) -> (i32, i32) {
    %c0_i32 = arith.constant 0 : i32
    %c0_i32_0 = arith.constant 0 : i32
    return %c0_i32, %arg0 : i32, i32
  }
  func.func @transform_3(%arg0: i32, %arg1: i32) -> (i32, i32) {
    %c0_i32 = arith.constant 0 : i32
    return %arg1, %arg0 : i32, i32
  }
}

</mosaic_0001>

<llo_original>
// kernel: pip_mbnetv2_forward.1
$region0: #{pip_mbnetv2_forward.1}
  #allocation0 [shape = 'u32[]', space=smem, size = 0x4, offset = 0x4, fixed_abs, tag = 'smem constant byte address 0x4 - core index']
  #allocation1 [shape = 'u32[72,128]{1,0:T(1,128)}', space=vmem, size = 0x9000, scoped, tag = 'internal scratch']
  %s0 = inlined_call_operand.vmem [shape: bf16[8,1280], index: 0, kind: input, shape index: {}]
  %s1 = inlined_call_operand.vmem [shape: bf16[1280,1664], index: 1, kind: input, shape index: {}]
  %s2 = inlined_call_operand.vmem [shape: f32[1,1664], index: 2, kind: input, shape index: {}]
  %s3 = inlined_call_operand.vmem [shape: f32[8,1664], index: 3, kind: output, shape index: {}]
  %s4 = sld [smem:[#allocation0]]
  $region22: #{pip_mbnetv2_forward.1} parent=0
    _
  %s6 = ssub.s32 1, %s4
  %s7 = scalar_select 0, %s6, %s4
  // Predicated region
  $region2: #{pip_mbnetv2_forward.1} parent=0 // pred_check
    _
  $region3: #{pip_mbnetv2_forward.1} parent=0 // pred_check_branch
    %9 = sbr.rel (0) target = $region5
  $region4: #{pip_mbnetv2_forward.1} parent=0 // pred_region
    _
  $region5: #{pip_mbnetv2_forward.1} parent=0 // pred_fallthru
    _
  // Predicated region
  $region6: #{pip_mbnetv2_forward.1} parent=0 // pred_check
    _
  $region7: #{pip_mbnetv2_forward.1} parent=0 // pred_check_branch
    %11 = sbr.rel (0) target = $region9
  $region8: #{pip_mbnetv2_forward.1} parent=0 // pred_region
    _
  $region9: #{pip_mbnetv2_forward.1} parent=0 // pred_fallthru
    _
  // Predicated region
  $region10: #{pip_mbnetv2_forward.1} parent=0 // pred_check
    _
  $region11: #{pip_mbnetv2_forward.1} parent=0 // pred_check_branch
    %13 = sbr.rel (0) target = $region13
  $region12: #{pip_mbnetv2_forward.1} parent=0 // pred_region
    _
  $region13: #{pip_mbnetv2_forward.1} parent=0 // pred_fallthru
    _
  %v14 = vld [vmem:[%s0] sm:$0xff]
  %v15 = vld [vmem:[%s0 + $0x8] sm:$0xff]
  %v16 = vld [vmem:[%s0 + $0x10] sm:$0xff]
  %v17 = vld [vmem:[%s0 + $0x18] sm:$0xff]
  %v18 = vld [vmem:[%s0 + $0x20] sm:$0xff]
  %v19 = vld [vmem:[%s1] sm:$0xff]
  %v20 = vld [vmem:[%s1 + $0x8] sm:$0xff]
  %v21 = vld [vmem:[%s1 + $0x10] sm:$0xff]
  %v22 = vld [vmem:[%s1 + $0x18] sm:$0xff]
  %v23 = vld [vmem:[%s1 + $0x20] sm:$0xff]
  %v24 = vld [vmem:[%s1 + $0x28] sm:$0xff]
  %v25 = vld [vmem:[%s1 + $0x30] sm:$0xf]
  %v26 = vld [vmem:[%s1 + $0x34] sm:$0xff]
  %v27 = vld [vmem:[%s1 + $0x3c] sm:$0xff]
  %v28 = vld [vmem:[%s1 + $0x44] sm:$0xff]
  %v29 = vld [vmem:[%s1 + $0x4c] sm:$0xff]
  %v30 = vld [vmem:[%s1 + $0x54] sm:$0xff]
  %v31 = vld [vmem:[%s1 + $0x5c] sm:$0xff]
  %v32 = vld [vmem:[%s1 + $0x64] sm:$0xf]
  %v33 = vld [vmem:[%s1 + $0x68] sm:$0xff]
  %v34 = vld [vmem:[%s1 + $0x70] sm:$0xff]
  %v35 = vld [vmem:[%s1 + $0x78] sm:$0xff]
  %v36 = vld [vmem:[%s1 + $0x80] sm:$0xff]
  %v37 = vld [vmem:[%s1 + $0x88] sm:$0xff]
  %v38 = vld [vmem:[%s1 + $0x90] sm:$0xff]
  %v39 = vld [vmem:[%s1 + $0x98] sm:$0xf]
  %v40 = vld [vmem:[%s1 + $0x9c] sm:$0xff]
  %v41 = vld [vmem:[%s1 + $0xa4] sm:$0xff]
  %v42 = vld [vmem:[%s1 + $0xac] sm:$0xff]
  %v43 = vld [vmem:[%s1 + $0xb4] sm:$0xff]
  %v44 = vld [vmem:[%s1 + $0xbc] sm:$0xff]
  %v45 = vld [vmem:[%s1 + $0xc4] sm:$0xff]
  %v46 = vld [vmem:[%s1 + $0xcc] sm:$0xf]
  %v47 = vld [vmem:[%s1 + $0xd0] sm:$0xff]
  %v48 = vld [vmem:[%s1 + $0xd8] sm:$0xff]
  %v49 = vld [vmem:[%s1 + $0xe0] sm:$0xff]
  %v50 = vld [vmem:[%s1 + $0xe8] sm:$0xff]
  %v51 = vld [vmem:[%s1 + $0xf0] sm:$0xff]
  %v52 = vld [vmem:[%s1 + $0xf8] sm:$0xff]
  %v53 = vld [vmem:[%s1 + $0x100] sm:$0xf]
  %v54 = vld [vmem:[%s1 + $0x104] sm:$0xff]
  %v55 = vld [vmem:[%s1 + $0x10c] sm:$0xff]
  %v56 = vld [vmem:[%s1 + $0x114] sm:$0xff]
  %v57 = vld [vmem:[%s1 + $0x11c] sm:$0xff]
  %v58 = vld [vmem:[%s1 + $0x124] sm:$0xff]
  %v59 = vld [vmem:[%s1 + $0x12c] sm:$0xff]
  %v60 = vld [vmem:[%s1 + $0x134] sm:$0xf]
  %v61 = vld [vmem:[%s1 + $0x138] sm:$0xff]
  %v62 = vld [vmem:[%s1 + $0x140] sm:$0xff]
  %v63 = vld [vmem:[%s1 + $0x148] sm:$0xff]
  %v64 = vld [vmem:[%s1 + $0x150] sm:$0xff]
  %v65 = vld [vmem:[%s1 + $0x158] sm:$0xff]
  %v66 = vld [vmem:[%s1 + $0x160] sm:$0xff]
  %v67 = vld [vmem:[%s1 + $0x168] sm:$0xf]
  %v68 = vld [vmem:[%s1 + $0x16c] sm:$0xff]
  %v69 = vld [vmem:[%s1 + $0x174] sm:$0xff]
  %v70 = vld [vmem:[%s1 + $0x17c] sm:$0xff]
  %v71 = vld [vmem:[%s1 + $0x184] sm:$0xff]
  %v72 = vld [vmem:[%s1 + $0x18c] sm:$0xff]
  %v73 = vld [vmem:[%s1 + $0x194] sm:$0xff]
  %v74 = vld [vmem:[%s1 + $0x19c] sm:$0xf]
  %v75 = vld [vmem:[%s1 + $0x1a0] sm:$0xff]
  %v76 = vld [vmem:[%s1 + $0x1a8] sm:$0xff]
  %v77 = vld [vmem:[%s1 + $0x1b0] sm:$0xff]
  %v78 = vld [vmem:[%s1 + $0x1b8] sm:$0xff]
  %v79 = vld [vmem:[%s1 + $0x1c0] sm:$0xff]
  %v80 = vld [vmem:[%s1 + $0x1c8] sm:$0xff]
  %v81 = vld [vmem:[%s1 + $0x1d0] sm:$0xf]
  %v82 = vld [vmem:[%s1 + $0x1d4] sm:$0xff]
  %v83 = vld [vmem:[%s1 + $0x1dc] sm:$0xff]
  %v84 = vld [vmem:[%s1 + $0x1e4] sm:$0xff]
  %v85 = vld [vmem:[%s1 + $0x1ec] sm:$0xff]
  %v86 = vld [vmem:[%s1 + $0x1f4] sm:$0xff]
  %v87 = vld [vmem:[%s1 + $0x1fc] sm:$0xff]
  %v88 = vld [vmem:[%s1 + $0x204] sm:$0xf]
  %v89 = vld [vmem:[%s1 + $0x208] sm:$0xff]
  %v90 = vld [vmem:[%s1 + $0x210] sm:$0xff]
  %v91 = vld [vmem:[%s1 + $0x218] sm:$0xff]
  %v92 = vld [vmem:[%s1 + $0x220] sm:$0xff]
  %v93 = vld [vmem:[%s1 + $0x228] sm:$0xff]
  %v94 = vld [vmem:[%s1 + $0x230] sm:$0xff]
  %v95 = vld [vmem:[%s1 + $0x238] sm:$0xf]
  %v96 = vld [vmem:[%s1 + $0x23c] sm:$0xff]
  %v97 = vld [vmem:[%s1 + $0x244] sm:$0xff]
  %v98 = vld [vmem:[%s1 + $0x24c] sm:$0xff]
  %v99 = vld [vmem:[%s1 + $0x254] sm:$0xff]
  %v100 = vld [vmem:[%s1 + $0x25c] sm:$0xff]
  %v101 = vld [vmem:[%s1 + $0x264] sm:$0xff]
  %v102 = vld [vmem:[%s1 + $0x26c] sm:$0xf]
  %v103 = vld [vmem:[%s1 + $0x270] sm:$0xff]
  %v104 = vld [vmem:[%s1 + $0x278] sm:$0xff]
  %v105 = vld [vmem:[%s1 + $0x280] sm:$0xff]
  %v106 = vld [vmem:[%s1 + $0x288] sm:$0xff]
  %v107 = vld [vmem:[%s1 + $0x290] sm:$0xff]
  %v108 = vld [vmem:[%s1 + $0x298] sm:$0xff]
  %v109 = vld [vmem:[%s1 + $0x2a0] sm:$0xf]
  %v110 = vld [vmem:[%s1 + $0x2a4] sm:$0xff]
  %v111 = vld [vmem:[%s1 + $0x2ac] sm:$0xff]
  %v112 = vld [vmem:[%s1 + $0x2b4] sm:$0xff]
  %v113 = vld [vmem:[%s1 + $0x2bc] sm:$0xff]
  %v114 = vld [vmem:[%s1 + $0x2c4] sm:$0xff]
  %v115 = vld [vmem:[%s1 + $0x2cc] sm:$0xff]
  %v116 = vld [vmem:[%s1 + $0x2d4] sm:$0xf]
  %v117 = vld [vmem:[%s1 + $0x2d8] sm:$0xff]
  %v118 = vld [vmem:[%s1 + $0x2e0] sm:$0xff]
  %v119 = vld [vmem:[%s1 + $0x2e8] sm:$0xff]
  %v120 = vld [vmem:[%s1 + $0x2f0] sm:$0xff]
  %v121 = vld [vmem:[%s1 + $0x2f8] sm:$0xff]
  %v122 = vld [vmem:[%s1 + $0x300] sm:$0xff]
  %v123 = vld [vmem:[%s1 + $0x308] sm:$0xf]
  %v124 = vld [vmem:[%s1 + $0x30c] sm:$0xff]
  %v125 = vld [vmem:[%s1 + $0x314] sm:$0xff]
  %v126 = vld [vmem:[%s1 + $0x31c] sm:$0xff]
  %v127 = vld [vmem:[%s1 + $0x324] sm:$0xff]
  %v128 = vld [vmem:[%s1 + $0x32c] sm:$0xff]
  %v129 = vld [vmem:[%s1 + $0x334] sm:$0xff]
  %v130 = vld [vmem:[%s1 + $0x33c] sm:$0xf]
  %v131 = vld [vmem:[%s1 + $0x340] sm:$0xff]
  %v132 = vld [vmem:[%s1 + $0x348] sm:$0xff]
  %v133 = vld [vmem:[%s1 + $0x350] sm:$0xff]
  %v134 = vld [vmem:[%s1 + $0x358] sm:$0xff]
  %v135 = vld [vmem:[%s1 + $0x360] sm:$0xff]
  %v136 = vld [vmem:[%s1 + $0x368] sm:$0xff]
  %v137 = vld [vmem:[%s1 + $0x370] sm:$0xf]
  %v138 = vld [vmem:[%s1 + $0x374] sm:$0xff]
  %v139 = vld [vmem:[%s1 + $0x37c] sm:$0xff]
  %v140 = vld [vmem:[%s1 + $0x384] sm:$0xff]
  %v141 = vld [vmem:[%s1 + $0x38c] sm:$0xff]
  %v142 = vld [vmem:[%s1 + $0x394] sm:$0xff]
  %v143 = vld [vmem:[%s1 + $0x39c] sm:$0xff]
  %v144 = vld [vmem:[%s1 + $0x3a4] sm:$0xf]
  %v145 = vld [vmem:[%s1 + $0x3a8] sm:$0xff]
  %v146 = vld [vmem:[%s1 + $0x3b0] sm:$0xff]
  %v147 = vld [vmem:[%s1 + $0x3b8] sm:$0xff]
  %v148 = vld [vmem:[%s1 + $0x3c0] sm:$0xff]
  %v149 = vld [vmem:[%s1 + $0x3c8] sm:$0xff]
  %v150 = vld [vmem:[%s1 + $0x3d0] sm:$0xff]
  %v151 = vld [vmem:[%s1 + $0x3d8] sm:$0xf]
  %v152 = vld [vmem:[%s1 + $0x3dc] sm:$0xff]
  %v153 = vld [vmem:[%s1 + $0x3e4] sm:$0xff]
  %v154 = vld [vmem:[%s1 + $0x3ec] sm:$0xff]
  %v155 = vld [vmem:[%s1 + $0x3f4] sm:$0xff]
  %v156 = vld [vmem:[%s1 + $0x3fc] sm:$0xff]
  %v157 = vld [vmem:[%s1 + $0x404] sm:$0xff]
  %v158 = vld [vmem:[%s1 + $0x40c] sm:$0xf]
  %v159 = vld [vmem:[%s1 + $0x410] sm:$0xff]
  %v160 = vld [vmem:[%s1 + $0x418] sm:$0xff]
  %v161 = vld [vmem:[%s1 + $0x420] sm:$0xff]
  %v162 = vld [vmem:[%s1 + $0x428] sm:$0xff]
  %v163 = vld [vmem:[%s1 + $0x430] sm:$0xff]
  %v164 = vld [vmem:[%s1 + $0x438] sm:$0xff]
  %v165 = vld [vmem:[%s1 + $0x440] sm:$0xf]
  %v166 = vld [vmem:[%s1 + $0x444] sm:$0xff]
  %v167 = vld [vmem:[%s1 + $0x44c] sm:$0xff]
  %v168 = vld [vmem:[%s1 + $0x454] sm:$0xff]
  %v169 = vld [vmem:[%s1 + $0x45c] sm:$0xff]
  %v170 = vld [vmem:[%s1 + $0x464] sm:$0xff]
  %v171 = vld [vmem:[%s1 + $0x46c] sm:$0xff]
  %v172 = vld [vmem:[%s1 + $0x474] sm:$0xf]
  %v173 = vld [vmem:[%s1 + $0x478] sm:$0xff]
  %v174 = vld [vmem:[%s1 + $0x480] sm:$0xff]
  %v175 = vld [vmem:[%s1 + $0x488] sm:$0xff]
  %v176 = vld [vmem:[%s1 + $0x490] sm:$0xff]
  %v177 = vld [vmem:[%s1 + $0x498] sm:$0xff]
  %v178 = vld [vmem:[%s1 + $0x4a0] sm:$0xff]
  %v179 = vld [vmem:[%s1 + $0x4a8] sm:$0xf]
  %v180 = vld [vmem:[%s1 + $0x4ac] sm:$0xff]
  %v181 = vld [vmem:[%s1 + $0x4b4] sm:$0xff]
  %v182 = vld [vmem:[%s1 + $0x4bc] sm:$0xff]
  %v183 = vld [vmem:[%s1 + $0x4c4] sm:$0xff]
  %v184 = vld [vmem:[%s1 + $0x4cc] sm:$0xff]
  %v185 = vld [vmem:[%s1 + $0x4d4] sm:$0xff]
  %v186 = vld [vmem:[%s1 + $0x4dc] sm:$0xf]
  %v187 = vld [vmem:[%s1 + $0x4e0] sm:$0xff]
  %v188 = vld [vmem:[%s1 + $0x4e8] sm:$0xff]
  %v189 = vld [vmem:[%s1 + $0x4f0] sm:$0xff]
  %v190 = vld [vmem:[%s1 + $0x4f8] sm:$0xff]
  %v191 = vld [vmem:[%s1 + $0x500] sm:$0xff]
  %v192 = vld [vmem:[%s1 + $0x508] sm:$0xff]
  %v193 = vld [vmem:[%s1 + $0x510] sm:$0xf]
  %v194 = vld [vmem:[%s1 + $0x514] sm:$0xff]
  %v195 = vld [vmem:[%s1 + $0x51c] sm:$0xff]
  %v196 = vld [vmem:[%s1 + $0x524] sm:$0xff]
  %v197 = vld [vmem:[%s1 + $0x52c] sm:$0xff]
  %v198 = vld [vmem:[%s1 + $0x534] sm:$0xff]
  %v199 = vld [vmem:[%s1 + $0x53c] sm:$0xff]
  %v200 = vld [vmem:[%s1 + $0x544] sm:$0xf]
  %v201 = vld [vmem:[%s1 + $0x548] sm:$0xff]
  %v202 = vld [vmem:[%s1 + $0x550] sm:$0xff]
  %v203 = vld [vmem:[%s1 + $0x558] sm:$0xff]
  %v204 = vld [vmem:[%s1 + $0x560] sm:$0xff]
  %v205 = vld [vmem:[%s1 + $0x568] sm:$0xff]
  %v206 = vld [vmem:[%s1 + $0x570] sm:$0xff]
  %v207 = vld [vmem:[%s1 + $0x578] sm:$0xf]
  %v208 = vld [vmem:[%s1 + $0x57c] sm:$0xff]
  %v209 = vld [vmem:[%s1 + $0x584] sm:$0xff]
  %v210 = vld [vmem:[%s1 + $0x58c] sm:$0xff]
  %v211 = vld [vmem:[%s1 + $0x594] sm:$0xff]
  %v212 = vld [vmem:[%s1 + $0x59c] sm:$0xff]
  %v213 = vld [vmem:[%s1 + $0x5a4] sm:$0xff]
  %v214 = vld [vmem:[%s1 + $0x5ac] sm:$0xf]
  %v215 = vld [vmem:[%s1 + $0x5b0] sm:$0xff]
  %v216 = vld [vmem:[%s1 + $0x5b8] sm:$0xff]
  %v217 = vld [vmem:[%s1 + $0x5c0] sm:$0xff]
  %v218 = vld [vmem:[%s1 + $0x5c8] sm:$0xff]
  %v219 = vld [vmem:[%s1 + $0x5d0] sm:$0xff]
  %v220 = vld [vmem:[%s1 + $0x5d8] sm:$0xff]
  %v221 = vld [vmem:[%s1 + $0x5e0] sm:$0xf]
  %v222 = vld [vmem:[%s1 + $0x5e4] sm:$0xff]
  %v223 = vld [vmem:[%s1 + $0x5ec] sm:$0xff]
  %v224 = vld [vmem:[%s1 + $0x5f4] sm:$0xff]
  %v225 = vld [vmem:[%s1 + $0x5fc] sm:$0xff]
  %v226 = vld [vmem:[%s1 + $0x604] sm:$0xff]
  %v227 = vld [vmem:[%s1 + $0x60c] sm:$0xff]
  %v228 = vld [vmem:[%s1 + $0x614] sm:$0xf]
  %v229 = vld [vmem:[%s1 + $0x618] sm:$0xff]
  %v230 = vld [vmem:[%s1 + $0x620] sm:$0xff]
  %v231 = vld [vmem:[%s1 + $0x628] sm:$0xff]
  %v232 = vld [vmem:[%s1 + $0x630] sm:$0xff]
  %v233 = vld [vmem:[%s1 + $0x638] sm:$0xff]
  %v234 = vld [vmem:[%s1 + $0x640] sm:$0xff]
  %v235 = vld [vmem:[%s1 + $0x648] sm:$0xf]
  %v236 = vld [vmem:[%s1 + $0x64c] sm:$0xff]
  %v237 = vld [vmem:[%s1 + $0x654] sm:$0xff]
  %v238 = vld [vmem:[%s1 + $0x65c] sm:$0xff]
  %v239 = vld [vmem:[%s1 + $0x664] sm:$0xff]
  %v240 = vld [vmem:[%s1 + $0x66c] sm:$0xff]
  %v241 = vld [vmem:[%s1 + $0x674] sm:$0xff]
  %v242 = vld [vmem:[%s1 + $0x67c] sm:$0xf]
  %v243 = vld [vmem:[%s1 + $0x680] sm:$0xff]
  %v244 = vld [vmem:[%s1 + $0x688] sm:$0xff]
  %v245 = vld [vmem:[%s1 + $0x690] sm:$0xff]
  %v246 = vld [vmem:[%s1 + $0x698] sm:$0xff]
  %v247 = vld [vmem:[%s1 + $0x6a0] sm:$0xff]
  %v248 = vld [vmem:[%s1 + $0x6a8] sm:$0xff]
  %v249 = vld [vmem:[%s1 + $0x6b0] sm:$0xf]
  %v250 = vld [vmem:[%s1 + $0x6b4] sm:$0xff]
  %v251 = vld [vmem:[%s1 + $0x6bc] sm:$0xff]
  %v252 = vld [vmem:[%s1 + $0x6c4] sm:$0xff]
  %v253 = vld [vmem:[%s1 + $0x6cc] sm:$0xff]
  %v254 = vld [vmem:[%s1 + $0x6d4] sm:$0xff]
  %v255 = vld [vmem:[%s1 + $0x6dc] sm:$0xff]
  %v256 = vld [vmem:[%s1 + $0x6e4] sm:$0xf]
  %v257 = vld [vmem:[%s1 + $0x6e8] sm:$0xff]
  %v258 = vld [vmem:[%s1 + $0x6f0] sm:$0xff]
  %v259 = vld [vmem:[%s1 + $0x6f8] sm:$0xff]
  %v260 = vld [vmem:[%s1 + $0x700] sm:$0xff]
  %v261 = vld [vmem:[%s1 + $0x708] sm:$0xff]
  %v262 = vld [vmem:[%s1 + $0x710] sm:$0xff]
  %v263 = vld [vmem:[%s1 + $0x718] sm:$0xf]
  %v264 = vld [vmem:[%s1 + $0x71c] sm:$0xff]
  %v265 = vld [vmem:[%s1 + $0x724] sm:$0xff]
  %v266 = vld [vmem:[%s1 + $0x72c] sm:$0xff]
  %v267 = vld [vmem:[%s1 + $0x734] sm:$0xff]
  %v268 = vld [vmem:[%s1 + $0x73c] sm:$0xff]
  %v269 = vld [vmem:[%s1 + $0x744] sm:$0xff]
  %v270 = vld [vmem:[%s1 + $0x74c] sm:$0xf]
  %v271 = vld [vmem:[%s1 + $0x750] sm:$0xff]
  %v272 = vld [vmem:[%s1 + $0x758] sm:$0xff]
  %v273 = vld [vmem:[%s1 + $0x760] sm:$0xff]
  %v274 = vld [vmem:[%s1 + $0x768] sm:$0xff]
  %v275 = vld [vmem:[%s1 + $0x770] sm:$0xff]
  %v276 = vld [vmem:[%s1 + $0x778] sm:$0xff]
  %v277 = vld [vmem:[%s1 + $0x780] sm:$0xf]
  %v278 = vld [vmem:[%s1 + $0x784] sm:$0xff]
  %v279 = vld [vmem:[%s1 + $0x78c] sm:$0xff]
  %v280 = vld [vmem:[%s1 + $0x794] sm:$0xff]
  %v281 = vld [vmem:[%s1 + $0x79c] sm:$0xff]
  %v282 = vld [vmem:[%s1 + $0x7a4] sm:$0xff]
  %v283 = vld [vmem:[%s1 + $0x7ac] sm:$0xff]
  %v284 = vld [vmem:[%s1 + $0x7b4] sm:$0xf]
  %v285 = vld [vmem:[%s1 + $0x7b8] sm:$0xff]
  %v286 = vld [vmem:[%s1 + $0x7c0] sm:$0xff]
  %v287 = vld [vmem:[%s1 + $0x7c8] sm:$0xff]
  %v288 = vld [vmem:[%s1 + $0x7d0] sm:$0xff]
  %v289 = vld [vmem:[%s1 + $0x7d8] sm:$0xff]
  %v290 = vld [vmem:[%s1 + $0x7e0] sm:$0xff]
  %v291 = vld [vmem:[%s1 + $0x7e8] sm:$0xf]
  %v292 = vld [vmem:[%s1 + $0x7ec] sm:$0xff]
  %v293 = vld [vmem:[%s1 + $0x7f4] sm:$0xff]
  %v294 = vld [vmem:[%s1 + $0x7fc] sm:$0xff]
  %v295 = vld [vmem:[%s1 + $0x804] sm:$0xff]
  %v296 = vld [vmem:[%s1 + $0x80c] sm:$0xff]
  %v297 = vld [vmem:[%s1 + $0x814] sm:$0xff]
  %v298 = vld [vmem:[%s1 + $0x81c] sm:$0xf]
  %v299 = vld [vmem:[%s1 + $0x820] sm:$0xff]
  %v300 = vld [vmem:[%s1 + $0x828] sm:$0xff]
  %v301 = vld [vmem:[%s1 + $0x830] sm:$0xff]
  %v302 = vld [vmem:[%s1 + $0x838] sm:$0xff]
  %v303 = vld [vmem:[%s1 + $0x840] sm:$0xff]
  %v304 = vld [vmem:[%s1 + $0x848] sm:$0xff]
  %v305 = vld [vmem:[%s1 + $0x850] sm:$0xf]
  %v306 = vld [vmem:[%s1 + $0x854] sm:$0xff]
  %v307 = vld [vmem:[%s1 + $0x85c] sm:$0xff]
  %v308 = vld [vmem:[%s1 + $0x864] sm:$0xff]
  %v309 = vld [vmem:[%s1 + $0x86c] sm:$0xff]
  %v310 = vld [vmem:[%s1 + $0x874] sm:$0xff]
  %v311 = vld [vmem:[%s1 + $0x87c] sm:$0xff]
  %v312 = vld [vmem:[%s1 + $0x884] sm:$0xf]
  %v313 = vld [vmem:[%s1 + $0x888] sm:$0xff]
  %v314 = vld [vmem:[%s1 + $0x890] sm:$0xff]
  %v315 = vld [vmem:[%s1 + $0x898] sm:$0xff]
  %v316 = vld [vmem:[%s1 + $0x8a0] sm:$0xff]
  %v317 = vld [vmem:[%s1 + $0x8a8] sm:$0xff]
  %v318 = vld [vmem:[%s1 + $0x8b0] sm:$0xff]
  %v319 = vld [vmem:[%s1 + $0x8b8] sm:$0xf]
  %v320 = vld [vmem:[%s1 + $0x8bc] sm:$0xff]
  %v321 = vld [vmem:[%s1 + $0x8c4] sm:$0xff]
  %v322 = vld [vmem:[%s1 + $0x8cc] sm:$0xff]
  %v323 = vld [vmem:[%s1 + $0x8d4] sm:$0xff]
  %v324 = vld [vmem:[%s1 + $0x8dc] sm:$0xff]
  %v325 = vld [vmem:[%s1 + $0x8e4] sm:$0xff]
  %v326 = vld [vmem:[%s1 + $0x8ec] sm:$0xf]
  %v327 = vld [vmem:[%s1 + $0x8f0] sm:$0xff]
  %v328 = vld [vmem:[%s1 + $0x8f8] sm:$0xff]
  %v329 = vld [vmem:[%s1 + $0x900] sm:$0xff]
  %v330 = vld [vmem:[%s1 + $0x908] sm:$0xff]
  %v331 = vld [vmem:[%s1 + $0x910] sm:$0xff]
  %v332 = vld [vmem:[%s1 + $0x918] sm:$0xff]
  %v333 = vld [vmem:[%s1 + $0x920] sm:$0xf]
  %v334 = vld [vmem:[%s1 + $0x924] sm:$0xff]
  %v335 = vld [vmem:[%s1 + $0x92c] sm:$0xff]
  %v336 = vld [vmem:[%s1 + $0x934] sm:$0xff]
  %v337 = vld [vmem:[%s1 + $0x93c] sm:$0xff]
  %v338 = vld [vmem:[%s1 + $0x944] sm:$0xff]
  %v339 = vld [vmem:[%s1 + $0x94c] sm:$0xff]
  %v340 = vld [vmem:[%s1 + $0x954] sm:$0xf]
  %v341 = vld [vmem:[%s1 + $0x958] sm:$0xff]
  %v342 = vld [vmem:[%s1 + $0x960] sm:$0xff]
  %v343 = vld [vmem:[%s1 + $0x968] sm:$0xff]
  %v344 = vld [vmem:[%s1 + $0x970] sm:$0xff]
  %v345 = vld [vmem:[%s1 + $0x978] sm:$0xff]
  %v346 = vld [vmem:[%s1 + $0x980] sm:$0xff]
  %v347 = vld [vmem:[%s1 + $0x988] sm:$0xf]
  %v348 = vld [vmem:[%s1 + $0x98c] sm:$0xff]
  %v349 = vld [vmem:[%s1 + $0x994] sm:$0xff]
  %v350 = vld [vmem:[%s1 + $0x99c] sm:$0xff]
  %v351 = vld [vmem:[%s1 + $0x9a4] sm:$0xff]
  %v352 = vld [vmem:[%s1 + $0x9ac] sm:$0xff]
  %v353 = vld [vmem:[%s1 + $0x9b4] sm:$0xff]
  %v354 = vld [vmem:[%s1 + $0x9bc] sm:$0xf]
  %v355 = vld [vmem:[%s1 + $0x9c0] sm:$0xff]
  %v356 = vld [vmem:[%s1 + $0x9c8] sm:$0xff]
  %v357 = vld [vmem:[%s1 + $0x9d0] sm:$0xff]
  %v358 = vld [vmem:[%s1 + $0x9d8] sm:$0xff]
  %v359 = vld [vmem:[%s1 + $0x9e0] sm:$0xff]
  %v360 = vld [vmem:[%s1 + $0x9e8] sm:$0xff]
  %v361 = vld [vmem:[%s1 + $0x9f0] sm:$0xf]
  %v362 = vld [vmem:[%s1 + $0x9f4] sm:$0xff]
  %v363 = vld [vmem:[%s1 + $0x9fc] sm:$0xff]
  %v364 = vld [vmem:[%s1 + $0xa04] sm:$0xff]
  %v365 = vld [vmem:[%s1 + $0xa0c] sm:$0xff]
  %v366 = vld [vmem:[%s1 + $0xa14] sm:$0xff]
  %v367 = vld [vmem:[%s1 + $0xa1c] sm:$0xff]
  %v368 = vld [vmem:[%s1 + $0xa24] sm:$0xf]
  %v369 = vld [vmem:[%s1 + $0xa28] sm:$0xff]
  %v370 = vld [vmem:[%s1 + $0xa30] sm:$0xff]
  %v371 = vld [vmem:[%s1 + $0xa38] sm:$0xff]
  %v372 = vld [vmem:[%s1 + $0xa40] sm:$0xff]
  %v373 = vld [vmem:[%s1 + $0xa48] sm:$0xff]
  %v374 = vld [vmem:[%s1 + $0xa50] sm:$0xff]
  %v375 = vld [vmem:[%s1 + $0xa58] sm:$0xf]
  %v376 = vld [vmem:[%s1 + $0xa5c] sm:$0xff]
  %v377 = vld [vmem:[%s1 + $0xa64] sm:$0xff]
  %v378 = vld [vmem:[%s1 + $0xa6c] sm:$0xff]
  %v379 = vld [vmem:[%s1 + $0xa74] sm:$0xff]
  %v380 = vld [vmem:[%s1 + $0xa7c] sm:$0xff]
  %v381 = vld [vmem:[%s1 + $0xa84] sm:$0xff]
  %v382 = vld [vmem:[%s1 + $0xa8c] sm:$0xf]
  %v383 = vld [vmem:[%s1 + $0xa90] sm:$0xff]
  %v384 = vld [vmem:[%s1 + $0xa98] sm:$0xff]
  %v385 = vld [vmem:[%s1 + $0xaa0] sm:$0xff]
  %v386 = vld [vmem:[%s1 + $0xaa8] sm:$0xff]
  %v387 = vld [vmem:[%s1 + $0xab0] sm:$0xff]
  %v388 = vld [vmem:[%s1 + $0xab8] sm:$0xff]
  %v389 = vld [vmem:[%s1 + $0xac0] sm:$0xf]
  %v390 = vld [vmem:[%s1 + $0xac4] sm:$0xff]
  %v391 = vld [vmem:[%s1 + $0xacc] sm:$0xff]
  %v392 = vld [vmem:[%s1 + $0xad4] sm:$0xff]
  %v393 = vld [vmem:[%s1 + $0xadc] sm:$0xff]
  %v394 = vld [vmem:[%s1 + $0xae4] sm:$0xff]
  %v395 = vld [vmem:[%s1 + $0xaec] sm:$0xff]
  %v396 = vld [vmem:[%s1 + $0xaf4] sm:$0xf]
  %v397 = vld [vmem:[%s1 + $0xaf8] sm:$0xff]
  %v398 = vld [vmem:[%s1 + $0xb00] sm:$0xff]
  %v399 = vld [vmem:[%s1 + $0xb08] sm:$0xff]
  %v400 = vld [vmem:[%s1 + $0xb10] sm:$0xff]
  %v401 = vld [vmem:[%s1 + $0xb18] sm:$0xff]
  %v402 = vld [vmem:[%s1 + $0xb20] sm:$0xff]
  %v403 = vld [vmem:[%s1 + $0xb28] sm:$0xf]
  %v404 = vld [vmem:[%s1 + $0xb2c] sm:$0xff]
  %v405 = vld [vmem:[%s1 + $0xb34] sm:$0xff]
  %v406 = vld [vmem:[%s1 + $0xb3c] sm:$0xff]
  %v407 = vld [vmem:[%s1 + $0xb44] sm:$0xff]
  %v408 = vld [vmem:[%s1 + $0xb4c] sm:$0xff]
  %v409 = vld [vmem:[%s1 + $0xb54] sm:$0xff]
  %v410 = vld [vmem:[%s1 + $0xb5c] sm:$0xf]
  %v411 = vld [vmem:[%s1 + $0xb60] sm:$0xff]
  %v412 = vld [vmem:[%s1 + $0xb68] sm:$0xff]
  %v413 = vld [vmem:[%s1 + $0xb70] sm:$0xff]
  %v414 = vld [vmem:[%s1 + $0xb78] sm:$0xff]
  %v415 = vld [vmem:[%s1 + $0xb80] sm:$0xff]
  %v416 = vld [vmem:[%s1 + $0xb88] sm:$0xff]
  %v417 = vld [vmem:[%s1 + $0xb90] sm:$0xf]
  %v418 = vld [vmem:[%s1 + $0xb94] sm:$0xff]
  %v419 = vld [vmem:[%s1 + $0xb9c] sm:$0xff]
  %v420 = vld [vmem:[%s1 + $0xba4] sm:$0xff]
  %v421 = vld [vmem:[%s1 + $0xbac] sm:$0xff]
  %v422 = vld [vmem:[%s1 + $0xbb4] sm:$0xff]
  %v423 = vld [vmem:[%s1 + $0xbbc] sm:$0xff]
  %v424 = vld [vmem:[%s1 + $0xbc4] sm:$0xf]
  %v425 = vld [vmem:[%s1 + $0xbc8] sm:$0xff]
  %v426 = vld [vmem:[%s1 + $0xbd0] sm:$0xff]
  %v427 = vld [vmem:[%s1 + $0xbd8] sm:$0xff]
  %v428 = vld [vmem:[%s1 + $0xbe0] sm:$0xff]
  %v429 = vld [vmem:[%s1 + $0xbe8] sm:$0xff]
  %v430 = vld [vmem:[%s1 + $0xbf0] sm:$0xff]
  %v431 = vld [vmem:[%s1 + $0xbf8] sm:$0xf]
  %v432 = vld [vmem:[%s1 + $0xbfc] sm:$0xff]
  %v433 = vld [vmem:[%s1 + $0xc04] sm:$0xff]
  %v434 = vld [vmem:[%s1 + $0xc0c] sm:$0xff]
  %v435 = vld [vmem:[%s1 + $0xc14] sm:$0xff]
  %v436 = vld [vmem:[%s1 + $0xc1c] sm:$0xff]
  %v437 = vld [vmem:[%s1 + $0xc24] sm:$0xff]
  %v438 = vld [vmem:[%s1 + $0xc2c] sm:$0xf]
  %v439 = vld [vmem:[%s1 + $0xc30] sm:$0xff]
  %v440 = vld [vmem:[%s1 + $0xc38] sm:$0xff]
  %v441 = vld [vmem:[%s1 + $0xc40] sm:$0xff]
  %v442 = vld [vmem:[%s1 + $0xc48] sm:$0xff]
  %v443 = vld [vmem:[%s1 + $0xc50] sm:$0xff]
  %v444 = vld [vmem:[%s1 + $0xc58] sm:$0xff]
  %v445 = vld [vmem:[%s1 + $0xc60] sm:$0xf]
  %v446 = vld [vmem:[%s1 + $0xc64] sm:$0xff]
  %v447 = vld [vmem:[%s1 + $0xc6c] sm:$0xff]
  %v448 = vld [vmem:[%s1 + $0xc74] sm:$0xff]
  %v449 = vld [vmem:[%s1 + $0xc7c] sm:$0xff]
  %v450 = vld [vmem:[%s1 + $0xc84] sm:$0xff]
  %v451 = vld [vmem:[%s1 + $0xc8c] sm:$0xff]
  %v452 = vld [vmem:[%s1 + $0xc94] sm:$0xf]
  %v453 = vld [vmem:[%s1 + $0xc98] sm:$0xff]
  %v454 = vld [vmem:[%s1 + $0xca0] sm:$0xff]
  %v455 = vld [vmem:[%s1 + $0xca8] sm:$0xff]
  %v456 = vld [vmem:[%s1 + $0xcb0] sm:$0xff]
  %v457 = vld [vmem:[%s1 + $0xcb8] sm:$0xff]
  %v458 = vld [vmem:[%s1 + $0xcc0] sm:$0xff]
  %v459 = vld [vmem:[%s1 + $0xcc8] sm:$0xf]
  %v460 = vld [vmem:[%s1 + $0xccc] sm:$0xff]
  %v461 = vld [vmem:[%s1 + $0xcd4] sm:$0xff]
  %v462 = vld [vmem:[%s1 + $0xcdc] sm:$0xff]
  %v463 = vld [vmem:[%s1 + $0xce4] sm:$0xff]
  %v464 = vld [vmem:[%s1 + $0xcec] sm:$0xff]
  %v465 = vld [vmem:[%s1 + $0xcf4] sm:$0xff]
  %v466 = vld [vmem:[%s1 + $0xcfc] sm:$0xf]
  %v467 = vld [vmem:[%s1 + $0xd00] sm:$0xff]
  %v468 = vld [vmem:[%s1 + $0xd08] sm:$0xff]
  %v469 = vld [vmem:[%s1 + $0xd10] sm:$0xff]
  %v470 = vld [vmem:[%s1 + $0xd18] sm:$0xff]
  %v471 = vld [vmem:[%s1 + $0xd20] sm:$0xff]
  %v472 = vld [vmem:[%s1 + $0xd28] sm:$0xff]
  %v473 = vld [vmem:[%s1 + $0xd30] sm:$0xf]
  %v474 = vld [vmem:[%s1 + $0xd34] sm:$0xff]
  %v475 = vld [vmem:[%s1 + $0xd3c] sm:$0xff]
  %v476 = vld [vmem:[%s1 + $0xd44] sm:$0xff]
  %v477 = vld [vmem:[%s1 + $0xd4c] sm:$0xff]
  %v478 = vld [vmem:[%s1 + $0xd54] sm:$0xff]
  %v479 = vld [vmem:[%s1 + $0xd5c] sm:$0xff]
  %v480 = vld [vmem:[%s1 + $0xd64] sm:$0xf]
  %v481 = vld [vmem:[%s1 + $0xd68] sm:$0xff]
  %v482 = vld [vmem:[%s1 + $0xd70] sm:$0xff]
  %v483 = vld [vmem:[%s1 + $0xd78] sm:$0xff]
  %v484 = vld [vmem:[%s1 + $0xd80] sm:$0xff]
  %v485 = vld [vmem:[%s1 + $0xd88] sm:$0xff]
  %v486 = vld [vmem:[%s1 + $0xd90] sm:$0xff]
  %v487 = vld [vmem:[%s1 + $0xd98] sm:$0xf]
  %v488 = vld [vmem:[%s1 + $0xd9c] sm:$0xff]
  %v489 = vld [vmem:[%s1 + $0xda4] sm:$0xff]
  %v490 = vld [vmem:[%s1 + $0xdac] sm:$0xff]
  %v491 = vld [vmem:[%s1 + $0xdb4] sm:$0xff]
  %v492 = vld [vmem:[%s1 + $0xdbc] sm:$0xff]
  %v493 = vld [vmem:[%s1 + $0xdc4] sm:$0xff]
  %v494 = vld [vmem:[%s1 + $0xdcc] sm:$0xf]
  %v495 = vld [vmem:[%s1 + $0xdd0] sm:$0xff]
  %v496 = vld [vmem:[%s1 + $0xdd8] sm:$0xff]
  %v497 = vld [vmem:[%s1 + $0xde0] sm:$0xff]
  %v498 = vld [vmem:[%s1 + $0xde8] sm:$0xff]
  %v499 = vld [vmem:[%s1 + $0xdf0] sm:$0xff]
  %v500 = vld [vmem:[%s1 + $0xdf8] sm:$0xff]
  %v501 = vld [vmem:[%s1 + $0xe00] sm:$0xf]
  %v502 = vld [vmem:[%s1 + $0xe04] sm:$0xff]
  %v503 = vld [vmem:[%s1 + $0xe0c] sm:$0xff]
  %v504 = vld [vmem:[%s1 + $0xe14] sm:$0xff]
  %v505 = vld [vmem:[%s1 + $0xe1c] sm:$0xff]
  %v506 = vld [vmem:[%s1 + $0xe24] sm:$0xff]
  %v507 = vld [vmem:[%s1 + $0xe2c] sm:$0xff]
  %v508 = vld [vmem:[%s1 + $0xe34] sm:$0xf]
  %v509 = vld [vmem:[%s1 + $0xe38] sm:$0xff]
  %v510 = vld [vmem:[%s1 + $0xe40] sm:$0xff]
  %v511 = vld [vmem:[%s1 + $0xe48] sm:$0xff]
  %v512 = vld [vmem:[%s1 + $0xe50] sm:$0xff]
  %v513 = vld [vmem:[%s1 + $0xe58] sm:$0xff]
  %v514 = vld [vmem:[%s1 + $0xe60] sm:$0xff]
  %v515 = vld [vmem:[%s1 + $0xe68] sm:$0xf]
  %v516 = vld [vmem:[%s1 + $0xe6c] sm:$0xff]
  %v517 = vld [vmem:[%s1 + $0xe74] sm:$0xff]
  %v518 = vld [vmem:[%s1 + $0xe7c] sm:$0xff]
  %v519 = vld [vmem:[%s1 + $0xe84] sm:$0xff]
  %v520 = vld [vmem:[%s1 + $0xe8c] sm:$0xff]
  %v521 = vld [vmem:[%s1 + $0xe94] sm:$0xff]
  %v522 = vld [vmem:[%s1 + $0xe9c] sm:$0xf]
  %v523 = vld [vmem:[%s1 + $0xea0] sm:$0xff]
  %v524 = vld [vmem:[%s1 + $0xea8] sm:$0xff]
  %v525 = vld [vmem:[%s1 + $0xeb0] sm:$0xff]
  %v526 = vld [vmem:[%s1 + $0xeb8] sm:$0xff]
  %v527 = vld [vmem:[%s1 + $0xec0] sm:$0xff]
  %v528 = vld [vmem:[%s1 + $0xec8] sm:$0xff]
  %v529 = vld [vmem:[%s1 + $0xed0] sm:$0xf]
  %v530 = vld [vmem:[%s1 + $0xed4] sm:$0xff]
  %v531 = vld [vmem:[%s1 + $0xedc] sm:$0xff]
  %v532 = vld [vmem:[%s1 + $0xee4] sm:$0xff]
  %v533 = vld [vmem:[%s1 + $0xeec] sm:$0xff]
  %v534 = vld [vmem:[%s1 + $0xef4] sm:$0xff]
  %v535 = vld [vmem:[%s1 + $0xefc] sm:$0xff]
  %v536 = vld [vmem:[%s1 + $0xf04] sm:$0xf]
  %v537 = vld [vmem:[%s1 + $0xf08] sm:$0xff]
  %v538 = vld [vmem:[%s1 + $0xf10] sm:$0xff]
  %v539 = vld [vmem:[%s1 + $0xf18] sm:$0xff]
  %v540 = vld [vmem:[%s1 + $0xf20] sm:$0xff]
  %v541 = vld [vmem:[%s1 + $0xf28] sm:$0xff]
  %v542 = vld [vmem:[%s1 + $0xf30] sm:$0xff]
  %v543 = vld [vmem:[%s1 + $0xf38] sm:$0xf]
  %v544 = vld [vmem:[%s1 + $0xf3c] sm:$0xff]
  %v545 = vld [vmem:[%s1 + $0xf44] sm:$0xff]
  %v546 = vld [vmem:[%s1 + $0xf4c] sm:$0xff]
  %v547 = vld [vmem:[%s1 + $0xf54] sm:$0xff]
  %v548 = vld [vmem:[%s1 + $0xf5c] sm:$0xff]
  %v549 = vld [vmem:[%s1 + $0xf64] sm:$0xff]
  %v550 = vld [vmem:[%s1 + $0xf6c] sm:$0xf]
  %v551 = vld [vmem:[%s1 + $0xf70] sm:$0xff]
  %v552 = vld [vmem:[%s1 + $0xf78] sm:$0xff]
  %v553 = vld [vmem:[%s1 + $0xf80] sm:$0xff]
  %v554 = vld [vmem:[%s1 + $0xf88] sm:$0xff]
  %v555 = vld [vmem:[%s1 + $0xf90] sm:$0xff]
  %v556 = vld [vmem:[%s1 + $0xf98] sm:$0xff]
  %v557 = vld [vmem:[%s1 + $0xfa0] sm:$0xf]
  %v558 = vld [vmem:[%s1 + $0xfa4] sm:$0xff]
  %v559 = vld [vmem:[%s1 + $0xfac] sm:$0xff]
  %v560 = vld [vmem:[%s1 + $0xfb4] sm:$0xff]
  %v561 = vld [vmem:[%s1 + $0xfbc] sm:$0xff]
  %v562 = vld [vmem:[%s1 + $0xfc4] sm:$0xff]
  %v563 = vld [vmem:[%s1 + $0xfcc] sm:$0xff]
  %v564 = vld [vmem:[%s1 + $0xfd4] sm:$0xf]
  %v565 = vld [vmem:[%s1 + $0xfd8] sm:$0xff]
  %v566 = vld [vmem:[%s1 + $0xfe0] sm:$0xff]
  %v567 = vld [vmem:[%s1 + $0xfe8] sm:$0xff]
  %v568 = vld [vmem:[%s1 + $0xff0] sm:$0xff]
  %v569 = vld [vmem:[%s1 + $0xff8] sm:$0xff]
  %v570 = vld [vmem:[%s1 + $0x1000] sm:$0xff]
  %v571 = vld [vmem:[%s1 + $0x1008] sm:$0xf]
  %v572 = vld [vmem:[%s1 + $0x100c] sm:$0xff]
  %v573 = vld [vmem:[%s1 + $0x1014] sm:$0xff]
  %v574 = vld [vmem:[%s1 + $0x101c] sm:$0xff]
  %v575 = vld [vmem:[%s1 + $0x1024] sm:$0xff]
  %v576 = vld [vmem:[%s1 + $0x102c] sm:$0xff]
  %v577 = vld [vmem:[%s1 + $0x1034] sm:$0xff]
  %v578 = vld [vmem:[%s1 + $0x103c] sm:$0xf]
  %v579 = vld [vmem:[%s1 + $0x1040] sm:$0xff]
  %v580 = vld [vmem:[%s1 + $0x1048] sm:$0xff]
  %v581 = vld [vmem:[%s1 + $0x1050] sm:$0xff]
  %v582 = vld [vmem:[%s1 + $0x1058] sm:$0xff]
  %v583 = vld [vmem:[%s1 + $0x1060] sm:$0xff]
  %v584 = vld [vmem:[%s1 + $0x1068] sm:$0xff]
  %v585 = vld [vmem:[%s1 + $0x1070] sm:$0xf]
  %v586 = vld [vmem:[%s1 + $0x1074] sm:$0xff]
  %v587 = vld [vmem:[%s1 + $0x107c] sm:$0xff]
  %v588 = vld [vmem:[%s1 + $0x1084] sm:$0xff]
  %v589 = vld [vmem:[%s1 + $0x108c] sm:$0xff]
  %v590 = vld [vmem:[%s1 + $0x1094] sm:$0xff]
  %v591 = vld [vmem:[%s1 + $0x109c] sm:$0xff]
  %v592 = vld [vmem:[%s1 + $0x10a4] sm:$0xf]
  %v593 = vld [vmem:[%s1 + $0x10a8] sm:$0xff]
  %v594 = vld [vmem:[%s1 + $0x10b0] sm:$0xff]
  %v595 = vld [vmem:[%s1 + $0x10b8] sm:$0xff]
  %v596 = vld [vmem:[%s1 + $0x10c0] sm:$0xff]
  %v597 = vld [vmem:[%s1 + $0x10c8] sm:$0xff]
  %v598 = vld [vmem:[%s1 + $0x10d0] sm:$0xff]
  %v599 = vld [vmem:[%s1 + $0x10d8] sm:$0xf]
  %v600 = vld [vmem:[%s1 + $0x10dc] sm:$0xff]
  %v601 = vld [vmem:[%s1 + $0x10e4] sm:$0xff]
  %v602 = vld [vmem:[%s1 + $0x10ec] sm:$0xff]
  %v603 = vld [vmem:[%s1 + $0x10f4] sm:$0xff]
  %v604 = vld [vmem:[%s1 + $0x10fc] sm:$0xff]
  %v605 = vld [vmem:[%s1 + $0x1104] sm:$0xff]
  %v606 = vld [vmem:[%s1 + $0x110c] sm:$0xf]
  %v607 = vld [vmem:[%s1 + $0x1110] sm:$0xff]
  %v608 = vld [vmem:[%s1 + $0x1118] sm:$0xff]
  %v609 = vld [vmem:[%s1 + $0x1120] sm:$0xff]
  %v610 = vld [vmem:[%s1 + $0x1128] sm:$0xff]
  %v611 = vld [vmem:[%s1 + $0x1130] sm:$0xff]
  %v612 = vld [vmem:[%s1 + $0x1138] sm:$0xff]
  %v613 = vld [vmem:[%s1 + $0x1140] sm:$0xf]
  %v614 = vld [vmem:[%s1 + $0x1144] sm:$0xff]
  %v615 = vld [vmem:[%s1 + $0x114c] sm:$0xff]
  %v616 = vld [vmem:[%s1 + $0x1154] sm:$0xff]
  %v617 = vld [vmem:[%s1 + $0x115c] sm:$0xff]
  %v618 = vld [vmem:[%s1 + $0x1164] sm:$0xff]
  %v619 = vld [vmem:[%s1 + $0x116c] sm:$0xff]
  %v620 = vld [vmem:[%s1 + $0x1174] sm:$0xf]
  %v621 = vld [vmem:[%s1 + $0x1178] sm:$0xff]
  %v622 = vld [vmem:[%s1 + $0x1180] sm:$0xff]
  %v623 = vld [vmem:[%s1 + $0x1188] sm:$0xff]
  %v624 = vld [vmem:[%s1 + $0x1190] sm:$0xff]
  %v625 = vld [vmem:[%s1 + $0x1198] sm:$0xff]
  %v626 = vld [vmem:[%s1 + $0x11a0] sm:$0xff]
  %v627 = vld [vmem:[%s1 + $0x11a8] sm:$0xf]
  %v628 = vld [vmem:[%s1 + $0x11ac] sm:$0xff]
  %v629 = vld [vmem:[%s1 + $0x11b4] sm:$0xff]
  %v630 = vld [vmem:[%s1 + $0x11bc] sm:$0xff]
  %v631 = vld [vmem:[%s1 + $0x11c4] sm:$0xff]
  %v632 = vld [vmem:[%s1 + $0x11cc] sm:$0xff]
  %v633 = vld [vmem:[%s1 + $0x11d4] sm:$0xff]
  %v634 = vld [vmem:[%s1 + $0x11dc] sm:$0xf]
  %v635 = vld [vmem:[%s1 + $0x11e0] sm:$0xff]
  %v636 = vld [vmem:[%s1 + $0x11e8] sm:$0xff]
  %v637 = vld [vmem:[%s1 + $0x11f0] sm:$0xff]
  %v638 = vld [vmem:[%s1 + $0x11f8] sm:$0xff]
  %v639 = vld [vmem:[%s1 + $0x1200] sm:$0xff]
  %v640 = vld [vmem:[%s1 + $0x1208] sm:$0xff]
  %v641 = vld [vmem:[%s1 + $0x1210] sm:$0xf]
  %v642 = vld [vmem:[%s1 + $0x1214] sm:$0xff]
  %v643 = vld [vmem:[%s1 + $0x121c] sm:$0xff]
  %v644 = vld [vmem:[%s1 + $0x1224] sm:$0xff]
  %v645 = vld [vmem:[%s1 + $0x122c] sm:$0xff]
  %v646 = vld [vmem:[%s1 + $0x1234] sm:$0xff]
  %v647 = vld [vmem:[%s1 + $0x123c] sm:$0xff]
  %v648 = vld [vmem:[%s1 + $0x1244] sm:$0xf]
  %v649 = vld [vmem:[%s1 + $0x1248] sm:$0xff]
  %v650 = vld [vmem:[%s1 + $0x1250] sm:$0xff]
  %v651 = vld [vmem:[%s1 + $0x1258] sm:$0xff]
  %v652 = vld [vmem:[%s1 + $0x1260] sm:$0xff]
  %v653 = vld [vmem:[%s1 + $0x1268] sm:$0xff]
  %v654 = vld [vmem:[%s1 + $0x1270] sm:$0xff]
  %v655 = vld [vmem:[%s1 + $0x1278] sm:$0xf]
  %v656 = vld [vmem:[%s1 + $0x127c] sm:$0xff]
  %v657 = vld [vmem:[%s1 + $0x1284] sm:$0xff]
  %v658 = vld [vmem:[%s1 + $0x128c] sm:$0xff]
  %v659 = vld [vmem:[%s1 + $0x1294] sm:$0xff]
  %v660 = vld [vmem:[%s1 + $0x129c] sm:$0xff]
  %v661 = vld [vmem:[%s1 + $0x12a4] sm:$0xff]
  %v662 = vld [vmem:[%s1 + $0x12ac] sm:$0xf]
  %v663 = vld [vmem:[%s1 + $0x12b0] sm:$0xff]
  %v664 = vld [vmem:[%s1 + $0x12b8] sm:$0xff]
  %v665 = vld [vmem:[%s1 + $0x12c0] sm:$0xff]
  %v666 = vld [vmem:[%s1 + $0x12c8] sm:$0xff]
  %v667 = vld [vmem:[%s1 + $0x12d0] sm:$0xff]
  %v668 = vld [vmem:[%s1 + $0x12d8] sm:$0xff]
  %v669 = vld [vmem:[%s1 + $0x12e0] sm:$0xf]
  %v670 = vld [vmem:[%s1 + $0x12e4] sm:$0xff]
  %v671 = vld [vmem:[%s1 + $0x12ec] sm:$0xff]
  %v672 = vld [vmem:[%s1 + $0x12f4] sm:$0xff]
  %v673 = vld [vmem:[%s1 + $0x12fc] sm:$0xff]
  %v674 = vld [vmem:[%s1 + $0x1304] sm:$0xff]
  %v675 = vld [vmem:[%s1 + $0x130c] sm:$0xff]
  %v676 = vld [vmem:[%s1 + $0x1314] sm:$0xf]
  %v677 = vld [vmem:[%s1 + $0x1318] sm:$0xff]
  %v678 = vld [vmem:[%s1 + $0x1320] sm:$0xff]
  %v679 = vld [vmem:[%s1 + $0x1328] sm:$0xff]
  %v680 = vld [vmem:[%s1 + $0x1330] sm:$0xff]
  %v681 = vld [vmem:[%s1 + $0x1338] sm:$0xff]
  %v682 = vld [vmem:[%s1 + $0x1340] sm:$0xff]
  %v683 = vld [vmem:[%s1 + $0x1348] sm:$0xf]
  %v684 = vld [vmem:[%s1 + $0x134c] sm:$0xff]
  %v685 = vld [vmem:[%s1 + $0x1354] sm:$0xff]
  %v686 = vld [vmem:[%s1 + $0x135c] sm:$0xff]
  %v687 = vld [vmem:[%s1 + $0x1364] sm:$0xff]
  %v688 = vld [vmem:[%s1 + $0x136c] sm:$0xff]
  %v689 = vld [vmem:[%s1 + $0x1374] sm:$0xff]
  %v690 = vld [vmem:[%s1 + $0x137c] sm:$0xf]
  %v691 = vld [vmem:[%s1 + $0x1380] sm:$0xff]
  %v692 = vld [vmem:[%s1 + $0x1388] sm:$0xff]
  %v693 = vld [vmem:[%s1 + $0x1390] sm:$0xff]
  %v694 = vld [vmem:[%s1 + $0x1398] sm:$0xff]
  %v695 = vld [vmem:[%s1 + $0x13a0] sm:$0xff]
  %v696 = vld [vmem:[%s1 + $0x13a8] sm:$0xff]
  %v697 = vld [vmem:[%s1 + $0x13b0] sm:$0xf]
  %v698 = vld [vmem:[%s1 + $0x13b4] sm:$0xff]
  %v699 = vld [vmem:[%s1 + $0x13bc] sm:$0xff]
  %v700 = vld [vmem:[%s1 + $0x13c4] sm:$0xff]
  %v701 = vld [vmem:[%s1 + $0x13cc] sm:$0xff]
  %v702 = vld [vmem:[%s1 + $0x13d4] sm:$0xff]
  %v703 = vld [vmem:[%s1 + $0x13dc] sm:$0xff]
  %v704 = vld [vmem:[%s1 + $0x13e4] sm:$0xf]
  %v705 = vld [vmem:[%s1 + $0x13e8] sm:$0xff]
  %v706 = vld [vmem:[%s1 + $0x13f0] sm:$0xff]
  %v707 = vld [vmem:[%s1 + $0x13f8] sm:$0xff]
  %v708 = vld [vmem:[%s1 + $0x1400] sm:$0xff]
  %v709 = vld [vmem:[%s1 + $0x1408] sm:$0xff]
  %v710 = vld [vmem:[%s1 + $0x1410] sm:$0xff]
  %v711 = vld [vmem:[%s1 + $0x1418] sm:$0xf]
  %v712 = vld [vmem:[%s1 + $0x141c] sm:$0xff]
  %v713 = vld [vmem:[%s1 + $0x1424] sm:$0xff]
  %v714 = vld [vmem:[%s1 + $0x142c] sm:$0xff]
  %v715 = vld [vmem:[%s1 + $0x1434] sm:$0xff]
  %v716 = vld [vmem:[%s1 + $0x143c] sm:$0xff]
  %v717 = vld [vmem:[%s1 + $0x1444] sm:$0xff]
  %v718 = vld [vmem:[%s1 + $0x144c] sm:$0xf]
  %v719 = vld [vmem:[%s1 + $0x1450] sm:$0xff]
  %v720 = vld [vmem:[%s1 + $0x1458] sm:$0xff]
  %v721 = vld [vmem:[%s1 + $0x1460] sm:$0xff]
  %v722 = vld [vmem:[%s1 + $0x1468] sm:$0xff]
  %v723 = vld [vmem:[%s1 + $0x1470] sm:$0xff]
  %v724 = vld [vmem:[%s1 + $0x1478] sm:$0xff]
  %v725 = vld [vmem:[%s1 + $0x1480] sm:$0xf]
  %v726 = vld [vmem:[%s1 + $0x1484] sm:$0xff]
  %v727 = vld [vmem:[%s1 + $0x148c] sm:$0xff]
  %v728 = vld [vmem:[%s1 + $0x1494] sm:$0xff]
  %v729 = vld [vmem:[%s1 + $0x149c] sm:$0xff]
  %v730 = vld [vmem:[%s1 + $0x14a4] sm:$0xff]
  %v731 = vld [vmem:[%s1 + $0x14ac] sm:$0xff]
  %v732 = vld [vmem:[%s1 + $0x14b4] sm:$0xf]
  %v733 = vld [vmem:[%s1 + $0x14b8] sm:$0xff]
  %v734 = vld [vmem:[%s1 + $0x14c0] sm:$0xff]
  %v735 = vld [vmem:[%s1 + $0x14c8] sm:$0xff]
  %v736 = vld [vmem:[%s1 + $0x14d0] sm:$0xff]
  %v737 = vld [vmem:[%s1 + $0x14d8] sm:$0xff]
  %v738 = vld [vmem:[%s1 + $0x14e0] sm:$0xff]
  %v739 = vld [vmem:[%s1 + $0x14e8] sm:$0xf]
  %v740 = vld [vmem:[%s1 + $0x14ec] sm:$0xff]
  %v741 = vld [vmem:[%s1 + $0x14f4] sm:$0xff]
  %v742 = vld [vmem:[%s1 + $0x14fc] sm:$0xff]
  %v743 = vld [vmem:[%s1 + $0x1504] sm:$0xff]
  %v744 = vld [vmem:[%s1 + $0x150c] sm:$0xff]
  %v745 = vld [vmem:[%s1 + $0x1514] sm:$0xff]
  %v746 = vld [vmem:[%s1 + $0x151c] sm:$0xf]
  %v747 = vld [vmem:[%s1 + $0x1520] sm:$0xff]
  %v748 = vld [vmem:[%s1 + $0x1528] sm:$0xff]
  %v749 = vld [vmem:[%s1 + $0x1530] sm:$0xff]
  %v750 = vld [vmem:[%s1 + $0x1538] sm:$0xff]
  %v751 = vld [vmem:[%s1 + $0x1540] sm:$0xff]
  %v752 = vld [vmem:[%s1 + $0x1548] sm:$0xff]
  %v753 = vld [vmem:[%s1 + $0x1550] sm:$0xf]
  %v754 = vld [vmem:[%s1 + $0x1554] sm:$0xff]
  %v755 = vld [vmem:[%s1 + $0x155c] sm:$0xff]
  %v756 = vld [vmem:[%s1 + $0x1564] sm:$0xff]
  %v757 = vld [vmem:[%s1 + $0x156c] sm:$0xff]
  %v758 = vld [vmem:[%s1 + $0x1574] sm:$0xff]
  %v759 = vld [vmem:[%s1 + $0x157c] sm:$0xff]
  %v760 = vld [vmem:[%s1 + $0x1584] sm:$0xf]
  %v761 = vld [vmem:[%s1 + $0x1588] sm:$0xff]
  %v762 = vld [vmem:[%s1 + $0x1590] sm:$0xff]
  %v763 = vld [vmem:[%s1 + $0x1598] sm:$0xff]
  %v764 = vld [vmem:[%s1 + $0x15a0] sm:$0xff]
  %v765 = vld [vmem:[%s1 + $0x15a8] sm:$0xff]
  %v766 = vld [vmem:[%s1 + $0x15b0] sm:$0xff]
  %v767 = vld [vmem:[%s1 + $0x15b8] sm:$0xf]
  %v768 = vld [vmem:[%s1 + $0x15bc] sm:$0xff]
  %v769 = vld [vmem:[%s1 + $0x15c4] sm:$0xff]
  %v770 = vld [vmem:[%s1 + $0x15cc] sm:$0xff]
  %v771 = vld [vmem:[%s1 + $0x15d4] sm:$0xff]
  %v772 = vld [vmem:[%s1 + $0x15dc] sm:$0xff]
  %v773 = vld [vmem:[%s1 + $0x15e4] sm:$0xff]
  %v774 = vld [vmem:[%s1 + $0x15ec] sm:$0xf]
  %v775 = vld [vmem:[%s1 + $0x15f0] sm:$0xff]
  %v776 = vld [vmem:[%s1 + $0x15f8] sm:$0xff]
  %v777 = vld [vmem:[%s1 + $0x1600] sm:$0xff]
  %v778 = vld [vmem:[%s1 + $0x1608] sm:$0xff]
  %v779 = vld [vmem:[%s1 + $0x1610] sm:$0xff]
  %v780 = vld [vmem:[%s1 + $0x1618] sm:$0xff]
  %v781 = vld [vmem:[%s1 + $0x1620] sm:$0xf]
  %v782 = vld [vmem:[%s1 + $0x1624] sm:$0xff]
  %v783 = vld [vmem:[%s1 + $0x162c] sm:$0xff]
  %v784 = vld [vmem:[%s1 + $0x1634] sm:$0xff]
  %v785 = vld [vmem:[%s1 + $0x163c] sm:$0xff]
  %v786 = vld [vmem:[%s1 + $0x1644] sm:$0xff]
  %v787 = vld [vmem:[%s1 + $0x164c] sm:$0xff]
  %v788 = vld [vmem:[%s1 + $0x1654] sm:$0xf]
  %v789 = vld [vmem:[%s1 + $0x1658] sm:$0xff]
  %v790 = vld [vmem:[%s1 + $0x1660] sm:$0xff]
  %v791 = vld [vmem:[%s1 + $0x1668] sm:$0xff]
  %v792 = vld [vmem:[%s1 + $0x1670] sm:$0xff]
  %v793 = vld [vmem:[%s1 + $0x1678] sm:$0xff]
  %v794 = vld [vmem:[%s1 + $0x1680] sm:$0xff]
  %v795 = vld [vmem:[%s1 + $0x1688] sm:$0xf]
  %v796 = vld [vmem:[%s1 + $0x168c] sm:$0xff]
  %v797 = vld [vmem:[%s1 + $0x1694] sm:$0xff]
  %v798 = vld [vmem:[%s1 + $0x169c] sm:$0xff]
  %v799 = vld [vmem:[%s1 + $0x16a4] sm:$0xff]
  %v800 = vld [vmem:[%s1 + $0x16ac] sm:$0xff]
  %v801 = vld [vmem:[%s1 + $0x16b4] sm:$0xff]
  %v802 = vld [vmem:[%s1 + $0x16bc] sm:$0xf]
  %v803 = vld [vmem:[%s1 + $0x16c0] sm:$0xff]
  %v804 = vld [vmem:[%s1 + $0x16c8] sm:$0xff]
  %v805 = vld [vmem:[%s1 + $0x16d0] sm:$0xff]
  %v806 = vld [vmem:[%s1 + $0x16d8] sm:$0xff]
  %v807 = vld [vmem:[%s1 + $0x16e0] sm:$0xff]
  %v808 = vld [vmem:[%s1 + $0x16e8] sm:$0xff]
  %v809 = vld [vmem:[%s1 + $0x16f0] sm:$0xf]
  %v810 = vld [vmem:[%s1 + $0x16f4] sm:$0xff]
  %v811 = vld [vmem:[%s1 + $0x16fc] sm:$0xff]
  %v812 = vld [vmem:[%s1 + $0x1704] sm:$0xff]
  %v813 = vld [vmem:[%s1 + $0x170c] sm:$0xff]
  %v814 = vld [vmem:[%s1 + $0x1714] sm:$0xff]
  %v815 = vld [vmem:[%s1 + $0x171c] sm:$0xff]
  %v816 = vld [vmem:[%s1 + $0x1724] sm:$0xf]
  %v817 = vld [vmem:[%s1 + $0x1728] sm:$0xff]
  %v818 = vld [vmem:[%s1 + $0x1730] sm:$0xff]
  %v819 = vld [vmem:[%s1 + $0x1738] sm:$0xff]
  %v820 = vld [vmem:[%s1 + $0x1740] sm:$0xff]
  %v821 = vld [vmem:[%s1 + $0x1748] sm:$0xff]
  %v822 = vld [vmem:[%s1 + $0x1750] sm:$0xff]
  %v823 = vld [vmem:[%s1 + $0x1758] sm:$0xf]
  %v824 = vld [vmem:[%s1 + $0x175c] sm:$0xff]
  %v825 = vld [vmem:[%s1 + $0x1764] sm:$0xff]
  %v826 = vld [vmem:[%s1 + $0x176c] sm:$0xff]
  %v827 = vld [vmem:[%s1 + $0x1774] sm:$0xff]
  %v828 = vld [vmem:[%s1 + $0x177c] sm:$0xff]
  %v829 = vld [vmem:[%s1 + $0x1784] sm:$0xff]
  %v830 = vld [vmem:[%s1 + $0x178c] sm:$0xf]
  %v831 = vld [vmem:[%s1 + $0x1790] sm:$0xff]
  %v832 = vld [vmem:[%s1 + $0x1798] sm:$0xff]
  %v833 = vld [vmem:[%s1 + $0x17a0] sm:$0xff]
  %v834 = vld [vmem:[%s1 + $0x17a8] sm:$0xff]
  %v835 = vld [vmem:[%s1 + $0x17b0] sm:$0xff]
  %v836 = vld [vmem:[%s1 + $0x17b8] sm:$0xff]
  %v837 = vld [vmem:[%s1 + $0x17c0] sm:$0xf]
  %v838 = vld [vmem:[%s1 + $0x17c4] sm:$0xff]
  %v839 = vld [vmem:[%s1 + $0x17cc] sm:$0xff]
  %v840 = vld [vmem:[%s1 + $0x17d4] sm:$0xff]
  %v841 = vld [vmem:[%s1 + $0x17dc] sm:$0xff]
  %v842 = vld [vmem:[%s1 + $0x17e4] sm:$0xff]
  %v843 = vld [vmem:[%s1 + $0x17ec] sm:$0xff]
  %v844 = vld [vmem:[%s1 + $0x17f4] sm:$0xf]
  %v845 = vld [vmem:[%s1 + $0x17f8] sm:$0xff]
  %v846 = vld [vmem:[%s1 + $0x1800] sm:$0xff]
  %v847 = vld [vmem:[%s1 + $0x1808] sm:$0xff]
  %v848 = vld [vmem:[%s1 + $0x1810] sm:$0xff]
  %v849 = vld [vmem:[%s1 + $0x1818] sm:$0xff]
  %v850 = vld [vmem:[%s1 + $0x1820] sm:$0xff]
  %v851 = vld [vmem:[%s1 + $0x1828] sm:$0xf]
  %v852 = vld [vmem:[%s1 + $0x182c] sm:$0xff]
  %v853 = vld [vmem:[%s1 + $0x1834] sm:$0xff]
  %v854 = vld [vmem:[%s1 + $0x183c] sm:$0xff]
  %v855 = vld [vmem:[%s1 + $0x1844] sm:$0xff]
  %v856 = vld [vmem:[%s1 + $0x184c] sm:$0xff]
  %v857 = vld [vmem:[%s1 + $0x1854] sm:$0xff]
  %v858 = vld [vmem:[%s1 + $0x185c] sm:$0xf]
  %v859 = vld [vmem:[%s1 + $0x1860] sm:$0xff]
  %v860 = vld [vmem:[%s1 + $0x1868] sm:$0xff]
  %v861 = vld [vmem:[%s1 + $0x1870] sm:$0xff]
  %v862 = vld [vmem:[%s1 + $0x1878] sm:$0xff]
  %v863 = vld [vmem:[%s1 + $0x1880] sm:$0xff]
  %v864 = vld [vmem:[%s1 + $0x1888] sm:$0xff]
  %v865 = vld [vmem:[%s1 + $0x1890] sm:$0xf]
  %v866 = vld [vmem:[%s1 + $0x1894] sm:$0xff]
  %v867 = vld [vmem:[%s1 + $0x189c] sm:$0xff]
  %v868 = vld [vmem:[%s1 + $0x18a4] sm:$0xff]
  %v869 = vld [vmem:[%s1 + $0x18ac] sm:$0xff]
  %v870 = vld [vmem:[%s1 + $0x18b4] sm:$0xff]
  %v871 = vld [vmem:[%s1 + $0x18bc] sm:$0xff]
  %v872 = vld [vmem:[%s1 + $0x18c4] sm:$0xf]
  %v873 = vld [vmem:[%s1 + $0x18c8] sm:$0xff]
  %v874 = vld [vmem:[%s1 + $0x18d0] sm:$0xff]
  %v875 = vld [vmem:[%s1 + $0x18d8] sm:$0xff]
  %v876 = vld [vmem:[%s1 + $0x18e0] sm:$0xff]
  %v877 = vld [vmem:[%s1 + $0x18e8] sm:$0xff]
  %v878 = vld [vmem:[%s1 + $0x18f0] sm:$0xff]
  %v879 = vld [vmem:[%s1 + $0x18f8] sm:$0xf]
  %v880 = vld [vmem:[%s1 + $0x18fc] sm:$0xff]
  %v881 = vld [vmem:[%s1 + $0x1904] sm:$0xff]
  %v882 = vld [vmem:[%s1 + $0x190c] sm:$0xff]
  %v883 = vld [vmem:[%s1 + $0x1914] sm:$0xff]
  %v884 = vld [vmem:[%s1 + $0x191c] sm:$0xff]
  %v885 = vld [vmem:[%s1 + $0x1924] sm:$0xff]
  %v886 = vld [vmem:[%s1 + $0x192c] sm:$0xf]
  %v887 = vld [vmem:[%s1 + $0x1930] sm:$0xff]
  %v888 = vld [vmem:[%s1 + $0x1938] sm:$0xff]
  %v889 = vld [vmem:[%s1 + $0x1940] sm:$0xff]
  %v890 = vld [vmem:[%s1 + $0x1948] sm:$0xff]
  %v891 = vld [vmem:[%s1 + $0x1950] sm:$0xff]
  %v892 = vld [vmem:[%s1 + $0x1958] sm:$0xff]
  %v893 = vld [vmem:[%s1 + $0x1960] sm:$0xf]
  %v894 = vld [vmem:[%s1 + $0x1964] sm:$0xff]
  %v895 = vld [vmem:[%s1 + $0x196c] sm:$0xff]
  %v896 = vld [vmem:[%s1 + $0x1974] sm:$0xff]
  %v897 = vld [vmem:[%s1 + $0x197c] sm:$0xff]
  %v898 = vld [vmem:[%s1 + $0x1984] sm:$0xff]
  %v899 = vld [vmem:[%s1 + $0x198c] sm:$0xff]
  %v900 = vld [vmem:[%s1 + $0x1994] sm:$0xf]
  %v901 = vld [vmem:[%s1 + $0x1998] sm:$0xff]
  %v902 = vld [vmem:[%s1 + $0x19a0] sm:$0xff]
  %v903 = vld [vmem:[%s1 + $0x19a8] sm:$0xff]
  %v904 = vld [vmem:[%s1 + $0x19b0] sm:$0xff]
  %v905 = vld [vmem:[%s1 + $0x19b8] sm:$0xff]
  %v906 = vld [vmem:[%s1 + $0x19c0] sm:$0xff]
  %v907 = vld [vmem:[%s1 + $0x19c8] sm:$0xf]
  %v908 = vld [vmem:[%s1 + $0x19cc] sm:$0xff]
  %v909 = vld [vmem:[%s1 + $0x19d4] sm:$0xff]
  %v910 = vld [vmem:[%s1 + $0x19dc] sm:$0xff]
  %v911 = vld [vmem:[%s1 + $0x19e4] sm:$0xff]
  %v912 = vld [vmem:[%s1 + $0x19ec] sm:$0xff]
  %v913 = vld [vmem:[%s1 + $0x19f4] sm:$0xff]
  %v914 = vld [vmem:[%s1 + $0x19fc] sm:$0xf]
  %v915 = vld [vmem:[%s1 + $0x1a00] sm:$0xff]
  %v916 = vld [vmem:[%s1 + $0x1a08] sm:$0xff]
  %v917 = vld [vmem:[%s1 + $0x1a10] sm:$0xff]
  %v918 = vld [vmem:[%s1 + $0x1a18] sm:$0xff]
  %v919 = vld [vmem:[%s1 + $0x1a20] sm:$0xff]
  %v920 = vld [vmem:[%s1 + $0x1a28] sm:$0xff]
  %v921 = vld [vmem:[%s1 + $0x1a30] sm:$0xf]
  %v922 = vld [vmem:[%s1 + $0x1a34] sm:$0xff]
  %v923 = vld [vmem:[%s1 + $0x1a3c] sm:$0xff]
  %v924 = vld [vmem:[%s1 + $0x1a44] sm:$0xff]
  %v925 = vld [vmem:[%s1 + $0x1a4c] sm:$0xff]
  %v926 = vld [vmem:[%s1 + $0x1a54] sm:$0xff]
  %v927 = vld [vmem:[%s1 + $0x1a5c] sm:$0xff]
  %v928 = vld [vmem:[%s1 + $0x1a64] sm:$0xf]
  %v929 = vld [vmem:[%s1 + $0x1a68] sm:$0xff]
  %v930 = vld [vmem:[%s1 + $0x1a70] sm:$0xff]
  %v931 = vld [vmem:[%s1 + $0x1a78] sm:$0xff]
  %v932 = vld [vmem:[%s1 + $0x1a80] sm:$0xff]
  %v933 = vld [vmem:[%s1 + $0x1a88] sm:$0xff]
  %v934 = vld [vmem:[%s1 + $0x1a90] sm:$0xff]
  %v935 = vld [vmem:[%s1 + $0x1a98] sm:$0xf]
  %v936 = vld [vmem:[%s1 + $0x1a9c] sm:$0xff]
  %v937 = vld [vmem:[%s1 + $0x1aa4] sm:$0xff]
  %v938 = vld [vmem:[%s1 + $0x1aac] sm:$0xff]
  %v939 = vld [vmem:[%s1 + $0x1ab4] sm:$0xff]
  %v940 = vld [vmem:[%s1 + $0x1abc] sm:$0xff]
  %v941 = vld [vmem:[%s1 + $0x1ac4] sm:$0xff]
  %v942 = vld [vmem:[%s1 + $0x1acc] sm:$0xf]
  %v943 = vld [vmem:[%s1 + $0x1ad0] sm:$0xff]
  %v944 = vld [vmem:[%s1 + $0x1ad8] sm:$0xff]
  %v945 = vld [vmem:[%s1 + $0x1ae0] sm:$0xff]
  %v946 = vld [vmem:[%s1 + $0x1ae8] sm:$0xff]
  %v947 = vld [vmem:[%s1 + $0x1af0] sm:$0xff]
  %v948 = vld [vmem:[%s1 + $0x1af8] sm:$0xff]
  %v949 = vld [vmem:[%s1 + $0x1b00] sm:$0xf]
  %v950 = vld [vmem:[%s1 + $0x1b04] sm:$0xff]
  %v951 = vld [vmem:[%s1 + $0x1b0c] sm:$0xff]
  %v952 = vld [vmem:[%s1 + $0x1b14] sm:$0xff]
  %v953 = vld [vmem:[%s1 + $0x1b1c] sm:$0xff]
  %v954 = vld [vmem:[%s1 + $0x1b24] sm:$0xff]
  %v955 = vld [vmem:[%s1 + $0x1b2c] sm:$0xff]
  %v956 = vld [vmem:[%s1 + $0x1b34] sm:$0xf]
  %v957 = vld [vmem:[%s1 + $0x1b38] sm:$0xff]
  %v958 = vld [vmem:[%s1 + $0x1b40] sm:$0xff]
  %v959 = vld [vmem:[%s1 + $0x1b48] sm:$0xff]
  %v960 = vld [vmem:[%s1 + $0x1b50] sm:$0xff]
  %v961 = vld [vmem:[%s1 + $0x1b58] sm:$0xff]
  %v962 = vld [vmem:[%s1 + $0x1b60] sm:$0xff]
  %v963 = vld [vmem:[%s1 + $0x1b68] sm:$0xf]
  %v964 = vld [vmem:[%s1 + $0x1b6c] sm:$0xff]
  %v965 = vld [vmem:[%s1 + $0x1b74] sm:$0xff]
  %v966 = vld [vmem:[%s1 + $0x1b7c] sm:$0xff]
  %v967 = vld [vmem:[%s1 + $0x1b84] sm:$0xff]
  %v968 = vld [vmem:[%s1 + $0x1b8c] sm:$0xff]
  %v969 = vld [vmem:[%s1 + $0x1b94] sm:$0xff]
  %v970 = vld [vmem:[%s1 + $0x1b9c] sm:$0xf]
  %v971 = vld [vmem:[%s1 + $0x1ba0] sm:$0xff]
  %v972 = vld [vmem:[%s1 + $0x1ba8] sm:$0xff]
  %v973 = vld [vmem:[%s1 + $0x1bb0] sm:$0xff]
  %v974 = vld [vmem:[%s1 + $0x1bb8] sm:$0xff]
  %v975 = vld [vmem:[%s1 + $0x1bc0] sm:$0xff]
  %v976 = vld [vmem:[%s1 + $0x1bc8] sm:$0xff]
  %v977 = vld [vmem:[%s1 + $0x1bd0] sm:$0xf]
  %v978 = vld [vmem:[%s1 + $0x1bd4] sm:$0xff]
  %v979 = vld [vmem:[%s1 + $0x1bdc] sm:$0xff]
  %v980 = vld [vmem:[%s1 + $0x1be4] sm:$0xff]
  %v981 = vld [vmem:[%s1 + $0x1bec] sm:$0xff]
  %v982 = vld [vmem:[%s1 + $0x1bf4] sm:$0xff]
  %v983 = vld [vmem:[%s1 + $0x1bfc] sm:$0xff]
  %v984 = vld [vmem:[%s1 + $0x1c04] sm:$0xf]
  %v985 = vld [vmem:[%s1 + $0x1c08] sm:$0xff]
  %v986 = vld [vmem:[%s1 + $0x1c10] sm:$0xff]
  %v987 = vld [vmem:[%s1 + $0x1c18] sm:$0xff]
  %v988 = vld [vmem:[%s1 + $0x1c20] sm:$0xff]
  %v989 = vld [vmem:[%s1 + $0x1c28] sm:$0xff]
  %v990 = vld [vmem:[%s1 + $0x1c30] sm:$0xff]
  %v991 = vld [vmem:[%s1 + $0x1c38] sm:$0xf]
  %v992 = vld [vmem:[%s1 + $0x1c3c] sm:$0xff]
  %v993 = vld [vmem:[%s1 + $0x1c44] sm:$0xff]
  %v994 = vld [vmem:[%s1 + $0x1c4c] sm:$0xff]
  %v995 = vld [vmem:[%s1 + $0x1c54] sm:$0xff]
  %v996 = vld [vmem:[%s1 + $0x1c5c] sm:$0xff]
  %v997 = vld [vmem:[%s1 + $0x1c64] sm:$0xff]
  %v998 = vld [vmem:[%s1 + $0x1c6c] sm:$0xf]
  %v999 = vld [vmem:[%s1 + $0x1c70] sm:$0xff]
  %v1000 = vld [vmem:[%s1 + $0x1c78] sm:$0xff]
  %v1001 = vld [vmem:[%s1 + $0x1c80] sm:$0xff]
  %v1002 = vld [vmem:[%s1 + $0x1c88] sm:$0xff]
  %v1003 = vld [vmem:[%s1 + $0x1c90] sm:$0xff]
  %v1004 = vld [vmem:[%s1 + $0x1c98] sm:$0xff]
  %v1005 = vld [vmem:[%s1 + $0x1ca0] sm:$0xf]
  %v1006 = vld [vmem:[%s1 + $0x1ca4] sm:$0xff]
  %v1007 = vld [vmem:[%s1 + $0x1cac] sm:$0xff]
  %v1008 = vld [vmem:[%s1 + $0x1cb4] sm:$0xff]
  %v1009 = vld [vmem:[%s1 + $0x1cbc] sm:$0xff]
  %v1010 = vld [vmem:[%s1 + $0x1cc4] sm:$0xff]
  %v1011 = vld [vmem:[%s1 + $0x1ccc] sm:$0xff]
  %v1012 = vld [vmem:[%s1 + $0x1cd4] sm:$0xf]
  %v1013 = vld [vmem:[%s1 + $0x1cd8] sm:$0xff]
  %v1014 = vld [vmem:[%s1 + $0x1ce0] sm:$0xff]
  %v1015 = vld [vmem:[%s1 + $0x1ce8] sm:$0xff]
  %v1016 = vld [vmem:[%s1 + $0x1cf0] sm:$0xff]
  %v1017 = vld [vmem:[%s1 + $0x1cf8] sm:$0xff]
  %v1018 = vld [vmem:[%s1 + $0x1d00] sm:$0xff]
  %v1019 = vld [vmem:[%s1 + $0x1d08] sm:$0xf]
  %v1020 = vld [vmem:[%s1 + $0x1d0c] sm:$0xff]
  %v1021 = vld [vmem:[%s1 + $0x1d14] sm:$0xff]
  %v1022 = vld [vmem:[%s1 + $0x1d1c] sm:$0xff]
  %v1023 = vld [vmem:[%s1 + $0x1d24] sm:$0xff]
  %v1024 = vld [vmem:[%s1 + $0x1d2c] sm:$0xff]
  %v1025 = vld [vmem:[%s1 + $0x1d34] sm:$0xff]
  %v1026 = vld [vmem:[%s1 + $0x1d3c] sm:$0xf]
  %v1027 = vld [vmem:[%s1 + $0x1d40] sm:$0xff]
  %v1028 = vld [vmem:[%s1 + $0x1d48] sm:$0xff]
  %v1029 = vld [vmem:[%s1 + $0x1d50] sm:$0xff]
  %v1030 = vld [vmem:[%s1 + $0x1d58] sm:$0xff]
  %v1031 = vld [vmem:[%s1 + $0x1d60] sm:$0xff]
  %v1032 = vld [vmem:[%s1 + $0x1d68] sm:$0xff]
  %v1033 = vld [vmem:[%s1 + $0x1d70] sm:$0xf]
  %v1034 = vld [vmem:[%s1 + $0x1d74] sm:$0xff]
  %v1035 = vld [vmem:[%s1 + $0x1d7c] sm:$0xff]
  %v1036 = vld [vmem:[%s1 + $0x1d84] sm:$0xff]
  %v1037 = vld [vmem:[%s1 + $0x1d8c] sm:$0xff]
  %v1038 = vld [vmem:[%s1 + $0x1d94] sm:$0xff]
  %v1039 = vld [vmem:[%s1 + $0x1d9c] sm:$0xff]
  %v1040 = vld [vmem:[%s1 + $0x1da4] sm:$0xf]
  %v1041 = vld [vmem:[%s1 + $0x1da8] sm:$0xff]
  %v1042 = vld [vmem:[%s1 + $0x1db0] sm:$0xff]
  %v1043 = vld [vmem:[%s1 + $0x1db8] sm:$0xff]
  %v1044 = vld [vmem:[%s1 + $0x1dc0] sm:$0xff]
  %v1045 = vld [vmem:[%s1 + $0x1dc8] sm:$0xff]
  %v1046 = vld [vmem:[%s1 + $0x1dd0] sm:$0xff]
  %v1047 = vld [vmem:[%s1 + $0x1dd8] sm:$0xf]
  %v1048 = vld [vmem:[%s1 + $0x1ddc] sm:$0xff]
  %v1049 = vld [vmem:[%s1 + $0x1de4] sm:$0xff]
  %v1050 = vld [vmem:[%s1 + $0x1dec] sm:$0xff]
  %v1051 = vld [vmem:[%s1 + $0x1df4] sm:$0xff]
  %v1052 = vld [vmem:[%s1 + $0x1dfc] sm:$0xff]
  %v1053 = vld [vmem:[%s1 + $0x1e04] sm:$0xff]
  %v1054 = vld [vmem:[%s1 + $0x1e0c] sm:$0xf]
  %v1055 = vld [vmem:[%s1 + $0x1e10] sm:$0xff]
  %v1056 = vld [vmem:[%s1 + $0x1e18] sm:$0xff]
  %v1057 = vld [vmem:[%s1 + $0x1e20] sm:$0xff]
  %v1058 = vld [vmem:[%s1 + $0x1e28] sm:$0xff]
  %v1059 = vld [vmem:[%s1 + $0x1e30] sm:$0xff]
  %v1060 = vld [vmem:[%s1 + $0x1e38] sm:$0xff]
  %v1061 = vld [vmem:[%s1 + $0x1e40] sm:$0xf]
  %v1062 = vld [vmem:[%s1 + $0x1e44] sm:$0xff]
  %v1063 = vld [vmem:[%s1 + $0x1e4c] sm:$0xff]
  %v1064 = vld [vmem:[%s1 + $0x1e54] sm:$0xff]
  %v1065 = vld [vmem:[%s1 + $0x1e5c] sm:$0xff]
  %v1066 = vld [vmem:[%s1 + $0x1e64] sm:$0xff]
  %v1067 = vld [vmem:[%s1 + $0x1e6c] sm:$0xff]
  %v1068 = vld [vmem:[%s1 + $0x1e74] sm:$0xf]
  %v1069 = vld [vmem:[%s1 + $0x1e78] sm:$0xff]
  %v1070 = vld [vmem:[%s1 + $0x1e80] sm:$0xff]
  %v1071 = vld [vmem:[%s1 + $0x1e88] sm:$0xff]
  %v1072 = vld [vmem:[%s1 + $0x1e90] sm:$0xff]
  %v1073 = vld [vmem:[%s1 + $0x1e98] sm:$0xff]
  %v1074 = vld [vmem:[%s1 + $0x1ea0] sm:$0xff]
  %v1075 = vld [vmem:[%s1 + $0x1ea8] sm:$0xf]
  %v1076 = vld [vmem:[%s1 + $0x1eac] sm:$0xff]
  %v1077 = vld [vmem:[%s1 + $0x1eb4] sm:$0xff]
  %v1078 = vld [vmem:[%s1 + $0x1ebc] sm:$0xff]
  %v1079 = vld [vmem:[%s1 + $0x1ec4] sm:$0xff]
  %v1080 = vld [vmem:[%s1 + $0x1ecc] sm:$0xff]
  %v1081 = vld [vmem:[%s1 + $0x1ed4] sm:$0xff]
  %v1082 = vld [vmem:[%s1 + $0x1edc] sm:$0xf]
  %v1083 = vld [vmem:[%s1 + $0x1ee0] sm:$0xff]
  %v1084 = vld [vmem:[%s1 + $0x1ee8] sm:$0xff]
  %v1085 = vld [vmem:[%s1 + $0x1ef0] sm:$0xff]
  %v1086 = vld [vmem:[%s1 + $0x1ef8] sm:$0xff]
  %v1087 = vld [vmem:[%s1 + $0x1f00] sm:$0xff]
  %v1088 = vld [vmem:[%s1 + $0x1f08] sm:$0xff]
  %v1089 = vld [vmem:[%s1 + $0x1f10] sm:$0xf]
  %v1090 = vld [vmem:[%s1 + $0x1f14] sm:$0xff]
  %v1091 = vld [vmem:[%s1 + $0x1f1c] sm:$0xff]
  %v1092 = vld [vmem:[%s1 + $0x1f24] sm:$0xff]
  %v1093 = vld [vmem:[%s1 + $0x1f2c] sm:$0xff]
  %v1094 = vld [vmem:[%s1 + $0x1f34] sm:$0xff]
  %v1095 = vld [vmem:[%s1 + $0x1f3c] sm:$0xff]
  %v1096 = vld [vmem:[%s1 + $0x1f44] sm:$0xf]
  %v1097 = vld [vmem:[%s1 + $0x1f48] sm:$0xff]
  %v1098 = vld [vmem:[%s1 + $0x1f50] sm:$0xff]
  %v1099 = vld [vmem:[%s1 + $0x1f58] sm:$0xff]
  %v1100 = vld [vmem:[%s1 + $0x1f60] sm:$0xff]
  %v1101 = vld [vmem:[%s1 + $0x1f68] sm:$0xff]
  %v1102 = vld [vmem:[%s1 + $0x1f70] sm:$0xff]
  %v1103 = vld [vmem:[%s1 + $0x1f78] sm:$0xf]
  %v1104 = vld [vmem:[%s1 + $0x1f7c] sm:$0xff]
  %v1105 = vld [vmem:[%s1 + $0x1f84] sm:$0xff]
  %v1106 = vld [vmem:[%s1 + $0x1f8c] sm:$0xff]
  %v1107 = vld [vmem:[%s1 + $0x1f94] sm:$0xff]
  %v1108 = vld [vmem:[%s1 + $0x1f9c] sm:$0xff]
  %v1109 = vld [vmem:[%s1 + $0x1fa4] sm:$0xff]
  %v1110 = vld [vmem:[%s1 + $0x1fac] sm:$0xf]
  %v1111 = vld [vmem:[%s1 + $0x1fb0] sm:$0xff]
  %v1112 = vld [vmem:[%s1 + $0x1fb8] sm:$0xff]
  %v1113 = vld [vmem:[%s1 + $0x1fc0] sm:$0xff]
  %v1114 = vld [vmem:[%s1 + $0x1fc8] sm:$0xff]
  %v1115 = vld [vmem:[%s1 + $0x1fd0] sm:$0xff]
  %v1116 = vld [vmem:[%s1 + $0x1fd8] sm:$0xff]
  %v1117 = vld [vmem:[%s1 + $0x1fe0] sm:$0xf]
  %v1118 = vld [vmem:[%s1 + $0x1fe4] sm:$0xff]
  %v1119 = vld [vmem:[%s1 + $0x1fec] sm:$0xff]
  %v1120 = vld [vmem:[%s1 + $0x1ff4] sm:$0xff]
  %v1121 = vld [vmem:[%s1 + $0x1ffc] sm:$0xff]
  %v1122 = vld [vmem:[%s1 + $0x2004] sm:$0xff]
  %v1123 = vld [vmem:[%s1 + $0x200c] sm:$0xff]
  %v1124 = vld [vmem:[%s1 + $0x2014] sm:$0xf]
  %v1125 = vld [vmem:[%s1 + $0x2018] sm:$0xff]
  %v1126 = vld [vmem:[%s1 + $0x2020] sm:$0xff]
  %v1127 = vld [vmem:[%s1 + $0x2028] sm:$0xff]
  %v1128 = vld [vmem:[%s1 + $0x2030] sm:$0xff]
  %v1129 = vld [vmem:[%s1 + $0x2038] sm:$0xff]
  %v1130 = vld [vmem:[%s1 + $0x2040] sm:$0xff]
  %v1131 = vld [vmem:[%s1 + $0x2048] sm:$0xf]
  %v1132 = vld [vmem:[%s1 + $0x204c] sm:$0xff]
  %v1133 = vld [vmem:[%s1 + $0x2054] sm:$0xff]
  %v1134 = vld [vmem:[%s1 + $0x205c] sm:$0xff]
  %v1135 = vld [vmem:[%s1 + $0x2064] sm:$0xff]
  %v1136 = vld [vmem:[%s1 + $0x206c] sm:$0xff]
  %v1137 = vld [vmem:[%s1 + $0x2074] sm:$0xff]
  %v1138 = vld [vmem:[%s1 + $0x207c] sm:$0xf]
  %v1139 = vld [vmem:[%s2] sm:$0xff]
  %v1140 = vld [vmem:[%s2 + $0x8] sm:$0x1f]
  %v1143 = vperm.slane %v1139, 0
  %v1144 = vperm.slane %v1139, 1
  %v1145 = vperm.slane %v1139, 2
  %v1146 = vperm.slane %v1139, 3
  %v1147 = vperm.slane %v1139, 4
  %v1148 = vperm.slane %v1139, 5
  %v1149 = vperm.slane %v1139, 6
  %v1150 = vperm.slane %v1139, 7
  %v1151 = vperm.slane %v1140, 0
  %v1152 = vperm.slane %v1140, 1
  %v1153 = vperm.slane %v1140, 2
  %v1154 = vperm.slane %v1140, 3
  %v1155 = vperm.slane %v1140, 4
  %v1174 = vunpack.c.l.b16 %v14
  %v1175 = vunpack.c.h.b16 %v14
  %v1176 = vunpack.c.l.b16 %v15
  %v1177 = vunpack.c.h.b16 %v15
  %v1178 = vunpack.c.l.b16 %v16
  %v1179 = vunpack.c.h.b16 %v16
  %v1180 = vunpack.c.l.b16 %v17
  %v1181 = vunpack.c.h.b16 %v17
  %v1182 = vunpack.c.l.b16 %v18
  %v1183 = vunpack.c.h.b16 %v18
  %v1184 = vpack.c.b16 %v1174, %v1174
  %v1185 = vpack.c.b16 %v1175, %v1175
  %v1186 = vpack.c.b16 %v1176, %v1176
  %v1187 = vpack.c.b16 %v1177, %v1177
  %v1188 = vpack.c.b16 %v1178, %v1178
  %v1189 = vpack.c.b16 %v1179, %v1179
  %v1190 = vpack.c.b16 %v1180, %v1180
  %v1191 = vpack.c.b16 %v1181, %v1181
  %v1192 = vpack.c.b16 %v1182, %v1182
  %v1193 = vpack.c.b16 %v1183, %v1183
  %v2324 = vunpack.c.l.b16 %v19
  %v2325 = vunpack.c.h.b16 %v19
  %v2326 = vunpack.c.l.b16 %v20
  %v2327 = vunpack.c.h.b16 %v20
  %v2328 = vunpack.c.l.b16 %v21
  %v2329 = vunpack.c.h.b16 %v21
  %v2330 = vunpack.c.l.b16 %v22
  %v2331 = vunpack.c.h.b16 %v22
  %v2332 = vunpack.c.l.b16 %v23
  %v2333 = vunpack.c.h.b16 %v23
  %v2334 = vunpack.c.l.b16 %v24
  %v2335 = vunpack.c.h.b16 %v24
  %v2336 = vunpack.c.l.b16 %v25
  %v2337 = vunpack.c.l.b16 %v26
  %v2338 = vunpack.c.h.b16 %v26
  %v2339 = vunpack.c.l.b16 %v27
  %v2340 = vunpack.c.h.b16 %v27
  %v2341 = vunpack.c.l.b16 %v28
  %v2342 = vunpack.c.h.b16 %v28
  %v2343 = vunpack.c.l.b16 %v29
  %v2344 = vunpack.c.h.b16 %v29
  %v2345 = vunpack.c.l.b16 %v30
  %v2346 = vunpack.c.h.b16 %v30
  %v2347 = vunpack.c.l.b16 %v31
  %v2348 = vunpack.c.h.b16 %v31
  %v2349 = vunpack.c.l.b16 %v32
  %v2350 = vunpack.c.l.b16 %v33
  %v2351 = vunpack.c.h.b16 %v33
  %v2352 = vunpack.c.l.b16 %v34
  %v2353 = vunpack.c.h.b16 %v34
  %v2354 = vunpack.c.l.b16 %v35
  %v2355 = vunpack.c.h.b16 %v35
  %v2356 = vunpack.c.l.b16 %v36
  %v2357 = vunpack.c.h.b16 %v36
  %v2358 = vunpack.c.l.b16 %v37
  %v2359 = vunpack.c.h.b16 %v37
  %v2360 = vunpack.c.l.b16 %v38
  %v2361 = vunpack.c.h.b16 %v38
  %v2362 = vunpack.c.l.b16 %v39
  %v2363 = vunpack.c.l.b16 %v40
  %v2364 = vunpack.c.h.b16 %v40
  %v2365 = vunpack.c.l.b16 %v41
  %v2366 = vunpack.c.h.b16 %v41
  %v2367 = vunpack.c.l.b16 %v42
  %v2368 = vunpack.c.h.b16 %v42
  %v2369 = vunpack.c.l.b16 %v43
  %v2370 = vunpack.c.h.b16 %v43
  %v2371 = vunpack.c.l.b16 %v44
  %v2372 = vunpack.c.h.b16 %v44
  %v2373 = vunpack.c.l.b16 %v45
  %v2374 = vunpack.c.h.b16 %v45
  %v2375 = vunpack.c.l.b16 %v46
  %v2376 = vunpack.c.l.b16 %v47
  %v2377 = vunpack.c.h.b16 %v47
  %v2378 = vunpack.c.l.b16 %v48
  %v2379 = vunpack.c.h.b16 %v48
  %v2380 = vunpack.c.l.b16 %v49
  %v2381 = vunpack.c.h.b16 %v49
  %v2382 = vunpack.c.l.b16 %v50
  %v2383 = vunpack.c.h.b16 %v50
  %v2384 = vunpack.c.l.b16 %v51
  %v2385 = vunpack.c.h.b16 %v51
  %v2386 = vunpack.c.l.b16 %v52
  %v2387 = vunpack.c.h.b16 %v52
  %v2388 = vunpack.c.l.b16 %v53
  %v2389 = vunpack.c.l.b16 %v54
  %v2390 = vunpack.c.h.b16 %v54
  %v2391 = vunpack.c.l.b16 %v55
  %v2392 = vunpack.c.h.b16 %v55
  %v2393 = vunpack.c.l.b16 %v56
  %v2394 = vunpack.c.h.b16 %v56
  %v2395 = vunpack.c.l.b16 %v57
  %v2396 = vunpack.c.h.b16 %v57
  %v2397 = vunpack.c.l.b16 %v58
  %v2398 = vunpack.c.h.b16 %v58
  %v2399 = vunpack.c.l.b16 %v59
  %v2400 = vunpack.c.h.b16 %v59
  %v2401 = vunpack.c.l.b16 %v60
  %v2402 = vunpack.c.l.b16 %v61
  %v2403 = vunpack.c.h.b16 %v61
  %v2404 = vunpack.c.l.b16 %v62
  %v2405 = vunpack.c.h.b16 %v62
  %v2406 = vunpack.c.l.b16 %v63
  %v2407 = vunpack.c.h.b16 %v63
  %v2408 = vunpack.c.l.b16 %v64
  %v2409 = vunpack.c.h.b16 %v64
  %v2410 = vunpack.c.l.b16 %v65
  %v2411 = vunpack.c.h.b16 %v65
  %v2412 = vunpack.c.l.b16 %v66
  %v2413 = vunpack.c.h.b16 %v66
  %v2414 = vunpack.c.l.b16 %v67
  %v2415 = vunpack.c.l.b16 %v68
  %v2416 = vunpack.c.h.b16 %v68
  %v2417 = vunpack.c.l.b16 %v69
  %v2418 = vunpack.c.h.b16 %v69
  %v2419 = vunpack.c.l.b16 %v70
  %v2420 = vunpack.c.h.b16 %v70
  %v2421 = vunpack.c.l.b16 %v71
  %v2422 = vunpack.c.h.b16 %v71
  %v2423 = vunpack.c.l.b16 %v72
  %v2424 = vunpack.c.h.b16 %v72
  %v2425 = vunpack.c.l.b16 %v73
  %v2426 = vunpack.c.h.b16 %v73
  %v2427 = vunpack.c.l.b16 %v74
  %v2428 = vunpack.c.l.b16 %v75
  %v2429 = vunpack.c.h.b16 %v75
  %v2430 = vunpack.c.l.b16 %v76
  %v2431 = vunpack.c.h.b16 %v76
  %v2432 = vunpack.c.l.b16 %v77
  %v2433 = vunpack.c.h.b16 %v77
  %v2434 = vunpack.c.l.b16 %v78
  %v2435 = vunpack.c.h.b16 %v78
  %v2436 = vunpack.c.l.b16 %v79
  %v2437 = vunpack.c.h.b16 %v79
  %v2438 = vunpack.c.l.b16 %v80
  %v2439 = vunpack.c.h.b16 %v80
  %v2440 = vunpack.c.l.b16 %v81
  %v2441 = vunpack.c.l.b16 %v82
  %v2442 = vunpack.c.h.b16 %v82
  %v2443 = vunpack.c.l.b16 %v83
  %v2444 = vunpack.c.h.b16 %v83
  %v2445 = vunpack.c.l.b16 %v84
  %v2446 = vunpack.c.h.b16 %v84
  %v2447 = vunpack.c.l.b16 %v85
  %v2448 = vunpack.c.h.b16 %v85
  %v2449 = vunpack.c.l.b16 %v86
  %v2450 = vunpack.c.h.b16 %v86
  %v2451 = vunpack.c.l.b16 %v87
  %v2452 = vunpack.c.h.b16 %v87
  %v2453 = vunpack.c.l.b16 %v88
  %v2454 = vunpack.c.l.b16 %v89
  %v2455 = vunpack.c.h.b16 %v89
  %v2456 = vunpack.c.l.b16 %v90
  %v2457 = vunpack.c.h.b16 %v90
  %v2458 = vunpack.c.l.b16 %v91
  %v2459 = vunpack.c.h.b16 %v91
  %v2460 = vunpack.c.l.b16 %v92
  %v2461 = vunpack.c.h.b16 %v92
  %v2462 = vunpack.c.l.b16 %v93
  %v2463 = vunpack.c.h.b16 %v93
  %v2464 = vunpack.c.l.b16 %v94
  %v2465 = vunpack.c.h.b16 %v94
  %v2466 = vunpack.c.l.b16 %v95
  %v2467 = vunpack.c.l.b16 %v96
  %v2468 = vunpack.c.h.b16 %v96
  %v2469 = vunpack.c.l.b16 %v97
  %v2470 = vunpack.c.h.b16 %v97
  %v2471 = vunpack.c.l.b16 %v98
  %v2472 = vunpack.c.h.b16 %v98
  %v2473 = vunpack.c.l.b16 %v99
  %v2474 = vunpack.c.h.b16 %v99
  %v2475 = vunpack.c.l.b16 %v100
  %v2476 = vunpack.c.h.b16 %v100
  %v2477 = vunpack.c.l.b16 %v101
  %v2478 = vunpack.c.h.b16 %v101
  %v2479 = vunpack.c.l.b16 %v102
  %v2480 = vunpack.c.l.b16 %v103
  %v2481 = vunpack.c.h.b16 %v103
  %v2482 = vunpack.c.l.b16 %v104
  %v2483 = vunpack.c.h.b16 %v104
  %v2484 = vunpack.c.l.b16 %v105
  %v2485 = vunpack.c.h.b16 %v105
  %v2486 = vunpack.c.l.b16 %v106
  %v2487 = vunpack.c.h.b16 %v106
  %v2488 = vunpack.c.l.b16 %v107
  %v2489 = vunpack.c.h.b16 %v107
  %v2490 = vunpack.c.l.b16 %v108
  %v2491 = vunpack.c.h.b16 %v108
  %v2492 = vunpack.c.l.b16 %v109
  %v2493 = vunpack.c.l.b16 %v110
  %v2494 = vunpack.c.h.b16 %v110
  %v2495 = vunpack.c.l.b16 %v111
  %v2496 = vunpack.c.h.b16 %v111
  %v2497 = vunpack.c.l.b16 %v112
  %v2498 = vunpack.c.h.b16 %v112
  %v2499 = vunpack.c.l.b16 %v113
  %v2500 = vunpack.c.h.b16 %v113
  %v2501 = vunpack.c.l.b16 %v114
  %v2502 = vunpack.c.h.b16 %v114
  %v2503 = vunpack.c.l.b16 %v115
  %v2504 = vunpack.c.h.b16 %v115
  %v2505 = vunpack.c.l.b16 %v116
  %v2506 = vunpack.c.l.b16 %v117
  %v2507 = vunpack.c.h.b16 %v117
  %v2508 = vunpack.c.l.b16 %v118
  %v2509 = vunpack.c.h.b16 %v118
  %v2510 = vunpack.c.l.b16 %v119
  %v2511 = vunpack.c.h.b16 %v119
  %v2512 = vunpack.c.l.b16 %v120
  %v2513 = vunpack.c.h.b16 %v120
  %v2514 = vunpack.c.l.b16 %v121
  %v2515 = vunpack.c.h.b16 %v121
  %v2516 = vunpack.c.l.b16 %v122
  %v2517 = vunpack.c.h.b16 %v122
  %v2518 = vunpack.c.l.b16 %v123
  %v2519 = vunpack.c.l.b16 %v124
  %v2520 = vunpack.c.h.b16 %v124
  %v2521 = vunpack.c.l.b16 %v125
  %v2522 = vunpack.c.h.b16 %v125
  %v2523 = vunpack.c.l.b16 %v126
  %v2524 = vunpack.c.h.b16 %v126
  %v2525 = vunpack.c.l.b16 %v127
  %v2526 = vunpack.c.h.b16 %v127
  %v2527 = vunpack.c.l.b16 %v128
  %v2528 = vunpack.c.h.b16 %v128
  %v2529 = vunpack.c.l.b16 %v129
  %v2530 = vunpack.c.h.b16 %v129
  %v2531 = vunpack.c.l.b16 %v130
  %v2532 = vunpack.c.l.b16 %v131
  %v2533 = vunpack.c.h.b16 %v131
  %v2534 = vunpack.c.l.b16 %v132
  %v2535 = vunpack.c.h.b16 %v132
  %v2536 = vunpack.c.l.b16 %v133
  %v2537 = vunpack.c.h.b16 %v133
  %v2538 = vunpack.c.l.b16 %v134
  %v2539 = vunpack.c.h.b16 %v134
  %v2540 = vunpack.c.l.b16 %v135
  %v2541 = vunpack.c.h.b16 %v135
  %v2542 = vunpack.c.l.b16 %v136
  %v2543 = vunpack.c.h.b16 %v136
  %v2544 = vunpack.c.l.b16 %v137
  %v2545 = vunpack.c.l.b16 %v138
  %v2546 = vunpack.c.h.b16 %v138
  %v2547 = vunpack.c.l.b16 %v139
  %v2548 = vunpack.c.h.b16 %v139
  %v2549 = vunpack.c.l.b16 %v140
  %v2550 = vunpack.c.h.b16 %v140
  %v2551 = vunpack.c.l.b16 %v141
  %v2552 = vunpack.c.h.b16 %v141
  %v2553 = vunpack.c.l.b16 %v142
  %v2554 = vunpack.c.h.b16 %v142
  %v2555 = vunpack.c.l.b16 %v143
  %v2556 = vunpack.c.h.b16 %v143
  %v2557 = vunpack.c.l.b16 %v144
  %v2558 = vunpack.c.l.b16 %v145
  %v2559 = vunpack.c.h.b16 %v145
  %v2560 = vunpack.c.l.b16 %v146
  %v2561 = vunpack.c.h.b16 %v146
  %v2562 = vunpack.c.l.b16 %v147
  %v2563 = vunpack.c.h.b16 %v147
  %v2564 = vunpack.c.l.b16 %v148
  %v2565 = vunpack.c.h.b16 %v148
  %v2566 = vunpack.c.l.b16 %v149
  %v2567 = vunpack.c.h.b16 %v149
  %v2568 = vunpack.c.l.b16 %v150
  %v2569 = vunpack.c.h.b16 %v150
  %v2570 = vunpack.c.l.b16 %v151
  %v2571 = vunpack.c.l.b16 %v152
  %v2572 = vunpack.c.h.b16 %v152
  %v2573 = vunpack.c.l.b16 %v153
  %v2574 = vunpack.c.h.b16 %v153
  %v2575 = vunpack.c.l.b16 %v154
  %v2576 = vunpack.c.h.b16 %v154
  %v2577 = vunpack.c.l.b16 %v155
  %v2578 = vunpack.c.h.b16 %v155
  %v2579 = vunpack.c.l.b16 %v156
  %v2580 = vunpack.c.h.b16 %v156
  %v2581 = vunpack.c.l.b16 %v157
  %v2582 = vunpack.c.h.b16 %v157
  %v2583 = vunpack.c.l.b16 %v158
  %v2584 = vunpack.c.l.b16 %v159
  %v2585 = vunpack.c.h.b16 %v159
  %v2586 = vunpack.c.l.b16 %v160
  %v2587 = vunpack.c.h.b16 %v160
  %v2588 = vunpack.c.l.b16 %v161
  %v2589 = vunpack.c.h.b16 %v161
  %v2590 = vunpack.c.l.b16 %v162
  %v2591 = vunpack.c.h.b16 %v162
  %v2592 = vunpack.c.l.b16 %v163
  %v2593 = vunpack.c.h.b16 %v163
  %v2594 = vunpack.c.l.b16 %v164
  %v2595 = vunpack.c.h.b16 %v164
  %v2596 = vunpack.c.l.b16 %v165
  %v2597 = vunpack.c.l.b16 %v166
  %v2598 = vunpack.c.h.b16 %v166
  %v2599 = vunpack.c.l.b16 %v167
  %v2600 = vunpack.c.h.b16 %v167
  %v2601 = vunpack.c.l.b16 %v168
  %v2602 = vunpack.c.h.b16 %v168
  %v2603 = vunpack.c.l.b16 %v169
  %v2604 = vunpack.c.h.b16 %v169
  %v2605 = vunpack.c.l.b16 %v170
  %v2606 = vunpack.c.h.b16 %v170
  %v2607 = vunpack.c.l.b16 %v171
  %v2608 = vunpack.c.h.b16 %v171
  %v2609 = vunpack.c.l.b16 %v172
  %v2610 = vunpack.c.l.b16 %v173
  %v2611 = vunpack.c.h.b16 %v173
  %v2612 = vunpack.c.l.b16 %v174
  %v2613 = vunpack.c.h.b16 %v174
  %v2614 = vunpack.c.l.b16 %v175
  %v2615 = vunpack.c.h.b16 %v175
  %v2616 = vunpack.c.l.b16 %v176
  %v2617 = vunpack.c.h.b16 %v176
  %v2618 = vunpack.c.l.b16 %v177
  %v2619 = vunpack.c.h.b16 %v177
  %v2620 = vunpack.c.l.b16 %v178
  %v2621 = vunpack.c.h.b16 %v178
  %v2622 = vunpack.c.l.b16 %v179
  %v2623 = vunpack.c.l.b16 %v180
  %v2624 = vunpack.c.h.b16 %v180
  %v2625 = vunpack.c.l.b16 %v181
  %v2626 = vunpack.c.h.b16 %v181
  %v2627 = vunpack.c.l.b16 %v182
  %v2628 = vunpack.c.h.b16 %v182
  %v2629 = vunpack.c.l.b16 %v183
  %v2630 = vunpack.c.h.b16 %v183
  %v2631 = vunpack.c.l.b16 %v184
  %v2632 = vunpack.c.h.b16 %v184
  %v2633 = vunpack.c.l.b16 %v185
  %v2634 = vunpack.c.h.b16 %v185
  %v2635 = vunpack.c.l.b16 %v186
  %v2636 = vunpack.c.l.b16 %v187
  %v2637 = vunpack.c.h.b16 %v187
  %v2638 = vunpack.c.l.b16 %v188
  %v2639 = vunpack.c.h.b16 %v188
  %v2640 = vunpack.c.l.b16 %v189
  %v2641 = vunpack.c.h.b16 %v189
  %v2642 = vunpack.c.l.b16 %v190
  %v2643 = vunpack.c.h.b16 %v190
  %v2644 = vunpack.c.l.b16 %v191
  %v2645 = vunpack.c.h.b16 %v191
  %v2646 = vunpack.c.l.b16 %v192
  %v2647 = vunpack.c.h.b16 %v192
  %v2648 = vunpack.c.l.b16 %v193
  %v2649 = vunpack.c.l.b16 %v194
  %v2650 = vunpack.c.h.b16 %v194
  %v2651 = vunpack.c.l.b16 %v195
  %v2652 = vunpack.c.h.b16 %v195
  %v2653 = vunpack.c.l.b16 %v196
  %v2654 = vunpack.c.h.b16 %v196
  %v2655 = vunpack.c.l.b16 %v197
  %v2656 = vunpack.c.h.b16 %v197
  %v2657 = vunpack.c.l.b16 %v198
  %v2658 = vunpack.c.h.b16 %v198
  %v2659 = vunpack.c.l.b16 %v199
  %v2660 = vunpack.c.h.b16 %v199
  %v2661 = vunpack.c.l.b16 %v200
  %v2662 = vunpack.c.l.b16 %v201
  %v2663 = vunpack.c.h.b16 %v201
  %v2664 = vunpack.c.l.b16 %v202
  %v2665 = vunpack.c.h.b16 %v202
  %v2666 = vunpack.c.l.b16 %v203
  %v2667 = vunpack.c.h.b16 %v203
  %v2668 = vunpack.c.l.b16 %v204
  %v2669 = vunpack.c.h.b16 %v204
  %v2670 = vunpack.c.l.b16 %v205
  %v2671 = vunpack.c.h.b16 %v205
  %v2672 = vunpack.c.l.b16 %v206
  %v2673 = vunpack.c.h.b16 %v206
  %v2674 = vunpack.c.l.b16 %v207
  %v2675 = vunpack.c.l.b16 %v208
  %v2676 = vunpack.c.h.b16 %v208
  %v2677 = vunpack.c.l.b16 %v209
  %v2678 = vunpack.c.h.b16 %v209
  %v2679 = vunpack.c.l.b16 %v210
  %v2680 = vunpack.c.h.b16 %v210
  %v2681 = vunpack.c.l.b16 %v211
  %v2682 = vunpack.c.h.b16 %v211
  %v2683 = vunpack.c.l.b16 %v212
  %v2684 = vunpack.c.h.b16 %v212
  %v2685 = vunpack.c.l.b16 %v213
  %v2686 = vunpack.c.h.b16 %v213
  %v2687 = vunpack.c.l.b16 %v214
  %v2688 = vunpack.c.l.b16 %v215
  %v2689 = vunpack.c.h.b16 %v215
  %v2690 = vunpack.c.l.b16 %v216
  %v2691 = vunpack.c.h.b16 %v216
  %v2692 = vunpack.c.l.b16 %v217
  %v2693 = vunpack.c.h.b16 %v217
  %v2694 = vunpack.c.l.b16 %v218
  %v2695 = vunpack.c.h.b16 %v218
  %v2696 = vunpack.c.l.b16 %v219
  %v2697 = vunpack.c.h.b16 %v219
  %v2698 = vunpack.c.l.b16 %v220
  %v2699 = vunpack.c.h.b16 %v220
  %v2700 = vunpack.c.l.b16 %v221
  %v2701 = vunpack.c.l.b16 %v222
  %v2702 = vunpack.c.h.b16 %v222
  %v2703 = vunpack.c.l.b16 %v223
  %v2704 = vunpack.c.h.b16 %v223
  %v2705 = vunpack.c.l.b16 %v224
  %v2706 = vunpack.c.h.b16 %v224
  %v2707 = vunpack.c.l.b16 %v225
  %v2708 = vunpack.c.h.b16 %v225
  %v2709 = vunpack.c.l.b16 %v226
  %v2710 = vunpack.c.h.b16 %v226
  %v2711 = vunpack.c.l.b16 %v227
  %v2712 = vunpack.c.h.b16 %v227
  %v2713 = vunpack.c.l.b16 %v228
  %v2714 = vunpack.c.l.b16 %v229
  %v2715 = vunpack.c.h.b16 %v229
  %v2716 = vunpack.c.l.b16 %v230
  %v2717 = vunpack.c.h.b16 %v230
  %v2718 = vunpack.c.l.b16 %v231
  %v2719 = vunpack.c.h.b16 %v231
  %v2720 = vunpack.c.l.b16 %v232
  %v2721 = vunpack.c.h.b16 %v232
  %v2722 = vunpack.c.l.b16 %v233
  %v2723 = vunpack.c.h.b16 %v233
  %v2724 = vunpack.c.l.b16 %v234
  %v2725 = vunpack.c.h.b16 %v234
  %v2726 = vunpack.c.l.b16 %v235
  %v2727 = vunpack.c.l.b16 %v236
  %v2728 = vunpack.c.h.b16 %v236
  %v2729 = vunpack.c.l.b16 %v237
  %v2730 = vunpack.c.h.b16 %v237
  %v2731 = vunpack.c.l.b16 %v238
  %v2732 = vunpack.c.h.b16 %v238
  %v2733 = vunpack.c.l.b16 %v239
  %v2734 = vunpack.c.h.b16 %v239
  %v2735 = vunpack.c.l.b16 %v240
  %v2736 = vunpack.c.h.b16 %v240
  %v2737 = vunpack.c.l.b16 %v241
  %v2738 = vunpack.c.h.b16 %v241
  %v2739 = vunpack.c.l.b16 %v242
  %v2740 = vunpack.c.l.b16 %v243
  %v2741 = vunpack.c.h.b16 %v243
  %v2742 = vunpack.c.l.b16 %v244
  %v2743 = vunpack.c.h.b16 %v244
  %v2744 = vunpack.c.l.b16 %v245
  %v2745 = vunpack.c.h.b16 %v245
  %v2746 = vunpack.c.l.b16 %v246
  %v2747 = vunpack.c.h.b16 %v246
  %v2748 = vunpack.c.l.b16 %v247
  %v2749 = vunpack.c.h.b16 %v247
  %v2750 = vunpack.c.l.b16 %v248
  %v2751 = vunpack.c.h.b16 %v248
  %v2752 = vunpack.c.l.b16 %v249
  %v2753 = vunpack.c.l.b16 %v250
  %v2754 = vunpack.c.h.b16 %v250
  %v2755 = vunpack.c.l.b16 %v251
  %v2756 = vunpack.c.h.b16 %v251
  %v2757 = vunpack.c.l.b16 %v252
  %v2758 = vunpack.c.h.b16 %v252
  %v2759 = vunpack.c.l.b16 %v253
  %v2760 = vunpack.c.h.b16 %v253
  %v2761 = vunpack.c.l.b16 %v254
  %v2762 = vunpack.c.h.b16 %v254
  %v2763 = vunpack.c.l.b16 %v255
  %v2764 = vunpack.c.h.b16 %v255
  %v2765 = vunpack.c.l.b16 %v256
  %v2766 = vunpack.c.l.b16 %v257
  %v2767 = vunpack.c.h.b16 %v257
  %v2768 = vunpack.c.l.b16 %v258
  %v2769 = vunpack.c.h.b16 %v258
  %v2770 = vunpack.c.l.b16 %v259
  %v2771 = vunpack.c.h.b16 %v259
  %v2772 = vunpack.c.l.b16 %v260
  %v2773 = vunpack.c.h.b16 %v260
  %v2774 = vunpack.c.l.b16 %v261
  %v2775 = vunpack.c.h.b16 %v261
  %v2776 = vunpack.c.l.b16 %v262
  %v2777 = vunpack.c.h.b16 %v262
  %v2778 = vunpack.c.l.b16 %v263
  %v2779 = vunpack.c.l.b16 %v264
  %v2780 = vunpack.c.h.b16 %v264
  %v2781 = vunpack.c.l.b16 %v265
  %v2782 = vunpack.c.h.b16 %v265
  %v2783 = vunpack.c.l.b16 %v266
  %v2784 = vunpack.c.h.b16 %v266
  %v2785 = vunpack.c.l.b16 %v267
  %v2786 = vunpack.c.h.b16 %v267
  %v2787 = vunpack.c.l.b16 %v268
  %v2788 = vunpack.c.h.b16 %v268
  %v2789 = vunpack.c.l.b16 %v269
  %v2790 = vunpack.c.h.b16 %v269
  %v2791 = vunpack.c.l.b16 %v270
  %v2792 = vunpack.c.l.b16 %v271
  %v2793 = vunpack.c.h.b16 %v271
  %v2794 = vunpack.c.l.b16 %v272
  %v2795 = vunpack.c.h.b16 %v272
  %v2796 = vunpack.c.l.b16 %v273
  %v2797 = vunpack.c.h.b16 %v273
  %v2798 = vunpack.c.l.b16 %v274
  %v2799 = vunpack.c.h.b16 %v274
  %v2800 = vunpack.c.l.b16 %v275
  %v2801 = vunpack.c.h.b16 %v275
  %v2802 = vunpack.c.l.b16 %v276
  %v2803 = vunpack.c.h.b16 %v276
  %v2804 = vunpack.c.l.b16 %v277
  %v2805 = vunpack.c.l.b16 %v278
  %v2806 = vunpack.c.h.b16 %v278
  %v2807 = vunpack.c.l.b16 %v279
  %v2808 = vunpack.c.h.b16 %v279
  %v2809 = vunpack.c.l.b16 %v280
  %v2810 = vunpack.c.h.b16 %v280
  %v2811 = vunpack.c.l.b16 %v281
  %v2812 = vunpack.c.h.b16 %v281
  %v2813 = vunpack.c.l.b16 %v282
  %v2814 = vunpack.c.h.b16 %v282
  %v2815 = vunpack.c.l.b16 %v283
  %v2816 = vunpack.c.h.b16 %v283
  %v2817 = vunpack.c.l.b16 %v284
  %v2818 = vunpack.c.l.b16 %v285
  %v2819 = vunpack.c.h.b16 %v285
  %v2820 = vunpack.c.l.b16 %v286
  %v2821 = vunpack.c.h.b16 %v286
  %v2822 = vunpack.c.l.b16 %v287
  %v2823 = vunpack.c.h.b16 %v287
  %v2824 = vunpack.c.l.b16 %v288
  %v2825 = vunpack.c.h.b16 %v288
  %v2826 = vunpack.c.l.b16 %v289
  %v2827 = vunpack.c.h.b16 %v289
  %v2828 = vunpack.c.l.b16 %v290
  %v2829 = vunpack.c.h.b16 %v290
  %v2830 = vunpack.c.l.b16 %v291
  %v2831 = vunpack.c.l.b16 %v292
  %v2832 = vunpack.c.h.b16 %v292
  %v2833 = vunpack.c.l.b16 %v293
  %v2834 = vunpack.c.h.b16 %v293
  %v2835 = vunpack.c.l.b16 %v294
  %v2836 = vunpack.c.h.b16 %v294
  %v2837 = vunpack.c.l.b16 %v295
  %v2838 = vunpack.c.h.b16 %v295
  %v2839 = vunpack.c.l.b16 %v296
  %v2840 = vunpack.c.h.b16 %v296
  %v2841 = vunpack.c.l.b16 %v297
  %v2842 = vunpack.c.h.b16 %v297
  %v2843 = vunpack.c.l.b16 %v298
  %v2844 = vunpack.c.l.b16 %v299
  %v2845 = vunpack.c.h.b16 %v299
  %v2846 = vunpack.c.l.b16 %v300
  %v2847 = vunpack.c.h.b16 %v300
  %v2848 = vunpack.c.l.b16 %v301
  %v2849 = vunpack.c.h.b16 %v301
  %v2850 = vunpack.c.l.b16 %v302
  %v2851 = vunpack.c.h.b16 %v302
  %v2852 = vunpack.c.l.b16 %v303
  %v2853 = vunpack.c.h.b16 %v303
  %v2854 = vunpack.c.l.b16 %v304
  %v2855 = vunpack.c.h.b16 %v304
  %v2856 = vunpack.c.l.b16 %v305
  %v2857 = vunpack.c.l.b16 %v306
  %v2858 = vunpack.c.h.b16 %v306
  %v2859 = vunpack.c.l.b16 %v307
  %v2860 = vunpack.c.h.b16 %v307
  %v2861 = vunpack.c.l.b16 %v308
  %v2862 = vunpack.c.h.b16 %v308
  %v2863 = vunpack.c.l.b16 %v309
  %v2864 = vunpack.c.h.b16 %v309
  %v2865 = vunpack.c.l.b16 %v310
  %v2866 = vunpack.c.h.b16 %v310
  %v2867 = vunpack.c.l.b16 %v311
  %v2868 = vunpack.c.h.b16 %v311
  %v2869 = vunpack.c.l.b16 %v312
  %v2870 = vunpack.c.l.b16 %v313
  %v2871 = vunpack.c.h.b16 %v313
  %v2872 = vunpack.c.l.b16 %v314
  %v2873 = vunpack.c.h.b16 %v314
  %v2874 = vunpack.c.l.b16 %v315
  %v2875 = vunpack.c.h.b16 %v315
  %v2876 = vunpack.c.l.b16 %v316
  %v2877 = vunpack.c.h.b16 %v316
  %v2878 = vunpack.c.l.b16 %v317
  %v2879 = vunpack.c.h.b16 %v317
  %v2880 = vunpack.c.l.b16 %v318
  %v2881 = vunpack.c.h.b16 %v318
  %v2882 = vunpack.c.l.b16 %v319
  %v2883 = vunpack.c.l.b16 %v320
  %v2884 = vunpack.c.h.b16 %v320
  %v2885 = vunpack.c.l.b16 %v321
  %v2886 = vunpack.c.h.b16 %v321
  %v2887 = vunpack.c.l.b16 %v322
  %v2888 = vunpack.c.h.b16 %v322
  %v2889 = vunpack.c.l.b16 %v323
  %v2890 = vunpack.c.h.b16 %v323
  %v2891 = vunpack.c.l.b16 %v324
  %v2892 = vunpack.c.h.b16 %v324
  %v2893 = vunpack.c.l.b16 %v325
  %v2894 = vunpack.c.h.b16 %v325
  %v2895 = vunpack.c.l.b16 %v326
  %v2896 = vunpack.c.l.b16 %v327
  %v2897 = vunpack.c.h.b16 %v327
  %v2898 = vunpack.c.l.b16 %v328
  %v2899 = vunpack.c.h.b16 %v328
  %v2900 = vunpack.c.l.b16 %v329
  %v2901 = vunpack.c.h.b16 %v329
  %v2902 = vunpack.c.l.b16 %v330
  %v2903 = vunpack.c.h.b16 %v330
  %v2904 = vunpack.c.l.b16 %v331
  %v2905 = vunpack.c.h.b16 %v331
  %v2906 = vunpack.c.l.b16 %v332
  %v2907 = vunpack.c.h.b16 %v332
  %v2908 = vunpack.c.l.b16 %v333
  %v2909 = vunpack.c.l.b16 %v334
  %v2910 = vunpack.c.h.b16 %v334
  %v2911 = vunpack.c.l.b16 %v335
  %v2912 = vunpack.c.h.b16 %v335
  %v2913 = vunpack.c.l.b16 %v336
  %v2914 = vunpack.c.h.b16 %v336
  %v2915 = vunpack.c.l.b16 %v337
  %v2916 = vunpack.c.h.b16 %v337
  %v2917 = vunpack.c.l.b16 %v338
  %v2918 = vunpack.c.h.b16 %v338
  %v2919 = vunpack.c.l.b16 %v339
  %v2920 = vunpack.c.h.b16 %v339
  %v2921 = vunpack.c.l.b16 %v340
  %v2922 = vunpack.c.l.b16 %v341
  %v2923 = vunpack.c.h.b16 %v341
  %v2924 = vunpack.c.l.b16 %v342
  %v2925 = vunpack.c.h.b16 %v342
  %v2926 = vunpack.c.l.b16 %v343
  %v2927 = vunpack.c.h.b16 %v343
  %v2928 = vunpack.c.l.b16 %v344
  %v2929 = vunpack.c.h.b16 %v344
  %v2930 = vunpack.c.l.b16 %v345
  %v2931 = vunpack.c.h.b16 %v345
  %v2932 = vunpack.c.l.b16 %v346
  %v2933 = vunpack.c.h.b16 %v346
  %v2934 = vunpack.c.l.b16 %v347
  %v2935 = vunpack.c.l.b16 %v348
  %v2936 = vunpack.c.h.b16 %v348
  %v2937 = vunpack.c.l.b16 %v349
  %v2938 = vunpack.c.h.b16 %v349
  %v2939 = vunpack.c.l.b16 %v350
  %v2940 = vunpack.c.h.b16 %v350
  %v2941 = vunpack.c.l.b16 %v351
  %v2942 = vunpack.c.h.b16 %v351
  %v2943 = vunpack.c.l.b16 %v352
  %v2944 = vunpack.c.h.b16 %v352
  %v2945 = vunpack.c.l.b16 %v353
  %v2946 = vunpack.c.h.b16 %v353
  %v2947 = vunpack.c.l.b16 %v354
  %v2948 = vunpack.c.l.b16 %v355
  %v2949 = vunpack.c.h.b16 %v355
  %v2950 = vunpack.c.l.b16 %v356
  %v2951 = vunpack.c.h.b16 %v356
  %v2952 = vunpack.c.l.b16 %v357
  %v2953 = vunpack.c.h.b16 %v357
  %v2954 = vunpack.c.l.b16 %v358
  %v2955 = vunpack.c.h.b16 %v358
  %v2956 = vunpack.c.l.b16 %v359
  %v2957 = vunpack.c.h.b16 %v359
  %v2958 = vunpack.c.l.b16 %v360
  %v2959 = vunpack.c.h.b16 %v360
  %v2960 = vunpack.c.l.b16 %v361
  %v2961 = vunpack.c.l.b16 %v362
  %v2962 = vunpack.c.h.b16 %v362
  %v2963 = vunpack.c.l.b16 %v363
  %v2964 = vunpack.c.h.b16 %v363
  %v2965 = vunpack.c.l.b16 %v364
  %v2966 = vunpack.c.h.b16 %v364
  %v2967 = vunpack.c.l.b16 %v365
  %v2968 = vunpack.c.h.b16 %v365
  %v2969 = vunpack.c.l.b16 %v366
  %v2970 = vunpack.c.h.b16 %v366
  %v2971 = vunpack.c.l.b16 %v367
  %v2972 = vunpack.c.h.b16 %v367
  %v2973 = vunpack.c.l.b16 %v368
  %v2974 = vunpack.c.l.b16 %v369
  %v2975 = vunpack.c.h.b16 %v369
  %v2976 = vunpack.c.l.b16 %v370
  %v2977 = vunpack.c.h.b16 %v370
  %v2978 = vunpack.c.l.b16 %v371
  %v2979 = vunpack.c.h.b16 %v371
  %v2980 = vunpack.c.l.b16 %v372
  %v2981 = vunpack.c.h.b16 %v372
  %v2982 = vunpack.c.l.b16 %v373
  %v2983 = vunpack.c.h.b16 %v373
  %v2984 = vunpack.c.l.b16 %v374
  %v2985 = vunpack.c.h.b16 %v374
  %v2986 = vunpack.c.l.b16 %v375
  %v2987 = vunpack.c.l.b16 %v376
  %v2988 = vunpack.c.h.b16 %v376
  %v2989 = vunpack.c.l.b16 %v377
  %v2990 = vunpack.c.h.b16 %v377
  %v2991 = vunpack.c.l.b16 %v378
  %v2992 = vunpack.c.h.b16 %v378
  %v2993 = vunpack.c.l.b16 %v379
  %v2994 = vunpack.c.h.b16 %v379
  %v2995 = vunpack.c.l.b16 %v380
  %v2996 = vunpack.c.h.b16 %v380
  %v2997 = vunpack.c.l.b16 %v381
  %v2998 = vunpack.c.h.b16 %v381
  %v2999 = vunpack.c.l.b16 %v382
  %v3000 = vunpack.c.l.b16 %v383
  %v3001 = vunpack.c.h.b16 %v383
  %v3002 = vunpack.c.l.b16 %v384
  %v3003 = vunpack.c.h.b16 %v384
  %v3004 = vunpack.c.l.b16 %v385
  %v3005 = vunpack.c.h.b16 %v385
  %v3006 = vunpack.c.l.b16 %v386
  %v3007 = vunpack.c.h.b16 %v386
  %v3008 = vunpack.c.l.b16 %v387
  %v3009 = vunpack.c.h.b16 %v387
  %v3010 = vunpack.c.l.b16 %v388
  %v3011 = vunpack.c.h.b16 %v388
  %v3012 = vunpack.c.l.b16 %v389
  %v3013 = vunpack.c.l.b16 %v390
  %v3014 = vunpack.c.h.b16 %v390
  %v3015 = vunpack.c.l.b16 %v391
  %v3016 = vunpack.c.h.b16 %v391
  %v3017 = vunpack.c.l.b16 %v392
  %v3018 = vunpack.c.h.b16 %v392
  %v3019 = vunpack.c.l.b16 %v393
  %v3020 = vunpack.c.h.b16 %v393
  %v3021 = vunpack.c.l.b16 %v394
  %v3022 = vunpack.c.h.b16 %v394
  %v3023 = vunpack.c.l.b16 %v395
  %v3024 = vunpack.c.h.b16 %v395
  %v3025 = vunpack.c.l.b16 %v396
  %v3026 = vunpack.c.l.b16 %v397
  %v3027 = vunpack.c.h.b16 %v397
  %v3028 = vunpack.c.l.b16 %v398
  %v3029 = vunpack.c.h.b16 %v398
  %v3030 = vunpack.c.l.b16 %v399
  %v3031 = vunpack.c.h.b16 %v399
  %v3032 = vunpack.c.l.b16 %v400
  %v3033 = vunpack.c.h.b16 %v400
  %v3034 = vunpack.c.l.b16 %v401
  %v3035 = vunpack.c.h.b16 %v401
  %v3036 = vunpack.c.l.b16 %v402
  %v3037 = vunpack.c.h.b16 %v402
  %v3038 = vunpack.c.l.b16 %v403
  %v3039 = vunpack.c.l.b16 %v404
  %v3040 = vunpack.c.h.b16 %v404
  %v3041 = vunpack.c.l.b16 %v405
  %v3042 = vunpack.c.h.b16 %v405
  %v3043 = vunpack.c.l.b16 %v406
  %v3044 = vunpack.c.h.b16 %v406
  %v3045 = vunpack.c.l.b16 %v407
  %v3046 = vunpack.c.h.b16 %v407
  %v3047 = vunpack.c.l.b16 %v408
  %v3048 = vunpack.c.h.b16 %v408
  %v3049 = vunpack.c.l.b16 %v409
  %v3050 = vunpack.c.h.b16 %v409
  %v3051 = vunpack.c.l.b16 %v410
  %v3052 = vunpack.c.l.b16 %v411
  %v3053 = vunpack.c.h.b16 %v411
  %v3054 = vunpack.c.l.b16 %v412
  %v3055 = vunpack.c.h.b16 %v412
  %v3056 = vunpack.c.l.b16 %v413
  %v3057 = vunpack.c.h.b16 %v413
  %v3058 = vunpack.c.l.b16 %v414
  %v3059 = vunpack.c.h.b16 %v414
  %v3060 = vunpack.c.l.b16 %v415
  %v3061 = vunpack.c.h.b16 %v415
  %v3062 = vunpack.c.l.b16 %v416
  %v3063 = vunpack.c.h.b16 %v416
  %v3064 = vunpack.c.l.b16 %v417
  %v3065 = vunpack.c.l.b16 %v418
  %v3066 = vunpack.c.h.b16 %v418
  %v3067 = vunpack.c.l.b16 %v419
  %v3068 = vunpack.c.h.b16 %v419
  %v3069 = vunpack.c.l.b16 %v420
  %v3070 = vunpack.c.h.b16 %v420
  %v3071 = vunpack.c.l.b16 %v421
  %v3072 = vunpack.c.h.b16 %v421
  %v3073 = vunpack.c.l.b16 %v422
  %v3074 = vunpack.c.h.b16 %v422
  %v3075 = vunpack.c.l.b16 %v423
  %v3076 = vunpack.c.h.b16 %v423
  %v3077 = vunpack.c.l.b16 %v424
  %v3078 = vunpack.c.l.b16 %v425
  %v3079 = vunpack.c.h.b16 %v425
  %v3080 = vunpack.c.l.b16 %v426
  %v3081 = vunpack.c.h.b16 %v426
  %v3082 = vunpack.c.l.b16 %v427
  %v3083 = vunpack.c.h.b16 %v427
  %v3084 = vunpack.c.l.b16 %v428
  %v3085 = vunpack.c.h.b16 %v428
  %v3086 = vunpack.c.l.b16 %v429
  %v3087 = vunpack.c.h.b16 %v429
  %v3088 = vunpack.c.l.b16 %v430
  %v3089 = vunpack.c.h.b16 %v430
  %v3090 = vunpack.c.l.b16 %v431
  %v3091 = vunpack.c.l.b16 %v432
  %v3092 = vunpack.c.h.b16 %v432
  %v3093 = vunpack.c.l.b16 %v433
  %v3094 = vunpack.c.h.b16 %v433
  %v3095 = vunpack.c.l.b16 %v434
  %v3096 = vunpack.c.h.b16 %v434
  %v3097 = vunpack.c.l.b16 %v435
  %v3098 = vunpack.c.h.b16 %v435
  %v3099 = vunpack.c.l.b16 %v436
  %v3100 = vunpack.c.h.b16 %v436
  %v3101 = vunpack.c.l.b16 %v437
  %v3102 = vunpack.c.h.b16 %v437
  %v3103 = vunpack.c.l.b16 %v438
  %v3104 = vunpack.c.l.b16 %v439
  %v3105 = vunpack.c.h.b16 %v439
  %v3106 = vunpack.c.l.b16 %v440
  %v3107 = vunpack.c.h.b16 %v440
  %v3108 = vunpack.c.l.b16 %v441
  %v3109 = vunpack.c.h.b16 %v441
  %v3110 = vunpack.c.l.b16 %v442
  %v3111 = vunpack.c.h.b16 %v442
  %v3112 = vunpack.c.l.b16 %v443
  %v3113 = vunpack.c.h.b16 %v443
  %v3114 = vunpack.c.l.b16 %v444
  %v3115 = vunpack.c.h.b16 %v444
  %v3116 = vunpack.c.l.b16 %v445
  %v3117 = vunpack.c.l.b16 %v446
  %v3118 = vunpack.c.h.b16 %v446
  %v3119 = vunpack.c.l.b16 %v447
  %v3120 = vunpack.c.h.b16 %v447
  %v3121 = vunpack.c.l.b16 %v448
  %v3122 = vunpack.c.h.b16 %v448
  %v3123 = vunpack.c.l.b16 %v449
  %v3124 = vunpack.c.h.b16 %v449
  %v3125 = vunpack.c.l.b16 %v450
  %v3126 = vunpack.c.h.b16 %v450
  %v3127 = vunpack.c.l.b16 %v451
  %v3128 = vunpack.c.h.b16 %v451
  %v3129 = vunpack.c.l.b16 %v452
  %v3130 = vunpack.c.l.b16 %v453
  %v3131 = vunpack.c.h.b16 %v453
  %v3132 = vunpack.c.l.b16 %v454
  %v3133 = vunpack.c.h.b16 %v454
  %v3134 = vunpack.c.l.b16 %v455
  %v3135 = vunpack.c.h.b16 %v455
  %v3136 = vunpack.c.l.b16 %v456
  %v3137 = vunpack.c.h.b16 %v456
  %v3138 = vunpack.c.l.b16 %v457
  %v3139 = vunpack.c.h.b16 %v457
  %v3140 = vunpack.c.l.b16 %v458
  %v3141 = vunpack.c.h.b16 %v458
  %v3142 = vunpack.c.l.b16 %v459
  %v3143 = vunpack.c.l.b16 %v460
  %v3144 = vunpack.c.h.b16 %v460
  %v3145 = vunpack.c.l.b16 %v461
  %v3146 = vunpack.c.h.b16 %v461
  %v3147 = vunpack.c.l.b16 %v462
  %v3148 = vunpack.c.h.b16 %v462
  %v3149 = vunpack.c.l.b16 %v463
  %v3150 = vunpack.c.h.b16 %v463
  %v3151 = vunpack.c.l.b16 %v464
  %v3152 = vunpack.c.h.b16 %v464
  %v3153 = vunpack.c.l.b16 %v465
  %v3154 = vunpack.c.h.b16 %v465
  %v3155 = vunpack.c.l.b16 %v466
  %v3156 = vunpack.c.l.b16 %v467
  %v3157 = vunpack.c.h.b16 %v467
  %v3158 = vunpack.c.l.b16 %v468
  %v3159 = vunpack.c.h.b16 %v468
  %v3160 = vunpack.c.l.b16 %v469
  %v3161 = vunpack.c.h.b16 %v469
  %v3162 = vunpack.c.l.b16 %v470
  %v3163 = vunpack.c.h.b16 %v470
  %v3164 = vunpack.c.l.b16 %v471
  %v3165 = vunpack.c.h.b16 %v471
  %v3166 = vunpack.c.l.b16 %v472
  %v3167 = vunpack.c.h.b16 %v472
  %v3168 = vunpack.c.l.b16 %v473
  %v3169 = vunpack.c.l.b16 %v474
  %v3170 = vunpack.c.h.b16 %v474
  %v3171 = vunpack.c.l.b16 %v475
  %v3172 = vunpack.c.h.b16 %v475
  %v3173 = vunpack.c.l.b16 %v476
  %v3174 = vunpack.c.h.b16 %v476
  %v3175 = vunpack.c.l.b16 %v477
  %v3176 = vunpack.c.h.b16 %v477
  %v3177 = vunpack.c.l.b16 %v478
  %v3178 = vunpack.c.h.b16 %v478
  %v3179 = vunpack.c.l.b16 %v479
  %v3180 = vunpack.c.h.b16 %v479
  %v3181 = vunpack.c.l.b16 %v480
  %v3182 = vunpack.c.l.b16 %v481
  %v3183 = vunpack.c.h.b16 %v481
  %v3184 = vunpack.c.l.b16 %v482
  %v3185 = vunpack.c.h.b16 %v482
  %v3186 = vunpack.c.l.b16 %v483
  %v3187 = vunpack.c.h.b16 %v483
  %v3188 = vunpack.c.l.b16 %v484
  %v3189 = vunpack.c.h.b16 %v484
  %v3190 = vunpack.c.l.b16 %v485
  %v3191 = vunpack.c.h.b16 %v485
  %v3192 = vunpack.c.l.b16 %v486
  %v3193 = vunpack.c.h.b16 %v486
  %v3194 = vunpack.c.l.b16 %v487
  %v3195 = vunpack.c.l.b16 %v488
  %v3196 = vunpack.c.h.b16 %v488
  %v3197 = vunpack.c.l.b16 %v489
  %v3198 = vunpack.c.h.b16 %v489
  %v3199 = vunpack.c.l.b16 %v490
  %v3200 = vunpack.c.h.b16 %v490
  %v3201 = vunpack.c.l.b16 %v491
  %v3202 = vunpack.c.h.b16 %v491
  %v3203 = vunpack.c.l.b16 %v492
  %v3204 = vunpack.c.h.b16 %v492
  %v3205 = vunpack.c.l.b16 %v493
  %v3206 = vunpack.c.h.b16 %v493
  %v3207 = vunpack.c.l.b16 %v494
  %v3208 = vunpack.c.l.b16 %v495
  %v3209 = vunpack.c.h.b16 %v495
  %v3210 = vunpack.c.l.b16 %v496
  %v3211 = vunpack.c.h.b16 %v496
  %v3212 = vunpack.c.l.b16 %v497
  %v3213 = vunpack.c.h.b16 %v497
  %v3214 = vunpack.c.l.b16 %v498
  %v3215 = vunpack.c.h.b16 %v498
  %v3216 = vunpack.c.l.b16 %v499
  %v3217 = vunpack.c.h.b16 %v499
  %v3218 = vunpack.c.l.b16 %v500
  %v3219 = vunpack.c.h.b16 %v500
  %v3220 = vunpack.c.l.b16 %v501
  %v3221 = vunpack.c.l.b16 %v502
  %v3222 = vunpack.c.h.b16 %v502
  %v3223 = vunpack.c.l.b16 %v503
  %v3224 = vunpack.c.h.b16 %v503
  %v3225 = vunpack.c.l.b16 %v504
  %v3226 = vunpack.c.h.b16 %v504
  %v3227 = vunpack.c.l.b16 %v505
  %v3228 = vunpack.c.h.b16 %v505
  %v3229 = vunpack.c.l.b16 %v506
  %v3230 = vunpack.c.h.b16 %v506
  %v3231 = vunpack.c.l.b16 %v507
  %v3232 = vunpack.c.h.b16 %v507
  %v3233 = vunpack.c.l.b16 %v508
  %v3234 = vunpack.c.l.b16 %v509
  %v3235 = vunpack.c.h.b16 %v509
  %v3236 = vunpack.c.l.b16 %v510
  %v3237 = vunpack.c.h.b16 %v510
  %v3238 = vunpack.c.l.b16 %v511
  %v3239 = vunpack.c.h.b16 %v511
  %v3240 = vunpack.c.l.b16 %v512
  %v3241 = vunpack.c.h.b16 %v512
  %v3242 = vunpack.c.l.b16 %v513
  %v3243 = vunpack.c.h.b16 %v513
  %v3244 = vunpack.c.l.b16 %v514
  %v3245 = vunpack.c.h.b16 %v514
  %v3246 = vunpack.c.l.b16 %v515
  %v3247 = vunpack.c.l.b16 %v516
  %v3248 = vunpack.c.h.b16 %v516
  %v3249 = vunpack.c.l.b16 %v517
  %v3250 = vunpack.c.h.b16 %v517
  %v3251 = vunpack.c.l.b16 %v518
  %v3252 = vunpack.c.h.b16 %v518
  %v3253 = vunpack.c.l.b16 %v519
  %v3254 = vunpack.c.h.b16 %v519
  %v3255 = vunpack.c.l.b16 %v520
  %v3256 = vunpack.c.h.b16 %v520
  %v3257 = vunpack.c.l.b16 %v521
  %v3258 = vunpack.c.h.b16 %v521
  %v3259 = vunpack.c.l.b16 %v522
  %v3260 = vunpack.c.l.b16 %v523
  %v3261 = vunpack.c.h.b16 %v523
  %v3262 = vunpack.c.l.b16 %v524
  %v3263 = vunpack.c.h.b16 %v524
  %v3264 = vunpack.c.l.b16 %v525
  %v3265 = vunpack.c.h.b16 %v525
  %v3266 = vunpack.c.l.b16 %v526
  %v3267 = vunpack.c.h.b16 %v526
  %v3268 = vunpack.c.l.b16 %v527
  %v3269 = vunpack.c.h.b16 %v527
  %v3270 = vunpack.c.l.b16 %v528
  %v3271 = vunpack.c.h.b16 %v528
  %v3272 = vunpack.c.l.b16 %v529
  %v3273 = vunpack.c.l.b16 %v530
  %v3274 = vunpack.c.h.b16 %v530
  %v3275 = vunpack.c.l.b16 %v531
  %v3276 = vunpack.c.h.b16 %v531
  %v3277 = vunpack.c.l.b16 %v532
  %v3278 = vunpack.c.h.b16 %v532
  %v3279 = vunpack.c.l.b16 %v533
  %v3280 = vunpack.c.h.b16 %v533
  %v3281 = vunpack.c.l.b16 %v534
  %v3282 = vunpack.c.h.b16 %v534
  %v3283 = vunpack.c.l.b16 %v535
  %v3284 = vunpack.c.h.b16 %v535
  %v3285 = vunpack.c.l.b16 %v536
  %v3286 = vunpack.c.l.b16 %v537
  %v3287 = vunpack.c.h.b16 %v537
  %v3288 = vunpack.c.l.b16 %v538
  %v3289 = vunpack.c.h.b16 %v538
  %v3290 = vunpack.c.l.b16 %v539
  %v3291 = vunpack.c.h.b16 %v539
  %v3292 = vunpack.c.l.b16 %v540
  %v3293 = vunpack.c.h.b16 %v540
  %v3294 = vunpack.c.l.b16 %v541
  %v3295 = vunpack.c.h.b16 %v541
  %v3296 = vunpack.c.l.b16 %v542
  %v3297 = vunpack.c.h.b16 %v542
  %v3298 = vunpack.c.l.b16 %v543
  %v3299 = vunpack.c.l.b16 %v544
  %v3300 = vunpack.c.h.b16 %v544
  %v3301 = vunpack.c.l.b16 %v545
  %v3302 = vunpack.c.h.b16 %v545
  %v3303 = vunpack.c.l.b16 %v546
  %v3304 = vunpack.c.h.b16 %v546
  %v3305 = vunpack.c.l.b16 %v547
  %v3306 = vunpack.c.h.b16 %v547
  %v3307 = vunpack.c.l.b16 %v548
  %v3308 = vunpack.c.h.b16 %v548
  %v3309 = vunpack.c.l.b16 %v549
  %v3310 = vunpack.c.h.b16 %v549
  %v3311 = vunpack.c.l.b16 %v550
  %v3312 = vunpack.c.l.b16 %v551
  %v3313 = vunpack.c.h.b16 %v551
  %v3314 = vunpack.c.l.b16 %v552
  %v3315 = vunpack.c.h.b16 %v552
  %v3316 = vunpack.c.l.b16 %v553
  %v3317 = vunpack.c.h.b16 %v553
  %v3318 = vunpack.c.l.b16 %v554
  %v3319 = vunpack.c.h.b16 %v554
  %v3320 = vunpack.c.l.b16 %v555
  %v3321 = vunpack.c.h.b16 %v555
  %v3322 = vunpack.c.l.b16 %v556
  %v3323 = vunpack.c.h.b16 %v556
  %v3324 = vunpack.c.l.b16 %v557
  %v3325 = vunpack.c.l.b16 %v558
  %v3326 = vunpack.c.h.b16 %v558
  %v3327 = vunpack.c.l.b16 %v559
  %v3328 = vunpack.c.h.b16 %v559
  %v3329 = vunpack.c.l.b16 %v560
  %v3330 = vunpack.c.h.b16 %v560
  %v3331 = vunpack.c.l.b16 %v561
  %v3332 = vunpack.c.h.b16 %v561
  %v3333 = vunpack.c.l.b16 %v562
  %v3334 = vunpack.c.h.b16 %v562
  %v3335 = vunpack.c.l.b16 %v563
  %v3336 = vunpack.c.h.b16 %v563
  %v3337 = vunpack.c.l.b16 %v564
  %v3338 = vunpack.c.l.b16 %v565
  %v3339 = vunpack.c.h.b16 %v565
  %v3340 = vunpack.c.l.b16 %v566
  %v3341 = vunpack.c.h.b16 %v566
  %v3342 = vunpack.c.l.b16 %v567
  %v3343 = vunpack.c.h.b16 %v567
  %v3344 = vunpack.c.l.b16 %v568
  %v3345 = vunpack.c.h.b16 %v568
  %v3346 = vunpack.c.l.b16 %v569
  %v3347 = vunpack.c.h.b16 %v569
  %v3348 = vunpack.c.l.b16 %v570
  %v3349 = vunpack.c.h.b16 %v570
  %v3350 = vunpack.c.l.b16 %v571
  %v3351 = vunpack.c.l.b16 %v572
  %v3352 = vunpack.c.h.b16 %v572
  %v3353 = vunpack.c.l.b16 %v573
  %v3354 = vunpack.c.h.b16 %v573
  %v3355 = vunpack.c.l.b16 %v574
  %v3356 = vunpack.c.h.b16 %v574
  %v3357 = vunpack.c.l.b16 %v575
  %v3358 = vunpack.c.h.b16 %v575
  %v3359 = vunpack.c.l.b16 %v576
  %v3360 = vunpack.c.h.b16 %v576
  %v3361 = vunpack.c.l.b16 %v577
  %v3362 = vunpack.c.h.b16 %v577
  %v3363 = vunpack.c.l.b16 %v578
  %v3364 = vunpack.c.l.b16 %v579
  %v3365 = vunpack.c.h.b16 %v579
  %v3366 = vunpack.c.l.b16 %v580
  %v3367 = vunpack.c.h.b16 %v580
  %v3368 = vunpack.c.l.b16 %v581
  %v3369 = vunpack.c.h.b16 %v581
  %v3370 = vunpack.c.l.b16 %v582
  %v3371 = vunpack.c.h.b16 %v582
  %v3372 = vunpack.c.l.b16 %v583
  %v3373 = vunpack.c.h.b16 %v583
  %v3374 = vunpack.c.l.b16 %v584
  %v3375 = vunpack.c.h.b16 %v584
  %v3376 = vunpack.c.l.b16 %v585
  %v3377 = vunpack.c.l.b16 %v586
  %v3378 = vunpack.c.h.b16 %v586
  %v3379 = vunpack.c.l.b16 %v587
  %v3380 = vunpack.c.h.b16 %v587
  %v3381 = vunpack.c.l.b16 %v588
  %v3382 = vunpack.c.h.b16 %v588
  %v3383 = vunpack.c.l.b16 %v589
  %v3384 = vunpack.c.h.b16 %v589
  %v3385 = vunpack.c.l.b16 %v590
  %v3386 = vunpack.c.h.b16 %v590
  %v3387 = vunpack.c.l.b16 %v591
  %v3388 = vunpack.c.h.b16 %v591
  %v3389 = vunpack.c.l.b16 %v592
  %v3390 = vunpack.c.l.b16 %v593
  %v3391 = vunpack.c.h.b16 %v593
  %v3392 = vunpack.c.l.b16 %v594
  %v3393 = vunpack.c.h.b16 %v594
  %v3394 = vunpack.c.l.b16 %v595
  %v3395 = vunpack.c.h.b16 %v595
  %v3396 = vunpack.c.l.b16 %v596
  %v3397 = vunpack.c.h.b16 %v596
  %v3398 = vunpack.c.l.b16 %v597
  %v3399 = vunpack.c.h.b16 %v597
  %v3400 = vunpack.c.l.b16 %v598
  %v3401 = vunpack.c.h.b16 %v598
  %v3402 = vunpack.c.l.b16 %v599
  %v3403 = vunpack.c.l.b16 %v600
  %v3404 = vunpack.c.h.b16 %v600
  %v3405 = vunpack.c.l.b16 %v601
  %v3406 = vunpack.c.h.b16 %v601
  %v3407 = vunpack.c.l.b16 %v602
  %v3408 = vunpack.c.h.b16 %v602
  %v3409 = vunpack.c.l.b16 %v603
  %v3410 = vunpack.c.h.b16 %v603
  %v3411 = vunpack.c.l.b16 %v604
  %v3412 = vunpack.c.h.b16 %v604
  %v3413 = vunpack.c.l.b16 %v605
  %v3414 = vunpack.c.h.b16 %v605
  %v3415 = vunpack.c.l.b16 %v606
  %v3416 = vunpack.c.l.b16 %v607
  %v3417 = vunpack.c.h.b16 %v607
  %v3418 = vunpack.c.l.b16 %v608
  %v3419 = vunpack.c.h.b16 %v608
  %v3420 = vunpack.c.l.b16 %v609
  %v3421 = vunpack.c.h.b16 %v609
  %v3422 = vunpack.c.l.b16 %v610
  %v3423 = vunpack.c.h.b16 %v610
  %v3424 = vunpack.c.l.b16 %v611
  %v3425 = vunpack.c.h.b16 %v611
  %v3426 = vunpack.c.l.b16 %v612
  %v3427 = vunpack.c.h.b16 %v612
  %v3428 = vunpack.c.l.b16 %v613
  %v3429 = vunpack.c.l.b16 %v614
  %v3430 = vunpack.c.h.b16 %v614
  %v3431 = vunpack.c.l.b16 %v615
  %v3432 = vunpack.c.h.b16 %v615
  %v3433 = vunpack.c.l.b16 %v616
  %v3434 = vunpack.c.h.b16 %v616
  %v3435 = vunpack.c.l.b16 %v617
  %v3436 = vunpack.c.h.b16 %v617
  %v3437 = vunpack.c.l.b16 %v618
  %v3438 = vunpack.c.h.b16 %v618
  %v3439 = vunpack.c.l.b16 %v619
  %v3440 = vunpack.c.h.b16 %v619
  %v3441 = vunpack.c.l.b16 %v620
  %v3442 = vunpack.c.l.b16 %v621
  %v3443 = vunpack.c.h.b16 %v621
  %v3444 = vunpack.c.l.b16 %v622
  %v3445 = vunpack.c.h.b16 %v622
  %v3446 = vunpack.c.l.b16 %v623
  %v3447 = vunpack.c.h.b16 %v623
  %v3448 = vunpack.c.l.b16 %v624
  %v3449 = vunpack.c.h.b16 %v624
  %v3450 = vunpack.c.l.b16 %v625
  %v3451 = vunpack.c.h.b16 %v625
  %v3452 = vunpack.c.l.b16 %v626
  %v3453 = vunpack.c.h.b16 %v626
  %v3454 = vunpack.c.l.b16 %v627
  %v3455 = vunpack.c.l.b16 %v628
  %v3456 = vunpack.c.h.b16 %v628
  %v3457 = vunpack.c.l.b16 %v629
  %v3458 = vunpack.c.h.b16 %v629
  %v3459 = vunpack.c.l.b16 %v630
  %v3460 = vunpack.c.h.b16 %v630
  %v3461 = vunpack.c.l.b16 %v631
  %v3462 = vunpack.c.h.b16 %v631
  %v3463 = vunpack.c.l.b16 %v632
  %v3464 = vunpack.c.h.b16 %v632
  %v3465 = vunpack.c.l.b16 %v633
  %v3466 = vunpack.c.h.b16 %v633
  %v3467 = vunpack.c.l.b16 %v634
  %v3468 = vunpack.c.l.b16 %v635
  %v3469 = vunpack.c.h.b16 %v635
  %v3470 = vunpack.c.l.b16 %v636
  %v3471 = vunpack.c.h.b16 %v636
  %v3472 = vunpack.c.l.b16 %v637
  %v3473 = vunpack.c.h.b16 %v637
  %v3474 = vunpack.c.l.b16 %v638
  %v3475 = vunpack.c.h.b16 %v638
  %v3476 = vunpack.c.l.b16 %v639
  %v3477 = vunpack.c.h.b16 %v639
  %v3478 = vunpack.c.l.b16 %v640
  %v3479 = vunpack.c.h.b16 %v640
  %v3480 = vunpack.c.l.b16 %v641
  %v3481 = vunpack.c.l.b16 %v642
  %v3482 = vunpack.c.h.b16 %v642
  %v3483 = vunpack.c.l.b16 %v643
  %v3484 = vunpack.c.h.b16 %v643
  %v3485 = vunpack.c.l.b16 %v644
  %v3486 = vunpack.c.h.b16 %v644
  %v3487 = vunpack.c.l.b16 %v645
  %v3488 = vunpack.c.h.b16 %v645
  %v3489 = vunpack.c.l.b16 %v646
  %v3490 = vunpack.c.h.b16 %v646
  %v3491 = vunpack.c.l.b16 %v647
  %v3492 = vunpack.c.h.b16 %v647
  %v3493 = vunpack.c.l.b16 %v648
  %v3494 = vunpack.c.l.b16 %v649
  %v3495 = vunpack.c.h.b16 %v649
  %v3496 = vunpack.c.l.b16 %v650
  %v3497 = vunpack.c.h.b16 %v650
  %v3498 = vunpack.c.l.b16 %v651
  %v3499 = vunpack.c.h.b16 %v651
  %v3500 = vunpack.c.l.b16 %v652
  %v3501 = vunpack.c.h.b16 %v652
  %v3502 = vunpack.c.l.b16 %v653
  %v3503 = vunpack.c.h.b16 %v653
  %v3504 = vunpack.c.l.b16 %v654
  %v3505 = vunpack.c.h.b16 %v654
  %v3506 = vunpack.c.l.b16 %v655
  %v3507 = vunpack.c.l.b16 %v656
  %v3508 = vunpack.c.h.b16 %v656
  %v3509 = vunpack.c.l.b16 %v657
  %v3510 = vunpack.c.h.b16 %v657
  %v3511 = vunpack.c.l.b16 %v658
  %v3512 = vunpack.c.h.b16 %v658
  %v3513 = vunpack.c.l.b16 %v659
  %v3514 = vunpack.c.h.b16 %v659
  %v3515 = vunpack.c.l.b16 %v660
  %v3516 = vunpack.c.h.b16 %v660
  %v3517 = vunpack.c.l.b16 %v661
  %v3518 = vunpack.c.h.b16 %v661
  %v3519 = vunpack.c.l.b16 %v662
  %v3520 = vunpack.c.l.b16 %v663
  %v3521 = vunpack.c.h.b16 %v663
  %v3522 = vunpack.c.l.b16 %v664
  %v3523 = vunpack.c.h.b16 %v664
  %v3524 = vunpack.c.l.b16 %v665
  %v3525 = vunpack.c.h.b16 %v665
  %v3526 = vunpack.c.l.b16 %v666
  %v3527 = vunpack.c.h.b16 %v666
  %v3528 = vunpack.c.l.b16 %v667
  %v3529 = vunpack.c.h.b16 %v667
  %v3530 = vunpack.c.l.b16 %v668
  %v3531 = vunpack.c.h.b16 %v668
  %v3532 = vunpack.c.l.b16 %v669
  %v3533 = vunpack.c.l.b16 %v670
  %v3534 = vunpack.c.h.b16 %v670
  %v3535 = vunpack.c.l.b16 %v671
  %v3536 = vunpack.c.h.b16 %v671
  %v3537 = vunpack.c.l.b16 %v672
  %v3538 = vunpack.c.h.b16 %v672
  %v3539 = vunpack.c.l.b16 %v673
  %v3540 = vunpack.c.h.b16 %v673
  %v3541 = vunpack.c.l.b16 %v674
  %v3542 = vunpack.c.h.b16 %v674
  %v3543 = vunpack.c.l.b16 %v675
  %v3544 = vunpack.c.h.b16 %v675
  %v3545 = vunpack.c.l.b16 %v676
  %v3546 = vunpack.c.l.b16 %v677
  %v3547 = vunpack.c.h.b16 %v677
  %v3548 = vunpack.c.l.b16 %v678
  %v3549 = vunpack.c.h.b16 %v678
  %v3550 = vunpack.c.l.b16 %v679
  %v3551 = vunpack.c.h.b16 %v679
  %v3552 = vunpack.c.l.b16 %v680
  %v3553 = vunpack.c.h.b16 %v680
  %v3554 = vunpack.c.l.b16 %v681
  %v3555 = vunpack.c.h.b16 %v681
  %v3556 = vunpack.c.l.b16 %v682
  %v3557 = vunpack.c.h.b16 %v682
  %v3558 = vunpack.c.l.b16 %v683
  %v3559 = vunpack.c.l.b16 %v684
  %v3560 = vunpack.c.h.b16 %v684
  %v3561 = vunpack.c.l.b16 %v685
  %v3562 = vunpack.c.h.b16 %v685
  %v3563 = vunpack.c.l.b16 %v686
  %v3564 = vunpack.c.h.b16 %v686
  %v3565 = vunpack.c.l.b16 %v687
  %v3566 = vunpack.c.h.b16 %v687
  %v3567 = vunpack.c.l.b16 %v688
  %v3568 = vunpack.c.h.b16 %v688
  %v3569 = vunpack.c.l.b16 %v689
  %v3570 = vunpack.c.h.b16 %v689
  %v3571 = vunpack.c.l.b16 %v690
  %v3572 = vunpack.c.l.b16 %v691
  %v3573 = vunpack.c.h.b16 %v691
  %v3574 = vunpack.c.l.b16 %v692
  %v3575 = vunpack.c.h.b16 %v692
  %v3576 = vunpack.c.l.b16 %v693
  %v3577 = vunpack.c.h.b16 %v693
  %v3578 = vunpack.c.l.b16 %v694
  %v3579 = vunpack.c.h.b16 %v694
  %v3580 = vunpack.c.l.b16 %v695
  %v3581 = vunpack.c.h.b16 %v695
  %v3582 = vunpack.c.l.b16 %v696
  %v3583 = vunpack.c.h.b16 %v696
  %v3584 = vunpack.c.l.b16 %v697
  %v3585 = vunpack.c.l.b16 %v698
  %v3586 = vunpack.c.h.b16 %v698
  %v3587 = vunpack.c.l.b16 %v699
  %v3588 = vunpack.c.h.b16 %v699
  %v3589 = vunpack.c.l.b16 %v700
  %v3590 = vunpack.c.h.b16 %v700
  %v3591 = vunpack.c.l.b16 %v701
  %v3592 = vunpack.c.h.b16 %v701
  %v3593 = vunpack.c.l.b16 %v702
  %v3594 = vunpack.c.h.b16 %v702
  %v3595 = vunpack.c.l.b16 %v703
  %v3596 = vunpack.c.h.b16 %v703
  %v3597 = vunpack.c.l.b16 %v704
  %v3598 = vunpack.c.l.b16 %v705
  %v3599 = vunpack.c.h.b16 %v705
  %v3600 = vunpack.c.l.b16 %v706
  %v3601 = vunpack.c.h.b16 %v706
  %v3602 = vunpack.c.l.b16 %v707
  %v3603 = vunpack.c.h.b16 %v707
  %v3604 = vunpack.c.l.b16 %v708
  %v3605 = vunpack.c.h.b16 %v708
  %v3606 = vunpack.c.l.b16 %v709
  %v3607 = vunpack.c.h.b16 %v709
  %v3608 = vunpack.c.l.b16 %v710
  %v3609 = vunpack.c.h.b16 %v710
  %v3610 = vunpack.c.l.b16 %v711
  %v3611 = vunpack.c.l.b16 %v712
  %v3612 = vunpack.c.h.b16 %v712
  %v3613 = vunpack.c.l.b16 %v713
  %v3614 = vunpack.c.h.b16 %v713
  %v3615 = vunpack.c.l.b16 %v714
  %v3616 = vunpack.c.h.b16 %v714
  %v3617 = vunpack.c.l.b16 %v715
  %v3618 = vunpack.c.h.b16 %v715
  %v3619 = vunpack.c.l.b16 %v716
  %v3620 = vunpack.c.h.b16 %v716
  %v3621 = vunpack.c.l.b16 %v717
  %v3622 = vunpack.c.h.b16 %v717
  %v3623 = vunpack.c.l.b16 %v718
  %v3624 = vunpack.c.l.b16 %v719
  %v3625 = vunpack.c.h.b16 %v719
  %v3626 = vunpack.c.l.b16 %v720
  %v3627 = vunpack.c.h.b16 %v720
  %v3628 = vunpack.c.l.b16 %v721
  %v3629 = vunpack.c.h.b16 %v721
  %v3630 = vunpack.c.l.b16 %v722
  %v3631 = vunpack.c.h.b16 %v722
  %v3632 = vunpack.c.l.b16 %v723
  %v3633 = vunpack.c.h.b16 %v723
  %v3634 = vunpack.c.l.b16 %v724
  %v3635 = vunpack.c.h.b16 %v724
  %v3636 = vunpack.c.l.b16 %v725
  %v3637 = vunpack.c.l.b16 %v726
  %v3638 = vunpack.c.h.b16 %v726
  %v3639 = vunpack.c.l.b16 %v727
  %v3640 = vunpack.c.h.b16 %v727
  %v3641 = vunpack.c.l.b16 %v728
  %v3642 = vunpack.c.h.b16 %v728
  %v3643 = vunpack.c.l.b16 %v729
  %v3644 = vunpack.c.h.b16 %v729
  %v3645 = vunpack.c.l.b16 %v730
  %v3646 = vunpack.c.h.b16 %v730
  %v3647 = vunpack.c.l.b16 %v731
  %v3648 = vunpack.c.h.b16 %v731
  %v3649 = vunpack.c.l.b16 %v732
  %v3650 = vunpack.c.l.b16 %v733
  %v3651 = vunpack.c.h.b16 %v733
  %v3652 = vunpack.c.l.b16 %v734
  %v3653 = vunpack.c.h.b16 %v734
  %v3654 = vunpack.c.l.b16 %v735
  %v3655 = vunpack.c.h.b16 %v735
  %v3656 = vunpack.c.l.b16 %v736
  %v3657 = vunpack.c.h.b16 %v736
  %v3658 = vunpack.c.l.b16 %v737
  %v3659 = vunpack.c.h.b16 %v737
  %v3660 = vunpack.c.l.b16 %v738
  %v3661 = vunpack.c.h.b16 %v738
  %v3662 = vunpack.c.l.b16 %v739
  %v3663 = vunpack.c.l.b16 %v740
  %v3664 = vunpack.c.h.b16 %v740
  %v3665 = vunpack.c.l.b16 %v741
  %v3666 = vunpack.c.h.b16 %v741
  %v3667 = vunpack.c.l.b16 %v742
  %v3668 = vunpack.c.h.b16 %v742
  %v3669 = vunpack.c.l.b16 %v743
  %v3670 = vunpack.c.h.b16 %v743
  %v3671 = vunpack.c.l.b16 %v744
  %v3672 = vunpack.c.h.b16 %v744
  %v3673 = vunpack.c.l.b16 %v745
  %v3674 = vunpack.c.h.b16 %v745
  %v3675 = vunpack.c.l.b16 %v746
  %v3676 = vunpack.c.l.b16 %v747
  %v3677 = vunpack.c.h.b16 %v747
  %v3678 = vunpack.c.l.b16 %v748
  %v3679 = vunpack.c.h.b16 %v748
  %v3680 = vunpack.c.l.b16 %v749
  %v3681 = vunpack.c.h.b16 %v749
  %v3682 = vunpack.c.l.b16 %v750
  %v3683 = vunpack.c.h.b16 %v750
  %v3684 = vunpack.c.l.b16 %v751
  %v3685 = vunpack.c.h.b16 %v751
  %v3686 = vunpack.c.l.b16 %v752
  %v3687 = vunpack.c.h.b16 %v752
  %v3688 = vunpack.c.l.b16 %v753
  %v3689 = vunpack.c.l.b16 %v754
  %v3690 = vunpack.c.h.b16 %v754
  %v3691 = vunpack.c.l.b16 %v755
  %v3692 = vunpack.c.h.b16 %v755
  %v3693 = vunpack.c.l.b16 %v756
  %v3694 = vunpack.c.h.b16 %v756
  %v3695 = vunpack.c.l.b16 %v757
  %v3696 = vunpack.c.h.b16 %v757
  %v3697 = vunpack.c.l.b16 %v758
  %v3698 = vunpack.c.h.b16 %v758
  %v3699 = vunpack.c.l.b16 %v759
  %v3700 = vunpack.c.h.b16 %v759
  %v3701 = vunpack.c.l.b16 %v760
  %v3702 = vunpack.c.l.b16 %v761
  %v3703 = vunpack.c.h.b16 %v761
  %v3704 = vunpack.c.l.b16 %v762
  %v3705 = vunpack.c.h.b16 %v762
  %v3706 = vunpack.c.l.b16 %v763
  %v3707 = vunpack.c.h.b16 %v763
  %v3708 = vunpack.c.l.b16 %v764
  %v3709 = vunpack.c.h.b16 %v764
  %v3710 = vunpack.c.l.b16 %v765
  %v3711 = vunpack.c.h.b16 %v765
  %v3712 = vunpack.c.l.b16 %v766
  %v3713 = vunpack.c.h.b16 %v766
  %v3714 = vunpack.c.l.b16 %v767
  %v3715 = vunpack.c.l.b16 %v768
  %v3716 = vunpack.c.h.b16 %v768
  %v3717 = vunpack.c.l.b16 %v769
  %v3718 = vunpack.c.h.b16 %v769
  %v3719 = vunpack.c.l.b16 %v770
  %v3720 = vunpack.c.h.b16 %v770
  %v3721 = vunpack.c.l.b16 %v771
  %v3722 = vunpack.c.h.b16 %v771
  %v3723 = vunpack.c.l.b16 %v772
  %v3724 = vunpack.c.h.b16 %v772
  %v3725 = vunpack.c.l.b16 %v773
  %v3726 = vunpack.c.h.b16 %v773
  %v3727 = vunpack.c.l.b16 %v774
  %v3728 = vunpack.c.l.b16 %v775
  %v3729 = vunpack.c.h.b16 %v775
  %v3730 = vunpack.c.l.b16 %v776
  %v3731 = vunpack.c.h.b16 %v776
  %v3732 = vunpack.c.l.b16 %v777
  %v3733 = vunpack.c.h.b16 %v777
  %v3734 = vunpack.c.l.b16 %v778
  %v3735 = vunpack.c.h.b16 %v778
  %v3736 = vunpack.c.l.b16 %v779
  %v3737 = vunpack.c.h.b16 %v779
  %v3738 = vunpack.c.l.b16 %v780
  %v3739 = vunpack.c.h.b16 %v780
  %v3740 = vunpack.c.l.b16 %v781
  %v3741 = vunpack.c.l.b16 %v782
  %v3742 = vunpack.c.h.b16 %v782
  %v3743 = vunpack.c.l.b16 %v783
  %v3744 = vunpack.c.h.b16 %v783
  %v3745 = vunpack.c.l.b16 %v784
  %v3746 = vunpack.c.h.b16 %v784
  %v3747 = vunpack.c.l.b16 %v785
  %v3748 = vunpack.c.h.b16 %v785
  %v3749 = vunpack.c.l.b16 %v786
  %v3750 = vunpack.c.h.b16 %v786
  %v3751 = vunpack.c.l.b16 %v787
  %v3752 = vunpack.c.h.b16 %v787
  %v3753 = vunpack.c.l.b16 %v788
  %v3754 = vunpack.c.l.b16 %v789
  %v3755 = vunpack.c.h.b16 %v789
  %v3756 = vunpack.c.l.b16 %v790
  %v3757 = vunpack.c.h.b16 %v790
  %v3758 = vunpack.c.l.b16 %v791
  %v3759 = vunpack.c.h.b16 %v791
  %v3760 = vunpack.c.l.b16 %v792
  %v3761 = vunpack.c.h.b16 %v792
  %v3762 = vunpack.c.l.b16 %v793
  %v3763 = vunpack.c.h.b16 %v793
  %v3764 = vunpack.c.l.b16 %v794
  %v3765 = vunpack.c.h.b16 %v794
  %v3766 = vunpack.c.l.b16 %v795
  %v3767 = vunpack.c.l.b16 %v796
  %v3768 = vunpack.c.h.b16 %v796
  %v3769 = vunpack.c.l.b16 %v797
  %v3770 = vunpack.c.h.b16 %v797
  %v3771 = vunpack.c.l.b16 %v798
  %v3772 = vunpack.c.h.b16 %v798
  %v3773 = vunpack.c.l.b16 %v799
  %v3774 = vunpack.c.h.b16 %v799
  %v3775 = vunpack.c.l.b16 %v800
  %v3776 = vunpack.c.h.b16 %v800
  %v3777 = vunpack.c.l.b16 %v801
  %v3778 = vunpack.c.h.b16 %v801
  %v3779 = vunpack.c.l.b16 %v802
  %v3780 = vunpack.c.l.b16 %v803
  %v3781 = vunpack.c.h.b16 %v803
  %v3782 = vunpack.c.l.b16 %v804
  %v3783 = vunpack.c.h.b16 %v804
  %v3784 = vunpack.c.l.b16 %v805
  %v3785 = vunpack.c.h.b16 %v805
  %v3786 = vunpack.c.l.b16 %v806
  %v3787 = vunpack.c.h.b16 %v806
  %v3788 = vunpack.c.l.b16 %v807
  %v3789 = vunpack.c.h.b16 %v807
  %v3790 = vunpack.c.l.b16 %v808
  %v3791 = vunpack.c.h.b16 %v808
  %v3792 = vunpack.c.l.b16 %v809
  %v3793 = vunpack.c.l.b16 %v810
  %v3794 = vunpack.c.h.b16 %v810
  %v3795 = vunpack.c.l.b16 %v811
  %v3796 = vunpack.c.h.b16 %v811
  %v3797 = vunpack.c.l.b16 %v812
  %v3798 = vunpack.c.h.b16 %v812
  %v3799 = vunpack.c.l.b16 %v813
  %v3800 = vunpack.c.h.b16 %v813
  %v3801 = vunpack.c.l.b16 %v814
  %v3802 = vunpack.c.h.b16 %v814
  %v3803 = vunpack.c.l.b16 %v815
  %v3804 = vunpack.c.h.b16 %v815
  %v3805 = vunpack.c.l.b16 %v816
  %v3806 = vunpack.c.l.b16 %v817
  %v3807 = vunpack.c.h.b16 %v817
  %v3808 = vunpack.c.l.b16 %v818
  %v3809 = vunpack.c.h.b16 %v818
  %v3810 = vunpack.c.l.b16 %v819
  %v3811 = vunpack.c.h.b16 %v819
  %v3812 = vunpack.c.l.b16 %v820
  %v3813 = vunpack.c.h.b16 %v820
  %v3814 = vunpack.c.l.b16 %v821
  %v3815 = vunpack.c.h.b16 %v821
  %v3816 = vunpack.c.l.b16 %v822
  %v3817 = vunpack.c.h.b16 %v822
  %v3818 = vunpack.c.l.b16 %v823
  %v3819 = vunpack.c.l.b16 %v824
  %v3820 = vunpack.c.h.b16 %v824
  %v3821 = vunpack.c.l.b16 %v825
  %v3822 = vunpack.c.h.b16 %v825
  %v3823 = vunpack.c.l.b16 %v826
  %v3824 = vunpack.c.h.b16 %v826
  %v3825 = vunpack.c.l.b16 %v827
  %v3826 = vunpack.c.h.b16 %v827
  %v3827 = vunpack.c.l.b16 %v828
  %v3828 = vunpack.c.h.b16 %v828
  %v3829 = vunpack.c.l.b16 %v829
  %v3830 = vunpack.c.h.b16 %v829
  %v3831 = vunpack.c.l.b16 %v830
  %v3832 = vunpack.c.l.b16 %v831
  %v3833 = vunpack.c.h.b16 %v831
  %v3834 = vunpack.c.l.b16 %v832
  %v3835 = vunpack.c.h.b16 %v832
  %v3836 = vunpack.c.l.b16 %v833
  %v3837 = vunpack.c.h.b16 %v833
  %v3838 = vunpack.c.l.b16 %v834
  %v3839 = vunpack.c.h.b16 %v834
  %v3840 = vunpack.c.l.b16 %v835
  %v3841 = vunpack.c.h.b16 %v835
  %v3842 = vunpack.c.l.b16 %v836
  %v3843 = vunpack.c.h.b16 %v836
  %v3844 = vunpack.c.l.b16 %v837
  %v3845 = vunpack.c.l.b16 %v838
  %v3846 = vunpack.c.h.b16 %v838
  %v3847 = vunpack.c.l.b16 %v839
  %v3848 = vunpack.c.h.b16 %v839
  %v3849 = vunpack.c.l.b16 %v840
  %v3850 = vunpack.c.h.b16 %v840
  %v3851 = vunpack.c.l.b16 %v841
  %v3852 = vunpack.c.h.b16 %v841
  %v3853 = vunpack.c.l.b16 %v842
  %v3854 = vunpack.c.h.b16 %v842
  %v3855 = vunpack.c.l.b16 %v843
  %v3856 = vunpack.c.h.b16 %v843
  %v3857 = vunpack.c.l.b16 %v844
  %v3858 = vunpack.c.l.b16 %v845
  %v3859 = vunpack.c.h.b16 %v845
  %v3860 = vunpack.c.l.b16 %v846
  %v3861 = vunpack.c.h.b16 %v846
  %v3862 = vunpack.c.l.b16 %v847
  %v3863 = vunpack.c.h.b16 %v847
  %v3864 = vunpack.c.l.b16 %v848
  %v3865 = vunpack.c.h.b16 %v848
  %v3866 = vunpack.c.l.b16 %v849
  %v3867 = vunpack.c.h.b16 %v849
  %v3868 = vunpack.c.l.b16 %v850
  %v3869 = vunpack.c.h.b16 %v850
  %v3870 = vunpack.c.l.b16 %v851
  %v3871 = vunpack.c.l.b16 %v852
  %v3872 = vunpack.c.h.b16 %v852
  %v3873 = vunpack.c.l.b16 %v853
  %v3874 = vunpack.c.h.b16 %v853
  %v3875 = vunpack.c.l.b16 %v854
  %v3876 = vunpack.c.h.b16 %v854
  %v3877 = vunpack.c.l.b16 %v855
  %v3878 = vunpack.c.h.b16 %v855
  %v3879 = vunpack.c.l.b16 %v856
  %v3880 = vunpack.c.h.b16 %v856
  %v3881 = vunpack.c.l.b16 %v857
  %v3882 = vunpack.c.h.b16 %v857
  %v3883 = vunpack.c.l.b16 %v858
  %v3884 = vunpack.c.l.b16 %v859
  %v3885 = vunpack.c.h.b16 %v859
  %v3886 = vunpack.c.l.b16 %v860
  %v3887 = vunpack.c.h.b16 %v860
  %v3888 = vunpack.c.l.b16 %v861
  %v3889 = vunpack.c.h.b16 %v861
  %v3890 = vunpack.c.l.b16 %v862
  %v3891 = vunpack.c.h.b16 %v862
  %v3892 = vunpack.c.l.b16 %v863
  %v3893 = vunpack.c.h.b16 %v863
  %v3894 = vunpack.c.l.b16 %v864
  %v3895 = vunpack.c.h.b16 %v864
  %v3896 = vunpack.c.l.b16 %v865
  %v3897 = vunpack.c.l.b16 %v866
  %v3898 = vunpack.c.h.b16 %v866
  %v3899 = vunpack.c.l.b16 %v867
  %v3900 = vunpack.c.h.b16 %v867
  %v3901 = vunpack.c.l.b16 %v868
  %v3902 = vunpack.c.h.b16 %v868
  %v3903 = vunpack.c.l.b16 %v869
  %v3904 = vunpack.c.h.b16 %v869
  %v3905 = vunpack.c.l.b16 %v870
  %v3906 = vunpack.c.h.b16 %v870
  %v3907 = vunpack.c.l.b16 %v871
  %v3908 = vunpack.c.h.b16 %v871
  %v3909 = vunpack.c.l.b16 %v872
  %v3910 = vunpack.c.l.b16 %v873
  %v3911 = vunpack.c.h.b16 %v873
  %v3912 = vunpack.c.l.b16 %v874
  %v3913 = vunpack.c.h.b16 %v874
  %v3914 = vunpack.c.l.b16 %v875
  %v3915 = vunpack.c.h.b16 %v875
  %v3916 = vunpack.c.l.b16 %v876
  %v3917 = vunpack.c.h.b16 %v876
  %v3918 = vunpack.c.l.b16 %v877
  %v3919 = vunpack.c.h.b16 %v877
  %v3920 = vunpack.c.l.b16 %v878
  %v3921 = vunpack.c.h.b16 %v878
  %v3922 = vunpack.c.l.b16 %v879
  %v3923 = vunpack.c.l.b16 %v880
  %v3924 = vunpack.c.h.b16 %v880
  %v3925 = vunpack.c.l.b16 %v881
  %v3926 = vunpack.c.h.b16 %v881
  %v3927 = vunpack.c.l.b16 %v882
  %v3928 = vunpack.c.h.b16 %v882
  %v3929 = vunpack.c.l.b16 %v883
  %v3930 = vunpack.c.h.b16 %v883
  %v3931 = vunpack.c.l.b16 %v884
  %v3932 = vunpack.c.h.b16 %v884
  %v3933 = vunpack.c.l.b16 %v885
  %v3934 = vunpack.c.h.b16 %v885
  %v3935 = vunpack.c.l.b16 %v886
  %v3936 = vunpack.c.l.b16 %v887
  %v3937 = vunpack.c.h.b16 %v887
  %v3938 = vunpack.c.l.b16 %v888
  %v3939 = vunpack.c.h.b16 %v888
  %v3940 = vunpack.c.l.b16 %v889
  %v3941 = vunpack.c.h.b16 %v889
  %v3942 = vunpack.c.l.b16 %v890
  %v3943 = vunpack.c.h.b16 %v890
  %v3944 = vunpack.c.l.b16 %v891
  %v3945 = vunpack.c.h.b16 %v891
  %v3946 = vunpack.c.l.b16 %v892
  %v3947 = vunpack.c.h.b16 %v892
  %v3948 = vunpack.c.l.b16 %v893
  %v3949 = vunpack.c.l.b16 %v894
  %v3950 = vunpack.c.h.b16 %v894
  %v3951 = vunpack.c.l.b16 %v895
  %v3952 = vunpack.c.h.b16 %v895
  %v3953 = vunpack.c.l.b16 %v896
  %v3954 = vunpack.c.h.b16 %v896
  %v3955 = vunpack.c.l.b16 %v897
  %v3956 = vunpack.c.h.b16 %v897
  %v3957 = vunpack.c.l.b16 %v898
  %v3958 = vunpack.c.h.b16 %v898
  %v3959 = vunpack.c.l.b16 %v899
  %v3960 = vunpack.c.h.b16 %v899
  %v3961 = vunpack.c.l.b16 %v900
  %v3962 = vunpack.c.l.b16 %v901
  %v3963 = vunpack.c.h.b16 %v901
  %v3964 = vunpack.c.l.b16 %v902
  %v3965 = vunpack.c.h.b16 %v902
  %v3966 = vunpack.c.l.b16 %v903
  %v3967 = vunpack.c.h.b16 %v903
  %v3968 = vunpack.c.l.b16 %v904
  %v3969 = vunpack.c.h.b16 %v904
  %v3970 = vunpack.c.l.b16 %v905
  %v3971 = vunpack.c.h.b16 %v905
  %v3972 = vunpack.c.l.b16 %v906
  %v3973 = vunpack.c.h.b16 %v906
  %v3974 = vunpack.c.l.b16 %v907
  %v3975 = vunpack.c.l.b16 %v908
  %v3976 = vunpack.c.h.b16 %v908
  %v3977 = vunpack.c.l.b16 %v909
  %v3978 = vunpack.c.h.b16 %v909
  %v3979 = vunpack.c.l.b16 %v910
  %v3980 = vunpack.c.h.b16 %v910
  %v3981 = vunpack.c.l.b16 %v911
  %v3982 = vunpack.c.h.b16 %v911
  %v3983 = vunpack.c.l.b16 %v912
  %v3984 = vunpack.c.h.b16 %v912
  %v3985 = vunpack.c.l.b16 %v913
  %v3986 = vunpack.c.h.b16 %v913
  %v3987 = vunpack.c.l.b16 %v914
  %v3988 = vunpack.c.l.b16 %v915
  %v3989 = vunpack.c.h.b16 %v915
  %v3990 = vunpack.c.l.b16 %v916
  %v3991 = vunpack.c.h.b16 %v916
  %v3992 = vunpack.c.l.b16 %v917
  %v3993 = vunpack.c.h.b16 %v917
  %v3994 = vunpack.c.l.b16 %v918
  %v3995 = vunpack.c.h.b16 %v918
  %v3996 = vunpack.c.l.b16 %v919
  %v3997 = vunpack.c.h.b16 %v919
  %v3998 = vunpack.c.l.b16 %v920
  %v3999 = vunpack.c.h.b16 %v920
  %v4000 = vunpack.c.l.b16 %v921
  %v4001 = vunpack.c.l.b16 %v922
  %v4002 = vunpack.c.h.b16 %v922
  %v4003 = vunpack.c.l.b16 %v923
  %v4004 = vunpack.c.h.b16 %v923
  %v4005 = vunpack.c.l.b16 %v924
  %v4006 = vunpack.c.h.b16 %v924
  %v4007 = vunpack.c.l.b16 %v925
  %v4008 = vunpack.c.h.b16 %v925
  %v4009 = vunpack.c.l.b16 %v926
  %v4010 = vunpack.c.h.b16 %v926
  %v4011 = vunpack.c.l.b16 %v927
  %v4012 = vunpack.c.h.b16 %v927
  %v4013 = vunpack.c.l.b16 %v928
  %v4014 = vunpack.c.l.b16 %v929
  %v4015 = vunpack.c.h.b16 %v929
  %v4016 = vunpack.c.l.b16 %v930
  %v4017 = vunpack.c.h.b16 %v930
  %v4018 = vunpack.c.l.b16 %v931
  %v4019 = vunpack.c.h.b16 %v931
  %v4020 = vunpack.c.l.b16 %v932
  %v4021 = vunpack.c.h.b16 %v932
  %v4022 = vunpack.c.l.b16 %v933
  %v4023 = vunpack.c.h.b16 %v933
  %v4024 = vunpack.c.l.b16 %v934
  %v4025 = vunpack.c.h.b16 %v934
  %v4026 = vunpack.c.l.b16 %v935
  %v4027 = vunpack.c.l.b16 %v936
  %v4028 = vunpack.c.h.b16 %v936
  %v4029 = vunpack.c.l.b16 %v937
  %v4030 = vunpack.c.h.b16 %v937
  %v4031 = vunpack.c.l.b16 %v938
  %v4032 = vunpack.c.h.b16 %v938
  %v4033 = vunpack.c.l.b16 %v939
  %v4034 = vunpack.c.h.b16 %v939
  %v4035 = vunpack.c.l.b16 %v940
  %v4036 = vunpack.c.h.b16 %v940
  %v4037 = vunpack.c.l.b16 %v941
  %v4038 = vunpack.c.h.b16 %v941
  %v4039 = vunpack.c.l.b16 %v942
  %v4040 = vunpack.c.l.b16 %v943
  %v4041 = vunpack.c.h.b16 %v943
  %v4042 = vunpack.c.l.b16 %v944
  %v4043 = vunpack.c.h.b16 %v944
  %v4044 = vunpack.c.l.b16 %v945
  %v4045 = vunpack.c.h.b16 %v945
  %v4046 = vunpack.c.l.b16 %v946
  %v4047 = vunpack.c.h.b16 %v946
  %v4048 = vunpack.c.l.b16 %v947
  %v4049 = vunpack.c.h.b16 %v947
  %v4050 = vunpack.c.l.b16 %v948
  %v4051 = vunpack.c.h.b16 %v948
  %v4052 = vunpack.c.l.b16 %v949
  %v4053 = vunpack.c.l.b16 %v950
  %v4054 = vunpack.c.h.b16 %v950
  %v4055 = vunpack.c.l.b16 %v951
  %v4056 = vunpack.c.h.b16 %v951
  %v4057 = vunpack.c.l.b16 %v952
  %v4058 = vunpack.c.h.b16 %v952
  %v4059 = vunpack.c.l.b16 %v953
  %v4060 = vunpack.c.h.b16 %v953
  %v4061 = vunpack.c.l.b16 %v954
  %v4062 = vunpack.c.h.b16 %v954
  %v4063 = vunpack.c.l.b16 %v955
  %v4064 = vunpack.c.h.b16 %v955
  %v4065 = vunpack.c.l.b16 %v956
  %v4066 = vunpack.c.l.b16 %v957
  %v4067 = vunpack.c.h.b16 %v957
  %v4068 = vunpack.c.l.b16 %v958
  %v4069 = vunpack.c.h.b16 %v958
  %v4070 = vunpack.c.l.b16 %v959
  %v4071 = vunpack.c.h.b16 %v959
  %v4072 = vunpack.c.l.b16 %v960
  %v4073 = vunpack.c.h.b16 %v960
  %v4074 = vunpack.c.l.b16 %v961
  %v4075 = vunpack.c.h.b16 %v961
  %v4076 = vunpack.c.l.b16 %v962
  %v4077 = vunpack.c.h.b16 %v962
  %v4078 = vunpack.c.l.b16 %v963
  %v4079 = vunpack.c.l.b16 %v964
  %v4080 = vunpack.c.h.b16 %v964
  %v4081 = vunpack.c.l.b16 %v965
  %v4082 = vunpack.c.h.b16 %v965
  %v4083 = vunpack.c.l.b16 %v966
  %v4084 = vunpack.c.h.b16 %v966
  %v4085 = vunpack.c.l.b16 %v967
  %v4086 = vunpack.c.h.b16 %v967
  %v4087 = vunpack.c.l.b16 %v968
  %v4088 = vunpack.c.h.b16 %v968
  %v4089 = vunpack.c.l.b16 %v969
  %v4090 = vunpack.c.h.b16 %v969
  %v4091 = vunpack.c.l.b16 %v970
  %v4092 = vunpack.c.l.b16 %v971
  %v4093 = vunpack.c.h.b16 %v971
  %v4094 = vunpack.c.l.b16 %v972
  %v4095 = vunpack.c.h.b16 %v972
  %v4096 = vunpack.c.l.b16 %v973
  %v4097 = vunpack.c.h.b16 %v973
  %v4098 = vunpack.c.l.b16 %v974
  %v4099 = vunpack.c.h.b16 %v974
  %v4100 = vunpack.c.l.b16 %v975
  %v4101 = vunpack.c.h.b16 %v975
  %v4102 = vunpack.c.l.b16 %v976
  %v4103 = vunpack.c.h.b16 %v976
  %v4104 = vunpack.c.l.b16 %v977
  %v4105 = vunpack.c.l.b16 %v978
  %v4106 = vunpack.c.h.b16 %v978
  %v4107 = vunpack.c.l.b16 %v979
  %v4108 = vunpack.c.h.b16 %v979
  %v4109 = vunpack.c.l.b16 %v980
  %v4110 = vunpack.c.h.b16 %v980
  %v4111 = vunpack.c.l.b16 %v981
  %v4112 = vunpack.c.h.b16 %v981
  %v4113 = vunpack.c.l.b16 %v982
  %v4114 = vunpack.c.h.b16 %v982
  %v4115 = vunpack.c.l.b16 %v983
  %v4116 = vunpack.c.h.b16 %v983
  %v4117 = vunpack.c.l.b16 %v984
  %v4118 = vunpack.c.l.b16 %v985
  %v4119 = vunpack.c.h.b16 %v985
  %v4120 = vunpack.c.l.b16 %v986
  %v4121 = vunpack.c.h.b16 %v986
  %v4122 = vunpack.c.l.b16 %v987
  %v4123 = vunpack.c.h.b16 %v987
  %v4124 = vunpack.c.l.b16 %v988
  %v4125 = vunpack.c.h.b16 %v988
  %v4126 = vunpack.c.l.b16 %v989
  %v4127 = vunpack.c.h.b16 %v989
  %v4128 = vunpack.c.l.b16 %v990
  %v4129 = vunpack.c.h.b16 %v990
  %v4130 = vunpack.c.l.b16 %v991
  %v4131 = vunpack.c.l.b16 %v992
  %v4132 = vunpack.c.h.b16 %v992
  %v4133 = vunpack.c.l.b16 %v993
  %v4134 = vunpack.c.h.b16 %v993
  %v4135 = vunpack.c.l.b16 %v994
  %v4136 = vunpack.c.h.b16 %v994
  %v4137 = vunpack.c.l.b16 %v995
  %v4138 = vunpack.c.h.b16 %v995
  %v4139 = vunpack.c.l.b16 %v996
  %v4140 = vunpack.c.h.b16 %v996
  %v4141 = vunpack.c.l.b16 %v997
  %v4142 = vunpack.c.h.b16 %v997
  %v4143 = vunpack.c.l.b16 %v998
  %v4144 = vunpack.c.l.b16 %v999
  %v4145 = vunpack.c.h.b16 %v999
  %v4146 = vunpack.c.l.b16 %v1000
  %v4147 = vunpack.c.h.b16 %v1000
  %v4148 = vunpack.c.l.b16 %v1001
  %v4149 = vunpack.c.h.b16 %v1001
  %v4150 = vunpack.c.l.b16 %v1002
  %v4151 = vunpack.c.h.b16 %v1002
  %v4152 = vunpack.c.l.b16 %v1003
  %v4153 = vunpack.c.h.b16 %v1003
  %v4154 = vunpack.c.l.b16 %v1004
  %v4155 = vunpack.c.h.b16 %v1004
  %v4156 = vunpack.c.l.b16 %v1005
  %v4157 = vunpack.c.l.b16 %v1006
  %v4158 = vunpack.c.h.b16 %v1006
  %v4159 = vunpack.c.l.b16 %v1007
  %v4160 = vunpack.c.h.b16 %v1007
  %v4161 = vunpack.c.l.b16 %v1008
  %v4162 = vunpack.c.h.b16 %v1008
  %v4163 = vunpack.c.l.b16 %v1009
  %v4164 = vunpack.c.h.b16 %v1009
  %v4165 = vunpack.c.l.b16 %v1010
  %v4166 = vunpack.c.h.b16 %v1010
  %v4167 = vunpack.c.l.b16 %v1011
  %v4168 = vunpack.c.h.b16 %v1011
  %v4169 = vunpack.c.l.b16 %v1012
  %v4170 = vunpack.c.l.b16 %v1013
  %v4171 = vunpack.c.h.b16 %v1013
  %v4172 = vunpack.c.l.b16 %v1014
  %v4173 = vunpack.c.h.b16 %v1014
  %v4174 = vunpack.c.l.b16 %v1015
  %v4175 = vunpack.c.h.b16 %v1015
  %v4176 = vunpack.c.l.b16 %v1016
  %v4177 = vunpack.c.h.b16 %v1016
  %v4178 = vunpack.c.l.b16 %v1017
  %v4179 = vunpack.c.h.b16 %v1017
  %v4180 = vunpack.c.l.b16 %v1018
  %v4181 = vunpack.c.h.b16 %v1018
  %v4182 = vunpack.c.l.b16 %v1019
  %v4183 = vunpack.c.l.b16 %v1020
  %v4184 = vunpack.c.h.b16 %v1020
  %v4185 = vunpack.c.l.b16 %v1021
  %v4186 = vunpack.c.h.b16 %v1021
  %v4187 = vunpack.c.l.b16 %v1022
  %v4188 = vunpack.c.h.b16 %v1022
  %v4189 = vunpack.c.l.b16 %v1023
  %v4190 = vunpack.c.h.b16 %v1023
  %v4191 = vunpack.c.l.b16 %v1024
  %v4192 = vunpack.c.h.b16 %v1024
  %v4193 = vunpack.c.l.b16 %v1025
  %v4194 = vunpack.c.h.b16 %v1025
  %v4195 = vunpack.c.l.b16 %v1026
  %v4196 = vunpack.c.l.b16 %v1027
  %v4197 = vunpack.c.h.b16 %v1027
  %v4198 = vunpack.c.l.b16 %v1028
  %v4199 = vunpack.c.h.b16 %v1028
  %v4200 = vunpack.c.l.b16 %v1029
  %v4201 = vunpack.c.h.b16 %v1029
  %v4202 = vunpack.c.l.b16 %v1030
  %v4203 = vunpack.c.h.b16 %v1030
  %v4204 = vunpack.c.l.b16 %v1031
  %v4205 = vunpack.c.h.b16 %v1031
  %v4206 = vunpack.c.l.b16 %v1032
  %v4207 = vunpack.c.h.b16 %v1032
  %v4208 = vunpack.c.l.b16 %v1033
  %v4209 = vunpack.c.l.b16 %v1034
  %v4210 = vunpack.c.h.b16 %v1034
  %v4211 = vunpack.c.l.b16 %v1035
  %v4212 = vunpack.c.h.b16 %v1035
  %v4213 = vunpack.c.l.b16 %v1036
  %v4214 = vunpack.c.h.b16 %v1036
  %v4215 = vunpack.c.l.b16 %v1037
  %v4216 = vunpack.c.h.b16 %v1037
  %v4217 = vunpack.c.l.b16 %v1038
  %v4218 = vunpack.c.h.b16 %v1038
  %v4219 = vunpack.c.l.b16 %v1039
  %v4220 = vunpack.c.h.b16 %v1039
  %v4221 = vunpack.c.l.b16 %v1040
  %v4222 = vunpack.c.l.b16 %v1041
  %v4223 = vunpack.c.h.b16 %v1041
  %v4224 = vunpack.c.l.b16 %v1042
  %v4225 = vunpack.c.h.b16 %v1042
  %v4226 = vunpack.c.l.b16 %v1043
  %v4227 = vunpack.c.h.b16 %v1043
  %v4228 = vunpack.c.l.b16 %v1044
  %v4229 = vunpack.c.h.b16 %v1044
  %v4230 = vunpack.c.l.b16 %v1045
  %v4231 = vunpack.c.h.b16 %v1045
  %v4232 = vunpack.c.l.b16 %v1046
  %v4233 = vunpack.c.h.b16 %v1046
  %v4234 = vunpack.c.l.b16 %v1047
  %v4235 = vunpack.c.l.b16 %v1048
  %v4236 = vunpack.c.h.b16 %v1048
  %v4237 = vunpack.c.l.b16 %v1049
  %v4238 = vunpack.c.h.b16 %v1049
  %v4239 = vunpack.c.l.b16 %v1050
  %v4240 = vunpack.c.h.b16 %v1050
  %v4241 = vunpack.c.l.b16 %v1051
  %v4242 = vunpack.c.h.b16 %v1051
  %v4243 = vunpack.c.l.b16 %v1052
  %v4244 = vunpack.c.h.b16 %v1052
  %v4245 = vunpack.c.l.b16 %v1053
  %v4246 = vunpack.c.h.b16 %v1053
  %v4247 = vunpack.c.l.b16 %v1054
  %v4248 = vunpack.c.l.b16 %v1055
  %v4249 = vunpack.c.h.b16 %v1055
  %v4250 = vunpack.c.l.b16 %v1056
  %v4251 = vunpack.c.h.b16 %v1056
  %v4252 = vunpack.c.l.b16 %v1057
  %v4253 = vunpack.c.h.b16 %v1057
  %v4254 = vunpack.c.l.b16 %v1058
  %v4255 = vunpack.c.h.b16 %v1058
  %v4256 = vunpack.c.l.b16 %v1059
  %v4257 = vunpack.c.h.b16 %v1059
  %v4258 = vunpack.c.l.b16 %v1060
  %v4259 = vunpack.c.h.b16 %v1060
  %v4260 = vunpack.c.l.b16 %v1061
  %v4261 = vunpack.c.l.b16 %v1062
  %v4262 = vunpack.c.h.b16 %v1062
  %v4263 = vunpack.c.l.b16 %v1063
  %v4264 = vunpack.c.h.b16 %v1063
  %v4265 = vunpack.c.l.b16 %v1064
  %v4266 = vunpack.c.h.b16 %v1064
  %v4267 = vunpack.c.l.b16 %v1065
  %v4268 = vunpack.c.h.b16 %v1065
  %v4269 = vunpack.c.l.b16 %v1066
  %v4270 = vunpack.c.h.b16 %v1066
  %v4271 = vunpack.c.l.b16 %v1067
  %v4272 = vunpack.c.h.b16 %v1067
  %v4273 = vunpack.c.l.b16 %v1068
  %v4274 = vunpack.c.l.b16 %v1069
  %v4275 = vunpack.c.h.b16 %v1069
  %v4276 = vunpack.c.l.b16 %v1070
  %v4277 = vunpack.c.h.b16 %v1070
  %v4278 = vunpack.c.l.b16 %v1071
  %v4279 = vunpack.c.h.b16 %v1071
  %v4280 = vunpack.c.l.b16 %v1072
  %v4281 = vunpack.c.h.b16 %v1072
  %v4282 = vunpack.c.l.b16 %v1073
  %v4283 = vunpack.c.h.b16 %v1073
  %v4284 = vunpack.c.l.b16 %v1074
  %v4285 = vunpack.c.h.b16 %v1074
  %v4286 = vunpack.c.l.b16 %v1075
  %v4287 = vunpack.c.l.b16 %v1076
  %v4288 = vunpack.c.h.b16 %v1076
  %v4289 = vunpack.c.l.b16 %v1077
  %v4290 = vunpack.c.h.b16 %v1077
  %v4291 = vunpack.c.l.b16 %v1078
  %v4292 = vunpack.c.h.b16 %v1078
  %v4293 = vunpack.c.l.b16 %v1079
  %v4294 = vunpack.c.h.b16 %v1079
  %v4295 = vunpack.c.l.b16 %v1080
  %v4296 = vunpack.c.h.b16 %v1080
  %v4297 = vunpack.c.l.b16 %v1081
  %v4298 = vunpack.c.h.b16 %v1081
  %v4299 = vunpack.c.l.b16 %v1082
  %v4300 = vunpack.c.l.b16 %v1083
  %v4301 = vunpack.c.h.b16 %v1083
  %v4302 = vunpack.c.l.b16 %v1084
  %v4303 = vunpack.c.h.b16 %v1084
  %v4304 = vunpack.c.l.b16 %v1085
  %v4305 = vunpack.c.h.b16 %v1085
  %v4306 = vunpack.c.l.b16 %v1086
  %v4307 = vunpack.c.h.b16 %v1086
  %v4308 = vunpack.c.l.b16 %v1087
  %v4309 = vunpack.c.h.b16 %v1087
  %v4310 = vunpack.c.l.b16 %v1088
  %v4311 = vunpack.c.h.b16 %v1088
  %v4312 = vunpack.c.l.b16 %v1089
  %v4313 = vunpack.c.l.b16 %v1090
  %v4314 = vunpack.c.h.b16 %v1090
  %v4315 = vunpack.c.l.b16 %v1091
  %v4316 = vunpack.c.h.b16 %v1091
  %v4317 = vunpack.c.l.b16 %v1092
  %v4318 = vunpack.c.h.b16 %v1092
  %v4319 = vunpack.c.l.b16 %v1093
  %v4320 = vunpack.c.h.b16 %v1093
  %v4321 = vunpack.c.l.b16 %v1094
  %v4322 = vunpack.c.h.b16 %v1094
  %v4323 = vunpack.c.l.b16 %v1095
  %v4324 = vunpack.c.h.b16 %v1095
  %v4325 = vunpack.c.l.b16 %v1096
  %v4326 = vunpack.c.l.b16 %v1097
  %v4327 = vunpack.c.h.b16 %v1097
  %v4328 = vunpack.c.l.b16 %v1098
  %v4329 = vunpack.c.h.b16 %v1098
  %v4330 = vunpack.c.l.b16 %v1099
  %v4331 = vunpack.c.h.b16 %v1099
  %v4332 = vunpack.c.l.b16 %v1100
  %v4333 = vunpack.c.h.b16 %v1100
  %v4334 = vunpack.c.l.b16 %v1101
  %v4335 = vunpack.c.h.b16 %v1101
  %v4336 = vunpack.c.l.b16 %v1102
  %v4337 = vunpack.c.h.b16 %v1102
  %v4338 = vunpack.c.l.b16 %v1103
  %v4339 = vunpack.c.l.b16 %v1104
  %v4340 = vunpack.c.h.b16 %v1104
  %v4341 = vunpack.c.l.b16 %v1105
  %v4342 = vunpack.c.h.b16 %v1105
  %v4343 = vunpack.c.l.b16 %v1106
  %v4344 = vunpack.c.h.b16 %v1106
  %v4345 = vunpack.c.l.b16 %v1107
  %v4346 = vunpack.c.h.b16 %v1107
  %v4347 = vunpack.c.l.b16 %v1108
  %v4348 = vunpack.c.h.b16 %v1108
  %v4349 = vunpack.c.l.b16 %v1109
  %v4350 = vunpack.c.h.b16 %v1109
  %v4351 = vunpack.c.l.b16 %v1110
  %v4352 = vunpack.c.l.b16 %v1111
  %v4353 = vunpack.c.h.b16 %v1111
  %v4354 = vunpack.c.l.b16 %v1112
  %v4355 = vunpack.c.h.b16 %v1112
  %v4356 = vunpack.c.l.b16 %v1113
  %v4357 = vunpack.c.h.b16 %v1113
  %v4358 = vunpack.c.l.b16 %v1114
  %v4359 = vunpack.c.h.b16 %v1114
  %v4360 = vunpack.c.l.b16 %v1115
  %v4361 = vunpack.c.h.b16 %v1115
  %v4362 = vunpack.c.l.b16 %v1116
  %v4363 = vunpack.c.h.b16 %v1116
  %v4364 = vunpack.c.l.b16 %v1117
  %v4365 = vunpack.c.l.b16 %v1118
  %v4366 = vunpack.c.h.b16 %v1118
  %v4367 = vunpack.c.l.b16 %v1119
  %v4368 = vunpack.c.h.b16 %v1119
  %v4369 = vunpack.c.l.b16 %v1120
  %v4370 = vunpack.c.h.b16 %v1120
  %v4371 = vunpack.c.l.b16 %v1121
  %v4372 = vunpack.c.h.b16 %v1121
  %v4373 = vunpack.c.l.b16 %v1122
  %v4374 = vunpack.c.h.b16 %v1122
  %v4375 = vunpack.c.l.b16 %v1123
  %v4376 = vunpack.c.h.b16 %v1123
  %v4377 = vunpack.c.l.b16 %v1124
  %v4378 = vunpack.c.l.b16 %v1125
  %v4379 = vunpack.c.h.b16 %v1125
  %v4380 = vunpack.c.l.b16 %v1126
  %v4381 = vunpack.c.h.b16 %v1126
  %v4382 = vunpack.c.l.b16 %v1127
  %v4383 = vunpack.c.h.b16 %v1127
  %v4384 = vunpack.c.l.b16 %v1128
  %v4385 = vunpack.c.h.b16 %v1128
  %v4386 = vunpack.c.l.b16 %v1129
  %v4387 = vunpack.c.h.b16 %v1129
  %v4388 = vunpack.c.l.b16 %v1130
  %v4389 = vunpack.c.h.b16 %v1130
  %v4390 = vunpack.c.l.b16 %v1131
  %v4391 = vunpack.c.l.b16 %v1132
  %v4392 = vunpack.c.h.b16 %v1132
  %v4393 = vunpack.c.l.b16 %v1133
  %v4394 = vunpack.c.h.b16 %v1133
  %v4395 = vunpack.c.l.b16 %v1134
  %v4396 = vunpack.c.h.b16 %v1134
  %v4397 = vunpack.c.l.b16 %v1135
  %v4398 = vunpack.c.h.b16 %v1135
  %v4399 = vunpack.c.l.b16 %v1136
  %v4400 = vunpack.c.h.b16 %v1136
  %v4401 = vunpack.c.l.b16 %v1137
  %v4402 = vunpack.c.h.b16 %v1137
  %v4403 = vunpack.c.l.b16 %v1138
  %v4404 = vpack.c.b16 %v2337, %v2324
  %v4405 = vpack.c.b16 %v2338, %v2325
  %v4406 = vpack.c.b16 %v2339, %v2326
  %v4407 = vpack.c.b16 %v2340, %v2327
  %v4408 = vpack.c.b16 %v2341, %v2328
  %v4409 = vpack.c.b16 %v2342, %v2329
  %v4410 = vpack.c.b16 %v2343, %v2330
  %v4411 = vpack.c.b16 %v2344, %v2331
  %v4412 = vpack.c.b16 %v2345, %v2332
  %v4413 = vpack.c.b16 %v2346, %v2333
  %v4414 = vpack.c.b16 %v2347, %v2334
  %v4415 = vpack.c.b16 %v2348, %v2335
  %v4416 = vpack.c.b16 %v2349, %v2336
  %v4417 = vpack.c.b16 %v2363, %v2350
  %v4418 = vpack.c.b16 %v2364, %v2351
  %v4419 = vpack.c.b16 %v2365, %v2352
  %v4420 = vpack.c.b16 %v2366, %v2353
  %v4421 = vpack.c.b16 %v2367, %v2354
  %v4422 = vpack.c.b16 %v2368, %v2355
  %v4423 = vpack.c.b16 %v2369, %v2356
  %v4424 = vpack.c.b16 %v2370, %v2357
  %v4425 = vpack.c.b16 %v2371, %v2358
  %v4426 = vpack.c.b16 %v2372, %v2359
  %v4427 = vpack.c.b16 %v2373, %v2360
  %v4428 = vpack.c.b16 %v2374, %v2361
  %v4429 = vpack.c.b16 %v2375, %v2362
  %v4430 = vpack.c.b16 %v2389, %v2376
  %v4431 = vpack.c.b16 %v2390, %v2377
  %v4432 = vpack.c.b16 %v2391, %v2378
  %v4433 = vpack.c.b16 %v2392, %v2379
  %v4434 = vpack.c.b16 %v2393, %v2380
  %v4435 = vpack.c.b16 %v2394, %v2381
  %v4436 = vpack.c.b16 %v2395, %v2382
  %v4437 = vpack.c.b16 %v2396, %v2383
  %v4438 = vpack.c.b16 %v2397, %v2384
  %v4439 = vpack.c.b16 %v2398, %v2385
  %v4440 = vpack.c.b16 %v2399, %v2386
  %v4441 = vpack.c.b16 %v2400, %v2387
  %v4442 = vpack.c.b16 %v2401, %v2388
  %v4443 = vpack.c.b16 %v2415, %v2402
  %v4444 = vpack.c.b16 %v2416, %v2403
  %v4445 = vpack.c.b16 %v2417, %v2404
  %v4446 = vpack.c.b16 %v2418, %v2405
  %v4447 = vpack.c.b16 %v2419, %v2406
  %v4448 = vpack.c.b16 %v2420, %v2407
  %v4449 = vpack.c.b16 %v2421, %v2408
  %v4450 = vpack.c.b16 %v2422, %v2409
  %v4451 = vpack.c.b16 %v2423, %v2410
  %v4452 = vpack.c.b16 %v2424, %v2411
  %v4453 = vpack.c.b16 %v2425, %v2412
  %v4454 = vpack.c.b16 %v2426, %v2413
  %v4455 = vpack.c.b16 %v2427, %v2414
  %v4456 = vpack.c.b16 %v2441, %v2428
  %v4457 = vpack.c.b16 %v2442, %v2429
  %v4458 = vpack.c.b16 %v2443, %v2430
  %v4459 = vpack.c.b16 %v2444, %v2431
  %v4460 = vpack.c.b16 %v2445, %v2432
  %v4461 = vpack.c.b16 %v2446, %v2433
  %v4462 = vpack.c.b16 %v2447, %v2434
  %v4463 = vpack.c.b16 %v2448, %v2435
  %v4464 = vpack.c.b16 %v2449, %v2436
  %v4465 = vpack.c.b16 %v2450, %v2437
  %v4466 = vpack.c.b16 %v2451, %v2438
  %v4467 = vpack.c.b16 %v2452, %v2439
  %v4468 = vpack.c.b16 %v2453, %v2440
  %v4469 = vpack.c.b16 %v2467, %v2454
  %v4470 = vpack.c.b16 %v2468, %v2455
  %v4471 = vpack.c.b16 %v2469, %v2456
  %v4472 = vpack.c.b16 %v2470, %v2457
  %v4473 = vpack.c.b16 %v2471, %v2458
  %v4474 = vpack.c.b16 %v2472, %v2459
  %v4475 = vpack.c.b16 %v2473, %v2460
  %v4476 = vpack.c.b16 %v2474, %v2461
  %v4477 = vpack.c.b16 %v2475, %v2462
  %v4478 = vpack.c.b16 %v2476, %v2463
  %v4479 = vpack.c.b16 %v2477, %v2464
  %v4480 = vpack.c.b16 %v2478, %v2465
  %v4481 = vpack.c.b16 %v2479, %v2466
  %v4482 = vpack.c.b16 %v2493, %v2480
  %v4483 = vpack.c.b16 %v2494, %v2481
  %v4484 = vpack.c.b16 %v2495, %v2482
  %v4485 = vpack.c.b16 %v2496, %v2483
  %v4486 = vpack.c.b16 %v2497, %v2484
  %v4487 = vpack.c.b16 %v2498, %v2485
  %v4488 = vpack.c.b16 %v2499, %v2486
  %v4489 = vpack.c.b16 %v2500, %v2487
  %v4490 = vpack.c.b16 %v2501, %v2488
  %v4491 = vpack.c.b16 %v2502, %v2489
  %v4492 = vpack.c.b16 %v2503, %v2490
  %v4493 = vpack.c.b16 %v2504, %v2491
  %v4494 = vpack.c.b16 %v2505, %v2492
  %v4495 = vpack.c.b16 %v2519, %v2506
  %v4496 = vpack.c.b16 %v2520, %v2507
  %v4497 = vpack.c.b16 %v2521, %v2508
  %v4498 = vpack.c.b16 %v2522, %v2509
  %v4499 = vpack.c.b16 %v2523, %v2510
  %v4500 = vpack.c.b16 %v2524, %v2511
  %v4501 = vpack.c.b16 %v2525, %v2512
  %v4502 = vpack.c.b16 %v2526, %v2513
  %v4503 = vpack.c.b16 %v2527, %v2514
  %v4504 = vpack.c.b16 %v2528, %v2515
  %v4505 = vpack.c.b16 %v2529, %v2516
  %v4506 = vpack.c.b16 %v2530, %v2517
  %v4507 = vpack.c.b16 %v2531, %v2518
  %v4508 = vpack.c.b16 %v2545, %v2532
  %v4509 = vpack.c.b16 %v2546, %v2533
  %v4510 = vpack.c.b16 %v2547, %v2534
  %v4511 = vpack.c.b16 %v2548, %v2535
  %v4512 = vpack.c.b16 %v2549, %v2536
  %v4513 = vpack.c.b16 %v2550, %v2537
  %v4514 = vpack.c.b16 %v2551, %v2538
  %v4515 = vpack.c.b16 %v2552, %v2539
  %v4516 = vpack.c.b16 %v2553, %v2540
  %v4517 = vpack.c.b16 %v2554, %v2541
  %v4518 = vpack.c.b16 %v2555, %v2542
  %v4519 = vpack.c.b16 %v2556, %v2543
  %v4520 = vpack.c.b16 %v2557, %v2544
  %v4521 = vpack.c.b16 %v2571, %v2558
  %v4522 = vpack.c.b16 %v2572, %v2559
  %v4523 = vpack.c.b16 %v2573, %v2560
  %v4524 = vpack.c.b16 %v2574, %v2561
  %v4525 = vpack.c.b16 %v2575, %v2562
  %v4526 = vpack.c.b16 %v2576, %v2563
  %v4527 = vpack.c.b16 %v2577, %v2564
  %v4528 = vpack.c.b16 %v2578, %v2565
  %v4529 = vpack.c.b16 %v2579, %v2566
  %v4530 = vpack.c.b16 %v2580, %v2567
  %v4531 = vpack.c.b16 %v2581, %v2568
  %v4532 = vpack.c.b16 %v2582, %v2569
  %v4533 = vpack.c.b16 %v2583, %v2570
  %v4534 = vpack.c.b16 %v2597, %v2584
  %v4535 = vpack.c.b16 %v2598, %v2585
  %v4536 = vpack.c.b16 %v2599, %v2586
  %v4537 = vpack.c.b16 %v2600, %v2587
  %v4538 = vpack.c.b16 %v2601, %v2588
  %v4539 = vpack.c.b16 %v2602, %v2589
  %v4540 = vpack.c.b16 %v2603, %v2590
  %v4541 = vpack.c.b16 %v2604, %v2591
  %v4542 = vpack.c.b16 %v2605, %v2592
  %v4543 = vpack.c.b16 %v2606, %v2593
  %v4544 = vpack.c.b16 %v2607, %v2594
  %v4545 = vpack.c.b16 %v2608, %v2595
  %v4546 = vpack.c.b16 %v2609, %v2596
  %v4547 = vpack.c.b16 %v2623, %v2610
  %v4548 = vpack.c.b16 %v2624, %v2611
  %v4549 = vpack.c.b16 %v2625, %v2612
  %v4550 = vpack.c.b16 %v2626, %v2613
  %v4551 = vpack.c.b16 %v2627, %v2614
  %v4552 = vpack.c.b16 %v2628, %v2615
  %v4553 = vpack.c.b16 %v2629, %v2616
  %v4554 = vpack.c.b16 %v2630, %v2617
  %v4555 = vpack.c.b16 %v2631, %v2618
  %v4556 = vpack.c.b16 %v2632, %v2619
  %v4557 = vpack.c.b16 %v2633, %v2620
  %v4558 = vpack.c.b16 %v2634, %v2621
  %v4559 = vpack.c.b16 %v2635, %v2622
  %v4560 = vpack.c.b16 %v2649, %v2636
  %v4561 = vpack.c.b16 %v2650, %v2637
  %v4562 = vpack.c.b16 %v2651, %v2638
  %v4563 = vpack.c.b16 %v2652, %v2639
  %v4564 = vpack.c.b16 %v2653, %v2640
  %v4565 = vpack.c.b16 %v2654, %v2641
  %v4566 = vpack.c.b16 %v2655, %v2642
  %v4567 = vpack.c.b16 %v2656, %v2643
  %v4568 = vpack.c.b16 %v2657, %v2644
  %v4569 = vpack.c.b16 %v2658, %v2645
  %v4570 = vpack.c.b16 %v2659, %v2646
  %v4571 = vpack.c.b16 %v2660, %v2647
  %v4572 = vpack.c.b16 %v2661, %v2648
  %v4573 = vpack.c.b16 %v2675, %v2662
  %v4574 = vpack.c.b16 %v2676, %v2663
  %v4575 = vpack.c.b16 %v2677, %v2664
  %v4576 = vpack.c.b16 %v2678, %v2665
  %v4577 = vpack.c.b16 %v2679, %v2666
  %v4578 = vpack.c.b16 %v2680, %v2667
  %v4579 = vpack.c.b16 %v2681, %v2668
  %v4580 = vpack.c.b16 %v2682, %v2669
  %v4581 = vpack.c.b16 %v2683, %v2670
  %v4582 = vpack.c.b16 %v2684, %v2671
  %v4583 = vpack.c.b16 %v2685, %v2672
  %v4584 = vpack.c.b16 %v2686, %v2673
  %v4585 = vpack.c.b16 %v2687, %v2674
  %v4586 = vpack.c.b16 %v2701, %v2688
  %v4587 = vpack.c.b16 %v2702, %v2689
  %v4588 = vpack.c.b16 %v2703, %v2690
  %v4589 = vpack.c.b16 %v2704, %v2691
  %v4590 = vpack.c.b16 %v2705, %v2692
  %v4591 = vpack.c.b16 %v2706, %v2693
  %v4592 = vpack.c.b16 %v2707, %v2694
  %v4593 = vpack.c.b16 %v2708, %v2695
  %v4594 = vpack.c.b16 %v2709, %v2696
  %v4595 = vpack.c.b16 %v2710, %v2697
  %v4596 = vpack.c.b16 %v2711, %v2698
  %v4597 = vpack.c.b16 %v2712, %v2699
  %v4598 = vpack.c.b16 %v2713, %v2700
  %v4599 = vpack.c.b16 %v2727, %v2714
  %v4600 = vpack.c.b16 %v2728, %v2715
  %v4601 = vpack.c.b16 %v2729, %v2716
  %v4602 = vpack.c.b16 %v2730, %v2717
  %v4603 = vpack.c.b16 %v2731, %v2718
  %v4604 = vpack.c.b16 %v2732, %v2719
  %v4605 = vpack.c.b16 %v2733, %v2720
  %v4606 = vpack.c.b16 %v2734, %v2721
  %v4607 = vpack.c.b16 %v2735, %v2722
  %v4608 = vpack.c.b16 %v2736, %v2723
  %v4609 = vpack.c.b16 %v2737, %v2724
  %v4610 = vpack.c.b16 %v2738, %v2725
  %v4611 = vpack.c.b16 %v2739, %v2726
  %v4612 = vpack.c.b16 %v2753, %v2740
  %v4613 = vpack.c.b16 %v2754, %v2741
  %v4614 = vpack.c.b16 %v2755, %v2742
  %v4615 = vpack.c.b16 %v2756, %v2743
  %v4616 = vpack.c.b16 %v2757, %v2744
  %v4617 = vpack.c.b16 %v2758, %v2745
  %v4618 = vpack.c.b16 %v2759, %v2746
  %v4619 = vpack.c.b16 %v2760, %v2747
  %v4620 = vpack.c.b16 %v2761, %v2748
  %v4621 = vpack.c.b16 %v2762, %v2749
  %v4622 = vpack.c.b16 %v2763, %v2750
  %v4623 = vpack.c.b16 %v2764, %v2751
  %v4624 = vpack.c.b16 %v2765, %v2752
  %v4625 = vpack.c.b16 %v2779, %v2766
  %v4626 = vpack.c.b16 %v2780, %v2767
  %v4627 = vpack.c.b16 %v2781, %v2768
  %v4628 = vpack.c.b16 %v2782, %v2769
  %v4629 = vpack.c.b16 %v2783, %v2770
  %v4630 = vpack.c.b16 %v2784, %v2771
  %v4631 = vpack.c.b16 %v2785, %v2772
  %v4632 = vpack.c.b16 %v2786, %v2773
  %v4633 = vpack.c.b16 %v2787, %v2774
  %v4634 = vpack.c.b16 %v2788, %v2775
  %v4635 = vpack.c.b16 %v2789, %v2776
  %v4636 = vpack.c.b16 %v2790, %v2777
  %v4637 = vpack.c.b16 %v2791, %v2778
  %v4638 = vpack.c.b16 %v2805, %v2792
  %v4639 = vpack.c.b16 %v2806, %v2793
  %v4640 = vpack.c.b16 %v2807, %v2794
  %v4641 = vpack.c.b16 %v2808, %v2795
  %v4642 = vpack.c.b16 %v2809, %v2796
  %v4643 = vpack.c.b16 %v2810, %v2797
  %v4644 = vpack.c.b16 %v2811, %v2798
  %v4645 = vpack.c.b16 %v2812, %v2799
  %v4646 = vpack.c.b16 %v2813, %v2800
  %v4647 = vpack.c.b16 %v2814, %v2801
  %v4648 = vpack.c.b16 %v2815, %v2802
  %v4649 = vpack.c.b16 %v2816, %v2803
  %v4650 = vpack.c.b16 %v2817, %v2804
  %v4651 = vpack.c.b16 %v2831, %v2818
  %v4652 = vpack.c.b16 %v2832, %v2819
  %v4653 = vpack.c.b16 %v2833, %v2820
  %v4654 = vpack.c.b16 %v2834, %v2821
  %v4655 = vpack.c.b16 %v2835, %v2822
  %v4656 = vpack.c.b16 %v2836, %v2823
  %v4657 = vpack.c.b16 %v2837, %v2824
  %v4658 = vpack.c.b16 %v2838, %v2825
  %v4659 = vpack.c.b16 %v2839, %v2826
  %v4660 = vpack.c.b16 %v2840, %v2827
  %v4661 = vpack.c.b16 %v2841, %v2828
  %v4662 = vpack.c.b16 %v2842, %v2829
  %v4663 = vpack.c.b16 %v2843, %v2830
  %v4664 = vpack.c.b16 %v2857, %v2844
  %v4665 = vpack.c.b16 %v2858, %v2845
  %v4666 = vpack.c.b16 %v2859, %v2846
  %v4667 = vpack.c.b16 %v2860, %v2847
  %v4668 = vpack.c.b16 %v2861, %v2848
  %v4669 = vpack.c.b16 %v2862, %v2849
  %v4670 = vpack.c.b16 %v2863, %v2850
  %v4671 = vpack.c.b16 %v2864, %v2851
  %v4672 = vpack.c.b16 %v2865, %v2852
  %v4673 = vpack.c.b16 %v2866, %v2853
  %v4674 = vpack.c.b16 %v2867, %v2854
  %v4675 = vpack.c.b16 %v2868, %v2855
  %v4676 = vpack.c.b16 %v2869, %v2856
  %v4677 = vpack.c.b16 %v2883, %v2870
  %v4678 = vpack.c.b16 %v2884, %v2871
  %v4679 = vpack.c.b16 %v2885, %v2872
  %v4680 = vpack.c.b16 %v2886, %v2873
  %v4681 = vpack.c.b16 %v2887, %v2874
  %v4682 = vpack.c.b16 %v2888, %v2875
  %v4683 = vpack.c.b16 %v2889, %v2876
  %v4684 = vpack.c.b16 %v2890, %v2877
  %v4685 = vpack.c.b16 %v2891, %v2878
  %v4686 = vpack.c.b16 %v2892, %v2879
  %v4687 = vpack.c.b16 %v2893, %v2880
  %v4688 = vpack.c.b16 %v2894, %v2881
  %v4689 = vpack.c.b16 %v2895, %v2882
  %v4690 = vpack.c.b16 %v2909, %v2896
  %v4691 = vpack.c.b16 %v2910, %v2897
  %v4692 = vpack.c.b16 %v2911, %v2898
  %v4693 = vpack.c.b16 %v2912, %v2899
  %v4694 = vpack.c.b16 %v2913, %v2900
  %v4695 = vpack.c.b16 %v2914, %v2901
  %v4696 = vpack.c.b16 %v2915, %v2902
  %v4697 = vpack.c.b16 %v2916, %v2903
  %v4698 = vpack.c.b16 %v2917, %v2904
  %v4699 = vpack.c.b16 %v2918, %v2905
  %v4700 = vpack.c.b16 %v2919, %v2906
  %v4701 = vpack.c.b16 %v2920, %v2907
  %v4702 = vpack.c.b16 %v2921, %v2908
  %v4703 = vpack.c.b16 %v2935, %v2922
  %v4704 = vpack.c.b16 %v2936, %v2923
  %v4705 = vpack.c.b16 %v2937, %v2924
  %v4706 = vpack.c.b16 %v2938, %v2925
  %v4707 = vpack.c.b16 %v2939, %v2926
  %v4708 = vpack.c.b16 %v2940, %v2927
  %v4709 = vpack.c.b16 %v2941, %v2928
  %v4710 = vpack.c.b16 %v2942, %v2929
  %v4711 = vpack.c.b16 %v2943, %v2930
  %v4712 = vpack.c.b16 %v2944, %v2931
  %v4713 = vpack.c.b16 %v2945, %v2932
  %v4714 = vpack.c.b16 %v2946, %v2933
  %v4715 = vpack.c.b16 %v2947, %v2934
  %v4716 = vpack.c.b16 %v2961, %v2948
  %v4717 = vpack.c.b16 %v2962, %v2949
  %v4718 = vpack.c.b16 %v2963, %v2950
  %v4719 = vpack.c.b16 %v2964, %v2951
  %v4720 = vpack.c.b16 %v2965, %v2952
  %v4721 = vpack.c.b16 %v2966, %v2953
  %v4722 = vpack.c.b16 %v2967, %v2954
  %v4723 = vpack.c.b16 %v2968, %v2955
  %v4724 = vpack.c.b16 %v2969, %v2956
  %v4725 = vpack.c.b16 %v2970, %v2957
  %v4726 = vpack.c.b16 %v2971, %v2958
  %v4727 = vpack.c.b16 %v2972, %v2959
  %v4728 = vpack.c.b16 %v2973, %v2960
  %v4729 = vpack.c.b16 %v2987, %v2974
  %v4730 = vpack.c.b16 %v2988, %v2975
  %v4731 = vpack.c.b16 %v2989, %v2976
  %v4732 = vpack.c.b16 %v2990, %v2977
  %v4733 = vpack.c.b16 %v2991, %v2978
  %v4734 = vpack.c.b16 %v2992, %v2979
  %v4735 = vpack.c.b16 %v2993, %v2980
  %v4736 = vpack.c.b16 %v2994, %v2981
  %v4737 = vpack.c.b16 %v2995, %v2982
  %v4738 = vpack.c.b16 %v2996, %v2983
  %v4739 = vpack.c.b16 %v2997, %v2984
  %v4740 = vpack.c.b16 %v2998, %v2985
  %v4741 = vpack.c.b16 %v2999, %v2986
  %v4742 = vpack.c.b16 %v3013, %v3000
  %v4743 = vpack.c.b16 %v3014, %v3001
  %v4744 = vpack.c.b16 %v3015, %v3002
  %v4745 = vpack.c.b16 %v3016, %v3003
  %v4746 = vpack.c.b16 %v3017, %v3004
  %v4747 = vpack.c.b16 %v3018, %v3005
  %v4748 = vpack.c.b16 %v3019, %v3006
  %v4749 = vpack.c.b16 %v3020, %v3007
  %v4750 = vpack.c.b16 %v3021, %v3008
  %v4751 = vpack.c.b16 %v3022, %v3009
  %v4752 = vpack.c.b16 %v3023, %v3010
  %v4753 = vpack.c.b16 %v3024, %v3011
  %v4754 = vpack.c.b16 %v3025, %v3012
  %v4755 = vpack.c.b16 %v3039, %v3026
  %v4756 = vpack.c.b16 %v3040, %v3027
  %v4757 = vpack.c.b16 %v3041, %v3028
  %v4758 = vpack.c.b16 %v3042, %v3029
  %v4759 = vpack.c.b16 %v3043, %v3030
  %v4760 = vpack.c.b16 %v3044, %v3031
  %v4761 = vpack.c.b16 %v3045, %v3032
  %v4762 = vpack.c.b16 %v3046, %v3033
  %v4763 = vpack.c.b16 %v3047, %v3034
  %v4764 = vpack.c.b16 %v3048, %v3035
  %v4765 = vpack.c.b16 %v3049, %v3036
  %v4766 = vpack.c.b16 %v3050, %v3037
  %v4767 = vpack.c.b16 %v3051, %v3038
  %v4768 = vpack.c.b16 %v3065, %v3052
  %v4769 = vpack.c.b16 %v3066, %v3053
  %v4770 = vpack.c.b16 %v3067, %v3054
  %v4771 = vpack.c.b16 %v3068, %v3055
  %v4772 = vpack.c.b16 %v3069, %v3056
  %v4773 = vpack.c.b16 %v3070, %v3057
  %v4774 = vpack.c.b16 %v3071, %v3058
  %v4775 = vpack.c.b16 %v3072, %v3059
  %v4776 = vpack.c.b16 %v3073, %v3060
  %v4777 = vpack.c.b16 %v3074, %v3061
  %v4778 = vpack.c.b16 %v3075, %v3062
  %v4779 = vpack.c.b16 %v3076, %v3063
  %v4780 = vpack.c.b16 %v3077, %v3064
  %v4781 = vpack.c.b16 %v3091, %v3078
  %v4782 = vpack.c.b16 %v3092, %v3079
  %v4783 = vpack.c.b16 %v3093, %v3080
  %v4784 = vpack.c.b16 %v3094, %v3081
  %v4785 = vpack.c.b16 %v3095, %v3082
  %v4786 = vpack.c.b16 %v3096, %v3083
  %v4787 = vpack.c.b16 %v3097, %v3084
  %v4788 = vpack.c.b16 %v3098, %v3085
  %v4789 = vpack.c.b16 %v3099, %v3086
  %v4790 = vpack.c.b16 %v3100, %v3087
  %v4791 = vpack.c.b16 %v3101, %v3088
  %v4792 = vpack.c.b16 %v3102, %v3089
  %v4793 = vpack.c.b16 %v3103, %v3090
  %v4794 = vpack.c.b16 %v3117, %v3104
  %v4795 = vpack.c.b16 %v3118, %v3105
  %v4796 = vpack.c.b16 %v3119, %v3106
  %v4797 = vpack.c.b16 %v3120, %v3107
  %v4798 = vpack.c.b16 %v3121, %v3108
  %v4799 = vpack.c.b16 %v3122, %v3109
  %v4800 = vpack.c.b16 %v3123, %v3110
  %v4801 = vpack.c.b16 %v3124, %v3111
  %v4802 = vpack.c.b16 %v3125, %v3112
  %v4803 = vpack.c.b16 %v3126, %v3113
  %v4804 = vpack.c.b16 %v3127, %v3114
  %v4805 = vpack.c.b16 %v3128, %v3115
  %v4806 = vpack.c.b16 %v3129, %v3116
  %v4807 = vpack.c.b16 %v3143, %v3130
  %v4808 = vpack.c.b16 %v3144, %v3131
  %v4809 = vpack.c.b16 %v3145, %v3132
  %v4810 = vpack.c.b16 %v3146, %v3133
  %v4811 = vpack.c.b16 %v3147, %v3134
  %v4812 = vpack.c.b16 %v3148, %v3135
  %v4813 = vpack.c.b16 %v3149, %v3136
  %v4814 = vpack.c.b16 %v3150, %v3137
  %v4815 = vpack.c.b16 %v3151, %v3138
  %v4816 = vpack.c.b16 %v3152, %v3139
  %v4817 = vpack.c.b16 %v3153, %v3140
  %v4818 = vpack.c.b16 %v3154, %v3141
  %v4819 = vpack.c.b16 %v3155, %v3142
  %v4820 = vpack.c.b16 %v3169, %v3156
  %v4821 = vpack.c.b16 %v3170, %v3157
  %v4822 = vpack.c.b16 %v3171, %v3158
  %v4823 = vpack.c.b16 %v3172, %v3159
  %v4824 = vpack.c.b16 %v3173, %v3160
  %v4825 = vpack.c.b16 %v3174, %v3161
  %v4826 = vpack.c.b16 %v3175, %v3162
  %v4827 = vpack.c.b16 %v3176, %v3163
  %v4828 = vpack.c.b16 %v3177, %v3164
  %v4829 = vpack.c.b16 %v3178, %v3165
  %v4830 = vpack.c.b16 %v3179, %v3166
  %v4831 = vpack.c.b16 %v3180, %v3167
  %v4832 = vpack.c.b16 %v3181, %v3168
  %v4833 = vpack.c.b16 %v3195, %v3182
  %v4834 = vpack.c.b16 %v3196, %v3183
  %v4835 = vpack.c.b16 %v3197, %v3184
  %v4836 = vpack.c.b16 %v3198, %v3185
  %v4837 = vpack.c.b16 %v3199, %v3186
  %v4838 = vpack.c.b16 %v3200, %v3187
  %v4839 = vpack.c.b16 %v3201, %v3188
  %v4840 = vpack.c.b16 %v3202, %v3189
  %v4841 = vpack.c.b16 %v3203, %v3190
  %v4842 = vpack.c.b16 %v3204, %v3191
  %v4843 = vpack.c.b16 %v3205, %v3192
  %v4844 = vpack.c.b16 %v3206, %v3193
  %v4845 = vpack.c.b16 %v3207, %v3194
  %v4846 = vpack.c.b16 %v3221, %v3208
  %v4847 = vpack.c.b16 %v3222, %v3209
  %v4848 = vpack.c.b16 %v3223, %v3210
  %v4849 = vpack.c.b16 %v3224, %v3211
  %v4850 = vpack.c.b16 %v3225, %v3212
  %v4851 = vpack.c.b16 %v3226, %v3213
  %v4852 = vpack.c.b16 %v3227, %v3214
  %v4853 = vpack.c.b16 %v3228, %v3215
  %v4854 = vpack.c.b16 %v3229, %v3216
  %v4855 = vpack.c.b16 %v3230, %v3217
  %v4856 = vpack.c.b16 %v3231, %v3218
  %v4857 = vpack.c.b16 %v3232, %v3219
  %v4858 = vpack.c.b16 %v3233, %v3220
  %v4859 = vpack.c.b16 %v3247, %v3234
  %v4860 = vpack.c.b16 %v3248, %v3235
  %v4861 = vpack.c.b16 %v3249, %v3236
  %v4862 = vpack.c.b16 %v3250, %v3237
  %v4863 = vpack.c.b16 %v3251, %v3238
  %v4864 = vpack.c.b16 %v3252, %v3239
  %v4865 = vpack.c.b16 %v3253, %v3240
  %v4866 = vpack.c.b16 %v3254, %v3241
  %v4867 = vpack.c.b16 %v3255, %v3242
  %v4868 = vpack.c.b16 %v3256, %v3243
  %v4869 = vpack.c.b16 %v3257, %v3244
  %v4870 = vpack.c.b16 %v3258, %v3245
  %v4871 = vpack.c.b16 %v3259, %v3246
  %v4872 = vpack.c.b16 %v3273, %v3260
  %v4873 = vpack.c.b16 %v3274, %v3261
  %v4874 = vpack.c.b16 %v3275, %v3262
  %v4875 = vpack.c.b16 %v3276, %v3263
  %v4876 = vpack.c.b16 %v3277, %v3264
  %v4877 = vpack.c.b16 %v3278, %v3265
  %v4878 = vpack.c.b16 %v3279, %v3266
  %v4879 = vpack.c.b16 %v3280, %v3267
  %v4880 = vpack.c.b16 %v3281, %v3268
  %v4881 = vpack.c.b16 %v3282, %v3269
  %v4882 = vpack.c.b16 %v3283, %v3270
  %v4883 = vpack.c.b16 %v3284, %v3271
  %v4884 = vpack.c.b16 %v3285, %v3272
  %v4885 = vpack.c.b16 %v3299, %v3286
  %v4886 = vpack.c.b16 %v3300, %v3287
  %v4887 = vpack.c.b16 %v3301, %v3288
  %v4888 = vpack.c.b16 %v3302, %v3289
  %v4889 = vpack.c.b16 %v3303, %v3290
  %v4890 = vpack.c.b16 %v3304, %v3291
  %v4891 = vpack.c.b16 %v3305, %v3292
  %v4892 = vpack.c.b16 %v3306, %v3293
  %v4893 = vpack.c.b16 %v3307, %v3294
  %v4894 = vpack.c.b16 %v3308, %v3295
  %v4895 = vpack.c.b16 %v3309, %v3296
  %v4896 = vpack.c.b16 %v3310, %v3297
  %v4897 = vpack.c.b16 %v3311, %v3298
  %v4898 = vpack.c.b16 %v3325, %v3312
  %v4899 = vpack.c.b16 %v3326, %v3313
  %v4900 = vpack.c.b16 %v3327, %v3314
  %v4901 = vpack.c.b16 %v3328, %v3315
  %v4902 = vpack.c.b16 %v3329, %v3316
  %v4903 = vpack.c.b16 %v3330, %v3317
  %v4904 = vpack.c.b16 %v3331, %v3318
  %v4905 = vpack.c.b16 %v3332, %v3319
  %v4906 = vpack.c.b16 %v3333, %v3320
  %v4907 = vpack.c.b16 %v3334, %v3321
  %v4908 = vpack.c.b16 %v3335, %v3322
  %v4909 = vpack.c.b16 %v3336, %v3323
  %v4910 = vpack.c.b16 %v3337, %v3324
  %v4911 = vpack.c.b16 %v3351, %v3338
  %v4912 = vpack.c.b16 %v3352, %v3339
  %v4913 = vpack.c.b16 %v3353, %v3340
  %v4914 = vpack.c.b16 %v3354, %v3341
  %v4915 = vpack.c.b16 %v3355, %v3342
  %v4916 = vpack.c.b16 %v3356, %v3343
  %v4917 = vpack.c.b16 %v3357, %v3344
  %v4918 = vpack.c.b16 %v3358, %v3345
  %v4919 = vpack.c.b16 %v3359, %v3346
  %v4920 = vpack.c.b16 %v3360, %v3347
  %v4921 = vpack.c.b16 %v3361, %v3348
  %v4922 = vpack.c.b16 %v3362, %v3349
  %v4923 = vpack.c.b16 %v3363, %v3350
  %v4924 = vpack.c.b16 %v3377, %v3364
  %v4925 = vpack.c.b16 %v3378, %v3365
  %v4926 = vpack.c.b16 %v3379, %v3366
  %v4927 = vpack.c.b16 %v3380, %v3367
  %v4928 = vpack.c.b16 %v3381, %v3368
  %v4929 = vpack.c.b16 %v3382, %v3369
  %v4930 = vpack.c.b16 %v3383, %v3370
  %v4931 = vpack.c.b16 %v3384, %v3371
  %v4932 = vpack.c.b16 %v3385, %v3372
  %v4933 = vpack.c.b16 %v3386, %v3373
  %v4934 = vpack.c.b16 %v3387, %v3374
  %v4935 = vpack.c.b16 %v3388, %v3375
  %v4936 = vpack.c.b16 %v3389, %v3376
  %v4937 = vpack.c.b16 %v3403, %v3390
  %v4938 = vpack.c.b16 %v3404, %v3391
  %v4939 = vpack.c.b16 %v3405, %v3392
  %v4940 = vpack.c.b16 %v3406, %v3393
  %v4941 = vpack.c.b16 %v3407, %v3394
  %v4942 = vpack.c.b16 %v3408, %v3395
  %v4943 = vpack.c.b16 %v3409, %v3396
  %v4944 = vpack.c.b16 %v3410, %v3397
  %v4945 = vpack.c.b16 %v3411, %v3398
  %v4946 = vpack.c.b16 %v3412, %v3399
  %v4947 = vpack.c.b16 %v3413, %v3400
  %v4948 = vpack.c.b16 %v3414, %v3401
  %v4949 = vpack.c.b16 %v3415, %v3402
  %v4950 = vpack.c.b16 %v3429, %v3416
  %v4951 = vpack.c.b16 %v3430, %v3417
  %v4952 = vpack.c.b16 %v3431, %v3418
  %v4953 = vpack.c.b16 %v3432, %v3419
  %v4954 = vpack.c.b16 %v3433, %v3420
  %v4955 = vpack.c.b16 %v3434, %v3421
  %v4956 = vpack.c.b16 %v3435, %v3422
  %v4957 = vpack.c.b16 %v3436, %v3423
  %v4958 = vpack.c.b16 %v3437, %v3424
  %v4959 = vpack.c.b16 %v3438, %v3425
  %v4960 = vpack.c.b16 %v3439, %v3426
  %v4961 = vpack.c.b16 %v3440, %v3427
  %v4962 = vpack.c.b16 %v3441, %v3428
  %v4963 = vpack.c.b16 %v3455, %v3442
  %v4964 = vpack.c.b16 %v3456, %v3443
  %v4965 = vpack.c.b16 %v3457, %v3444
  %v4966 = vpack.c.b16 %v3458, %v3445
  %v4967 = vpack.c.b16 %v3459, %v3446
  %v4968 = vpack.c.b16 %v3460, %v3447
  %v4969 = vpack.c.b16 %v3461, %v3448
  %v4970 = vpack.c.b16 %v3462, %v3449
  %v4971 = vpack.c.b16 %v3463, %v3450
  %v4972 = vpack.c.b16 %v3464, %v3451
  %v4973 = vpack.c.b16 %v3465, %v3452
  %v4974 = vpack.c.b16 %v3466, %v3453
  %v4975 = vpack.c.b16 %v3467, %v3454
  %v4976 = vpack.c.b16 %v3481, %v3468
  %v4977 = vpack.c.b16 %v3482, %v3469
  %v4978 = vpack.c.b16 %v3483, %v3470
  %v4979 = vpack.c.b16 %v3484, %v3471
  %v4980 = vpack.c.b16 %v3485, %v3472
  %v4981 = vpack.c.b16 %v3486, %v3473
  %v4982 = vpack.c.b16 %v3487, %v3474
  %v4983 = vpack.c.b16 %v3488, %v3475
  %v4984 = vpack.c.b16 %v3489, %v3476
  %v4985 = vpack.c.b16 %v3490, %v3477
  %v4986 = vpack.c.b16 %v3491, %v3478
  %v4987 = vpack.c.b16 %v3492, %v3479
  %v4988 = vpack.c.b16 %v3493, %v3480
  %v4989 = vpack.c.b16 %v3507, %v3494
  %v4990 = vpack.c.b16 %v3508, %v3495
  %v4991 = vpack.c.b16 %v3509, %v3496
  %v4992 = vpack.c.b16 %v3510, %v3497
  %v4993 = vpack.c.b16 %v3511, %v3498
  %v4994 = vpack.c.b16 %v3512, %v3499
  %v4995 = vpack.c.b16 %v3513, %v3500
  %v4996 = vpack.c.b16 %v3514, %v3501
  %v4997 = vpack.c.b16 %v3515, %v3502
  %v4998 = vpack.c.b16 %v3516, %v3503
  %v4999 = vpack.c.b16 %v3517, %v3504
  %v5000 = vpack.c.b16 %v3518, %v3505
  %v5001 = vpack.c.b16 %v3519, %v3506
  %v5002 = vpack.c.b16 %v3533, %v3520
  %v5003 = vpack.c.b16 %v3534, %v3521
  %v5004 = vpack.c.b16 %v3535, %v3522
  %v5005 = vpack.c.b16 %v3536, %v3523
  %v5006 = vpack.c.b16 %v3537, %v3524
  %v5007 = vpack.c.b16 %v3538, %v3525
  %v5008 = vpack.c.b16 %v3539, %v3526
  %v5009 = vpack.c.b16 %v3540, %v3527
  %v5010 = vpack.c.b16 %v3541, %v3528
  %v5011 = vpack.c.b16 %v3542, %v3529
  %v5012 = vpack.c.b16 %v3543, %v3530
  %v5013 = vpack.c.b16 %v3544, %v3531
  %v5014 = vpack.c.b16 %v3545, %v3532
  %v5015 = vpack.c.b16 %v3559, %v3546
  %v5016 = vpack.c.b16 %v3560, %v3547
  %v5017 = vpack.c.b16 %v3561, %v3548
  %v5018 = vpack.c.b16 %v3562, %v3549
  %v5019 = vpack.c.b16 %v3563, %v3550
  %v5020 = vpack.c.b16 %v3564, %v3551
  %v5021 = vpack.c.b16 %v3565, %v3552
  %v5022 = vpack.c.b16 %v3566, %v3553
  %v5023 = vpack.c.b16 %v3567, %v3554
  %v5024 = vpack.c.b16 %v3568, %v3555
  %v5025 = vpack.c.b16 %v3569, %v3556
  %v5026 = vpack.c.b16 %v3570, %v3557
  %v5027 = vpack.c.b16 %v3571, %v3558
  %v5028 = vpack.c.b16 %v3585, %v3572
  %v5029 = vpack.c.b16 %v3586, %v3573
  %v5030 = vpack.c.b16 %v3587, %v3574
  %v5031 = vpack.c.b16 %v3588, %v3575
  %v5032 = vpack.c.b16 %v3589, %v3576
  %v5033 = vpack.c.b16 %v3590, %v3577
  %v5034 = vpack.c.b16 %v3591, %v3578
  %v5035 = vpack.c.b16 %v3592, %v3579
  %v5036 = vpack.c.b16 %v3593, %v3580
  %v5037 = vpack.c.b16 %v3594, %v3581
  %v5038 = vpack.c.b16 %v3595, %v3582
  %v5039 = vpack.c.b16 %v3596, %v3583
  %v5040 = vpack.c.b16 %v3597, %v3584
  %v5041 = vpack.c.b16 %v3611, %v3598
  %v5042 = vpack.c.b16 %v3612, %v3599
  %v5043 = vpack.c.b16 %v3613, %v3600
  %v5044 = vpack.c.b16 %v3614, %v3601
  %v5045 = vpack.c.b16 %v3615, %v3602
  %v5046 = vpack.c.b16 %v3616, %v3603
  %v5047 = vpack.c.b16 %v3617, %v3604
  %v5048 = vpack.c.b16 %v3618, %v3605
  %v5049 = vpack.c.b16 %v3619, %v3606
  %v5050 = vpack.c.b16 %v3620, %v3607
  %v5051 = vpack.c.b16 %v3621, %v3608
  %v5052 = vpack.c.b16 %v3622, %v3609
  %v5053 = vpack.c.b16 %v3623, %v3610
  %v5054 = vpack.c.b16 %v3637, %v3624
  %v5055 = vpack.c.b16 %v3638, %v3625
  %v5056 = vpack.c.b16 %v3639, %v3626
  %v5057 = vpack.c.b16 %v3640, %v3627
  %v5058 = vpack.c.b16 %v3641, %v3628
  %v5059 = vpack.c.b16 %v3642, %v3629
  %v5060 = vpack.c.b16 %v3643, %v3630
  %v5061 = vpack.c.b16 %v3644, %v3631
  %v5062 = vpack.c.b16 %v3645, %v3632
  %v5063 = vpack.c.b16 %v3646, %v3633
  %v5064 = vpack.c.b16 %v3647, %v3634
  %v5065 = vpack.c.b16 %v3648, %v3635
  %v5066 = vpack.c.b16 %v3649, %v3636
  %v5067 = vpack.c.b16 %v3663, %v3650
  %v5068 = vpack.c.b16 %v3664, %v3651
  %v5069 = vpack.c.b16 %v3665, %v3652
  %v5070 = vpack.c.b16 %v3666, %v3653
  %v5071 = vpack.c.b16 %v3667, %v3654
  %v5072 = vpack.c.b16 %v3668, %v3655
  %v5073 = vpack.c.b16 %v3669, %v3656
  %v5074 = vpack.c.b16 %v3670, %v3657
  %v5075 = vpack.c.b16 %v3671, %v3658
  %v5076 = vpack.c.b16 %v3672, %v3659
  %v5077 = vpack.c.b16 %v3673, %v3660
  %v5078 = vpack.c.b16 %v3674, %v3661
  %v5079 = vpack.c.b16 %v3675, %v3662
  %v5080 = vpack.c.b16 %v3689, %v3676
  %v5081 = vpack.c.b16 %v3690, %v3677
  %v5082 = vpack.c.b16 %v3691, %v3678
  %v5083 = vpack.c.b16 %v3692, %v3679
  %v5084 = vpack.c.b16 %v3693, %v3680
  %v5085 = vpack.c.b16 %v3694, %v3681
  %v5086 = vpack.c.b16 %v3695, %v3682
  %v5087 = vpack.c.b16 %v3696, %v3683
  %v5088 = vpack.c.b16 %v3697, %v3684
  %v5089 = vpack.c.b16 %v3698, %v3685
  %v5090 = vpack.c.b16 %v3699, %v3686
  %v5091 = vpack.c.b16 %v3700, %v3687
  %v5092 = vpack.c.b16 %v3701, %v3688
  %v5093 = vpack.c.b16 %v3715, %v3702
  %v5094 = vpack.c.b16 %v3716, %v3703
  %v5095 = vpack.c.b16 %v3717, %v3704
  %v5096 = vpack.c.b16 %v3718, %v3705
  %v5097 = vpack.c.b16 %v3719, %v3706
  %v5098 = vpack.c.b16 %v3720, %v3707
  %v5099 = vpack.c.b16 %v3721, %v3708
  %v5100 = vpack.c.b16 %v3722, %v3709
  %v5101 = vpack.c.b16 %v3723, %v3710
  %v5102 = vpack.c.b16 %v3724, %v3711
  %v5103 = vpack.c.b16 %v3725, %v3712
  %v5104 = vpack.c.b16 %v3726, %v3713
  %v5105 = vpack.c.b16 %v3727, %v3714
  %v5106 = vpack.c.b16 %v3741, %v3728
  %v5107 = vpack.c.b16 %v3742, %v3729
  %v5108 = vpack.c.b16 %v3743, %v3730
  %v5109 = vpack.c.b16 %v3744, %v3731
  %v5110 = vpack.c.b16 %v3745, %v3732
  %v5111 = vpack.c.b16 %v3746, %v3733
  %v5112 = vpack.c.b16 %v3747, %v3734
  %v5113 = vpack.c.b16 %v3748, %v3735
  %v5114 = vpack.c.b16 %v3749, %v3736
  %v5115 = vpack.c.b16 %v3750, %v3737
  %v5116 = vpack.c.b16 %v3751, %v3738
  %v5117 = vpack.c.b16 %v3752, %v3739
  %v5118 = vpack.c.b16 %v3753, %v3740
  %v5119 = vpack.c.b16 %v3767, %v3754
  %v5120 = vpack.c.b16 %v3768, %v3755
  %v5121 = vpack.c.b16 %v3769, %v3756
  %v5122 = vpack.c.b16 %v3770, %v3757
  %v5123 = vpack.c.b16 %v3771, %v3758
  %v5124 = vpack.c.b16 %v3772, %v3759
  %v5125 = vpack.c.b16 %v3773, %v3760
  %v5126 = vpack.c.b16 %v3774, %v3761
  %v5127 = vpack.c.b16 %v3775, %v3762
  %v5128 = vpack.c.b16 %v3776, %v3763
  %v5129 = vpack.c.b16 %v3777, %v3764
  %v5130 = vpack.c.b16 %v3778, %v3765
  %v5131 = vpack.c.b16 %v3779, %v3766
  %v5132 = vpack.c.b16 %v3793, %v3780
  %v5133 = vpack.c.b16 %v3794, %v3781
  %v5134 = vpack.c.b16 %v3795, %v3782
  %v5135 = vpack.c.b16 %v3796, %v3783
  %v5136 = vpack.c.b16 %v3797, %v3784
  %v5137 = vpack.c.b16 %v3798, %v3785
  %v5138 = vpack.c.b16 %v3799, %v3786
  %v5139 = vpack.c.b16 %v3800, %v3787
  %v5140 = vpack.c.b16 %v3801, %v3788
  %v5141 = vpack.c.b16 %v3802, %v3789
  %v5142 = vpack.c.b16 %v3803, %v3790
  %v5143 = vpack.c.b16 %v3804, %v3791
  %v5144 = vpack.c.b16 %v3805, %v3792
  %v5145 = vpack.c.b16 %v3819, %v3806
  %v5146 = vpack.c.b16 %v3820, %v3807
  %v5147 = vpack.c.b16 %v3821, %v3808
  %v5148 = vpack.c.b16 %v3822, %v3809
  %v5149 = vpack.c.b16 %v3823, %v3810
  %v5150 = vpack.c.b16 %v3824, %v3811
  %v5151 = vpack.c.b16 %v3825, %v3812
  %v5152 = vpack.c.b16 %v3826, %v3813
  %v5153 = vpack.c.b16 %v3827, %v3814
  %v5154 = vpack.c.b16 %v3828, %v3815
  %v5155 = vpack.c.b16 %v3829, %v3816
  %v5156 = vpack.c.b16 %v3830, %v3817
  %v5157 = vpack.c.b16 %v3831, %v3818
  %v5158 = vpack.c.b16 %v3845, %v3832
  %v5159 = vpack.c.b16 %v3846, %v3833
  %v5160 = vpack.c.b16 %v3847, %v3834
  %v5161 = vpack.c.b16 %v3848, %v3835
  %v5162 = vpack.c.b16 %v3849, %v3836
  %v5163 = vpack.c.b16 %v3850, %v3837
  %v5164 = vpack.c.b16 %v3851, %v3838
  %v5165 = vpack.c.b16 %v3852, %v3839
  %v5166 = vpack.c.b16 %v3853, %v3840
  %v5167 = vpack.c.b16 %v3854, %v3841
  %v5168 = vpack.c.b16 %v3855, %v3842
  %v5169 = vpack.c.b16 %v3856, %v3843
  %v5170 = vpack.c.b16 %v3857, %v3844
  %v5171 = vpack.c.b16 %v3871, %v3858
  %v5172 = vpack.c.b16 %v3872, %v3859
  %v5173 = vpack.c.b16 %v3873, %v3860
  %v5174 = vpack.c.b16 %v3874, %v3861
  %v5175 = vpack.c.b16 %v3875, %v3862
  %v5176 = vpack.c.b16 %v3876, %v3863
  %v5177 = vpack.c.b16 %v3877, %v3864
  %v5178 = vpack.c.b16 %v3878, %v3865
  %v5179 = vpack.c.b16 %v3879, %v3866
  %v5180 = vpack.c.b16 %v3880, %v3867
  %v5181 = vpack.c.b16 %v3881, %v3868
  %v5182 = vpack.c.b16 %v3882, %v3869
  %v5183 = vpack.c.b16 %v3883, %v3870
  %v5184 = vpack.c.b16 %v3897, %v3884
  %v5185 = vpack.c.b16 %v3898, %v3885
  %v5186 = vpack.c.b16 %v3899, %v3886
  %v5187 = vpack.c.b16 %v3900, %v3887
  %v5188 = vpack.c.b16 %v3901, %v3888
  %v5189 = vpack.c.b16 %v3902, %v3889
  %v5190 = vpack.c.b16 %v3903, %v3890
  %v5191 = vpack.c.b16 %v3904, %v3891
  %v5192 = vpack.c.b16 %v3905, %v3892
  %v5193 = vpack.c.b16 %v3906, %v3893
  %v5194 = vpack.c.b16 %v3907, %v3894
  %v5195 = vpack.c.b16 %v3908, %v3895
  %v5196 = vpack.c.b16 %v3909, %v3896
  %v5197 = vpack.c.b16 %v3923, %v3910
  %v5198 = vpack.c.b16 %v3924, %v3911
  %v5199 = vpack.c.b16 %v3925, %v3912
  %v5200 = vpack.c.b16 %v3926, %v3913
  %v5201 = vpack.c.b16 %v3927, %v3914
  %v5202 = vpack.c.b16 %v3928, %v3915
  %v5203 = vpack.c.b16 %v3929, %v3916
  %v5204 = vpack.c.b16 %v3930, %v3917
  %v5205 = vpack.c.b16 %v3931, %v3918
  %v5206 = vpack.c.b16 %v3932, %v3919
  %v5207 = vpack.c.b16 %v3933, %v3920
  %v5208 = vpack.c.b16 %v3934, %v3921
  %v5209 = vpack.c.b16 %v3935, %v3922
  %v5210 = vpack.c.b16 %v3949, %v3936
  %v5211 = vpack.c.b16 %v3950, %v3937
  %v5212 = vpack.c.b16 %v3951, %v3938
  %v5213 = vpack.c.b16 %v3952, %v3939
  %v5214 = vpack.c.b16 %v3953, %v3940
  %v5215 = vpack.c.b16 %v3954, %v3941
  %v5216 = vpack.c.b16 %v3955, %v3942
  %v5217 = vpack.c.b16 %v3956, %v3943
  %v5218 = vpack.c.b16 %v3957, %v3944
  %v5219 = vpack.c.b16 %v3958, %v3945
  %v5220 = vpack.c.b16 %v3959, %v3946
  %v5221 = vpack.c.b16 %v3960, %v3947
  %v5222 = vpack.c.b16 %v3961, %v3948
  %v5223 = vpack.c.b16 %v3975, %v3962
  %v5224 = vpack.c.b16 %v3976, %v3963
  %v5225 = vpack.c.b16 %v3977, %v3964
  %v5226 = vpack.c.b16 %v3978, %v3965
  %v5227 = vpack.c.b16 %v3979, %v3966
  %v5228 = vpack.c.b16 %v3980, %v3967
  %v5229 = vpack.c.b16 %v3981, %v3968
  %v5230 = vpack.c.b16 %v3982, %v3969
  %v5231 = vpack.c.b16 %v3983, %v3970
  %v5232 = vpack.c.b16 %v3984, %v3971
  %v5233 = vpack.c.b16 %v3985, %v3972
  %v5234 = vpack.c.b16 %v3986, %v3973
  %v5235 = vpack.c.b16 %v3987, %v3974
  %v5236 = vpack.c.b16 %v4001, %v3988
  %v5237 = vpack.c.b16 %v4002, %v3989
  %v5238 = vpack.c.b16 %v4003, %v3990
  %v5239 = vpack.c.b16 %v4004, %v3991
  %v5240 = vpack.c.b16 %v4005, %v3992
  %v5241 = vpack.c.b16 %v4006, %v3993
  %v5242 = vpack.c.b16 %v4007, %v3994
  %v5243 = vpack.c.b16 %v4008, %v3995
  %v5244 = vpack.c.b16 %v4009, %v3996
  %v5245 = vpack.c.b16 %v4010, %v3997
  %v5246 = vpack.c.b16 %v4011, %v3998
  %v5247 = vpack.c.b16 %v4012, %v3999
  %v5248 = vpack.c.b16 %v4013, %v4000
  %v5249 = vpack.c.b16 %v4027, %v4014
  %v5250 = vpack.c.b16 %v4028, %v4015
  %v5251 = vpack.c.b16 %v4029, %v4016
  %v5252 = vpack.c.b16 %v4030, %v4017
  %v5253 = vpack.c.b16 %v4031, %v4018
  %v5254 = vpack.c.b16 %v4032, %v4019
  %v5255 = vpack.c.b16 %v4033, %v4020
  %v5256 = vpack.c.b16 %v4034, %v4021
  %v5257 = vpack.c.b16 %v4035, %v4022
  %v5258 = vpack.c.b16 %v4036, %v4023
  %v5259 = vpack.c.b16 %v4037, %v4024
  %v5260 = vpack.c.b16 %v4038, %v4025
  %v5261 = vpack.c.b16 %v4039, %v4026
  %v5262 = vpack.c.b16 %v4053, %v4040
  %v5263 = vpack.c.b16 %v4054, %v4041
  %v5264 = vpack.c.b16 %v4055, %v4042
  %v5265 = vpack.c.b16 %v4056, %v4043
  %v5266 = vpack.c.b16 %v4057, %v4044
  %v5267 = vpack.c.b16 %v4058, %v4045
  %v5268 = vpack.c.b16 %v4059, %v4046
  %v5269 = vpack.c.b16 %v4060, %v4047
  %v5270 = vpack.c.b16 %v4061, %v4048
  %v5271 = vpack.c.b16 %v4062, %v4049
  %v5272 = vpack.c.b16 %v4063, %v4050
  %v5273 = vpack.c.b16 %v4064, %v4051
  %v5274 = vpack.c.b16 %v4065, %v4052
  %v5275 = vpack.c.b16 %v4079, %v4066
  %v5276 = vpack.c.b16 %v4080, %v4067
  %v5277 = vpack.c.b16 %v4081, %v4068
  %v5278 = vpack.c.b16 %v4082, %v4069
  %v5279 = vpack.c.b16 %v4083, %v4070
  %v5280 = vpack.c.b16 %v4084, %v4071
  %v5281 = vpack.c.b16 %v4085, %v4072
  %v5282 = vpack.c.b16 %v4086, %v4073
  %v5283 = vpack.c.b16 %v4087, %v4074
  %v5284 = vpack.c.b16 %v4088, %v4075
  %v5285 = vpack.c.b16 %v4089, %v4076
  %v5286 = vpack.c.b16 %v4090, %v4077
  %v5287 = vpack.c.b16 %v4091, %v4078
  %v5288 = vpack.c.b16 %v4105, %v4092
  %v5289 = vpack.c.b16 %v4106, %v4093
  %v5290 = vpack.c.b16 %v4107, %v4094
  %v5291 = vpack.c.b16 %v4108, %v4095
  %v5292 = vpack.c.b16 %v4109, %v4096
  %v5293 = vpack.c.b16 %v4110, %v4097
  %v5294 = vpack.c.b16 %v4111, %v4098
  %v5295 = vpack.c.b16 %v4112, %v4099
  %v5296 = vpack.c.b16 %v4113, %v4100
  %v5297 = vpack.c.b16 %v4114, %v4101
  %v5298 = vpack.c.b16 %v4115, %v4102
  %v5299 = vpack.c.b16 %v4116, %v4103
  %v5300 = vpack.c.b16 %v4117, %v4104
  %v5301 = vpack.c.b16 %v4131, %v4118
  %v5302 = vpack.c.b16 %v4132, %v4119
  %v5303 = vpack.c.b16 %v4133, %v4120
  %v5304 = vpack.c.b16 %v4134, %v4121
  %v5305 = vpack.c.b16 %v4135, %v4122
  %v5306 = vpack.c.b16 %v4136, %v4123
  %v5307 = vpack.c.b16 %v4137, %v4124
  %v5308 = vpack.c.b16 %v4138, %v4125
  %v5309 = vpack.c.b16 %v4139, %v4126
  %v5310 = vpack.c.b16 %v4140, %v4127
  %v5311 = vpack.c.b16 %v4141, %v4128
  %v5312 = vpack.c.b16 %v4142, %v4129
  %v5313 = vpack.c.b16 %v4143, %v4130
  %v5314 = vpack.c.b16 %v4157, %v4144
  %v5315 = vpack.c.b16 %v4158, %v4145
  %v5316 = vpack.c.b16 %v4159, %v4146
  %v5317 = vpack.c.b16 %v4160, %v4147
  %v5318 = vpack.c.b16 %v4161, %v4148
  %v5319 = vpack.c.b16 %v4162, %v4149
  %v5320 = vpack.c.b16 %v4163, %v4150
  %v5321 = vpack.c.b16 %v4164, %v4151
  %v5322 = vpack.c.b16 %v4165, %v4152
  %v5323 = vpack.c.b16 %v4166, %v4153
  %v5324 = vpack.c.b16 %v4167, %v4154
  %v5325 = vpack.c.b16 %v4168, %v4155
  %v5326 = vpack.c.b16 %v4169, %v4156
  %v5327 = vpack.c.b16 %v4183, %v4170
  %v5328 = vpack.c.b16 %v4184, %v4171
  %v5329 = vpack.c.b16 %v4185, %v4172
  %v5330 = vpack.c.b16 %v4186, %v4173
  %v5331 = vpack.c.b16 %v4187, %v4174
  %v5332 = vpack.c.b16 %v4188, %v4175
  %v5333 = vpack.c.b16 %v4189, %v4176
  %v5334 = vpack.c.b16 %v4190, %v4177
  %v5335 = vpack.c.b16 %v4191, %v4178
  %v5336 = vpack.c.b16 %v4192, %v4179
  %v5337 = vpack.c.b16 %v4193, %v4180
  %v5338 = vpack.c.b16 %v4194, %v4181
  %v5339 = vpack.c.b16 %v4195, %v4182
  %v5340 = vpack.c.b16 %v4209, %v4196
  %v5341 = vpack.c.b16 %v4210, %v4197
  %v5342 = vpack.c.b16 %v4211, %v4198
  %v5343 = vpack.c.b16 %v4212, %v4199
  %v5344 = vpack.c.b16 %v4213, %v4200
  %v5345 = vpack.c.b16 %v4214, %v4201
  %v5346 = vpack.c.b16 %v4215, %v4202
  %v5347 = vpack.c.b16 %v4216, %v4203
  %v5348 = vpack.c.b16 %v4217, %v4204
  %v5349 = vpack.c.b16 %v4218, %v4205
  %v5350 = vpack.c.b16 %v4219, %v4206
  %v5351 = vpack.c.b16 %v4220, %v4207
  %v5352 = vpack.c.b16 %v4221, %v4208
  %v5353 = vpack.c.b16 %v4235, %v4222
  %v5354 = vpack.c.b16 %v4236, %v4223
  %v5355 = vpack.c.b16 %v4237, %v4224
  %v5356 = vpack.c.b16 %v4238, %v4225
  %v5357 = vpack.c.b16 %v4239, %v4226
  %v5358 = vpack.c.b16 %v4240, %v4227
  %v5359 = vpack.c.b16 %v4241, %v4228
  %v5360 = vpack.c.b16 %v4242, %v4229
  %v5361 = vpack.c.b16 %v4243, %v4230
  %v5362 = vpack.c.b16 %v4244, %v4231
  %v5363 = vpack.c.b16 %v4245, %v4232
  %v5364 = vpack.c.b16 %v4246, %v4233
  %v5365 = vpack.c.b16 %v4247, %v4234
  %v5366 = vpack.c.b16 %v4261, %v4248
  %v5367 = vpack.c.b16 %v4262, %v4249
  %v5368 = vpack.c.b16 %v4263, %v4250
  %v5369 = vpack.c.b16 %v4264, %v4251
  %v5370 = vpack.c.b16 %v4265, %v4252
  %v5371 = vpack.c.b16 %v4266, %v4253
  %v5372 = vpack.c.b16 %v4267, %v4254
  %v5373 = vpack.c.b16 %v4268, %v4255
  %v5374 = vpack.c.b16 %v4269, %v4256
  %v5375 = vpack.c.b16 %v4270, %v4257
  %v5376 = vpack.c.b16 %v4271, %v4258
  %v5377 = vpack.c.b16 %v4272, %v4259
  %v5378 = vpack.c.b16 %v4273, %v4260
  %v5379 = vpack.c.b16 %v4287, %v4274
  %v5380 = vpack.c.b16 %v4288, %v4275
  %v5381 = vpack.c.b16 %v4289, %v4276
  %v5382 = vpack.c.b16 %v4290, %v4277
  %v5383 = vpack.c.b16 %v4291, %v4278
  %v5384 = vpack.c.b16 %v4292, %v4279
  %v5385 = vpack.c.b16 %v4293, %v4280
  %v5386 = vpack.c.b16 %v4294, %v4281
  %v5387 = vpack.c.b16 %v4295, %v4282
  %v5388 = vpack.c.b16 %v4296, %v4283
  %v5389 = vpack.c.b16 %v4297, %v4284
  %v5390 = vpack.c.b16 %v4298, %v4285
  %v5391 = vpack.c.b16 %v4299, %v4286
  %v5392 = vpack.c.b16 %v4313, %v4300
  %v5393 = vpack.c.b16 %v4314, %v4301
  %v5394 = vpack.c.b16 %v4315, %v4302
  %v5395 = vpack.c.b16 %v4316, %v4303
  %v5396 = vpack.c.b16 %v4317, %v4304
  %v5397 = vpack.c.b16 %v4318, %v4305
  %v5398 = vpack.c.b16 %v4319, %v4306
  %v5399 = vpack.c.b16 %v4320, %v4307
  %v5400 = vpack.c.b16 %v4321, %v4308
  %v5401 = vpack.c.b16 %v4322, %v4309
  %v5402 = vpack.c.b16 %v4323, %v4310
  %v5403 = vpack.c.b16 %v4324, %v4311
  %v5404 = vpack.c.b16 %v4325, %v4312
  %v5405 = vpack.c.b16 %v4339, %v4326
  %v5406 = vpack.c.b16 %v4340, %v4327
  %v5407 = vpack.c.b16 %v4341, %v4328
  %v5408 = vpack.c.b16 %v4342, %v4329
  %v5409 = vpack.c.b16 %v4343, %v4330
  %v5410 = vpack.c.b16 %v4344, %v4331
  %v5411 = vpack.c.b16 %v4345, %v4332
  %v5412 = vpack.c.b16 %v4346, %v4333
  %v5413 = vpack.c.b16 %v4347, %v4334
  %v5414 = vpack.c.b16 %v4348, %v4335
  %v5415 = vpack.c.b16 %v4349, %v4336
  %v5416 = vpack.c.b16 %v4350, %v4337
  %v5417 = vpack.c.b16 %v4351, %v4338
  %v5418 = vpack.c.b16 %v4365, %v4352
  %v5419 = vpack.c.b16 %v4366, %v4353
  %v5420 = vpack.c.b16 %v4367, %v4354
  %v5421 = vpack.c.b16 %v4368, %v4355
  %v5422 = vpack.c.b16 %v4369, %v4356
  %v5423 = vpack.c.b16 %v4370, %v4357
  %v5424 = vpack.c.b16 %v4371, %v4358
  %v5425 = vpack.c.b16 %v4372, %v4359
  %v5426 = vpack.c.b16 %v4373, %v4360
  %v5427 = vpack.c.b16 %v4374, %v4361
  %v5428 = vpack.c.b16 %v4375, %v4362
  %v5429 = vpack.c.b16 %v4376, %v4363
  %v5430 = vpack.c.b16 %v4377, %v4364
  %v5431 = vpack.c.b16 %v4391, %v4378
  %v5432 = vpack.c.b16 %v4392, %v4379
  %v5433 = vpack.c.b16 %v4393, %v4380
  %v5434 = vpack.c.b16 %v4394, %v4381
  %v5435 = vpack.c.b16 %v4395, %v4382
  %v5436 = vpack.c.b16 %v4396, %v4383
  %v5437 = vpack.c.b16 %v4397, %v4384
  %v5438 = vpack.c.b16 %v4398, %v4385
  %v5439 = vpack.c.b16 %v4399, %v4386
  %v5440 = vpack.c.b16 %v4400, %v4387
  %v5441 = vpack.c.b16 %v4401, %v4388
  %v5442 = vpack.c.b16 %v4402, %v4389
  %v5443 = vpack.c.b16 %v4403, %v4390
  %6484 = vmatpush.bf16.msra.mxu0 %v4495
  %6485 = vmatpush.bf16.msra.mxu0 %v4482
  %6486 = vmatpush.bf16.msra.mxu0 %v4469
  %6487 = vmatpush.bf16.msra.mxu0 %v4456
  %6488 = vmatpush.bf16.msra.mxu0 %v4443
  %6489 = vmatpush.bf16.msra.mxu0 %v4430
  %6490 = vmatpush.bf16.msra.mxu0 %v4417
  %6491 = vmatpush.bf16.msra.mxu0 %v4404
  %6492 = vmatmul.bf16.gmra.mxu0 %v1184
  %v6493 = vpop.f32.mrf.mxu0
  %v6494 = vadd.f32 %v1143, %v6493
  %v6495 = vpop.f32.mrf.mxu0
  %6496 = vdwg.mxu0
  %6497 = vmatpush.bf16.msra.mxu0 %v4599
  %6498 = vmatpush.bf16.msra.mxu0 %v4586
  %6499 = vmatpush.bf16.msra.mxu0 %v4573
  %6500 = vmatpush.bf16.msra.mxu0 %v4560
  %6501 = vmatpush.bf16.msra.mxu0 %v4547
  %6502 = vmatpush.bf16.msra.mxu0 %v4534
  %6503 = vmatpush.bf16.msra.mxu0 %v4521
  %6504 = vmatpush.bf16.msra.mxu0 %v4508
  %6505 = vmatmul.bf16.gmra.mxu0 %v1185
  %v6506 = vpop.f32.mrf.mxu0
  %v6507 = vadd.f32 %v6494, %v6506
  %v6508 = vpop.f32.mrf.mxu0
  %6509 = vdwg.mxu0
  %6510 = vmatpush.bf16.msra.mxu0 %v4703
  %6511 = vmatpush.bf16.msra.mxu0 %v4690
  %6512 = vmatpush.bf16.msra.mxu0 %v4677
  %6513 = vmatpush.bf16.msra.mxu0 %v4664
  %6514 = vmatpush.bf16.msra.mxu0 %v4651
  %6515 = vmatpush.bf16.msra.mxu0 %v4638
  %6516 = vmatpush.bf16.msra.mxu0 %v4625
  %6517 = vmatpush.bf16.msra.mxu0 %v4612
  %6518 = vmatmul.bf16.gmra.mxu0 %v1186
  %v6519 = vpop.f32.mrf.mxu0
  %v6520 = vadd.f32 %v6507, %v6519
  %v6521 = vpop.f32.mrf.mxu0
  %6522 = vdwg.mxu0
  %6523 = vmatpush.bf16.msra.mxu0 %v4807
  %6524 = vmatpush.bf16.msra.mxu0 %v4794
  %6525 = vmatpush.bf16.msra.mxu0 %v4781
  %6526 = vmatpush.bf16.msra.mxu0 %v4768
  %6527 = vmatpush.bf16.msra.mxu0 %v4755
  %6528 = vmatpush.bf16.msra.mxu0 %v4742
  %6529 = vmatpush.bf16.msra.mxu0 %v4729
  %6530 = vmatpush.bf16.msra.mxu0 %v4716
  %6531 = vmatmul.bf16.gmra.mxu0 %v1187
  %v6532 = vpop.f32.mrf.mxu0
  %v6533 = vadd.f32 %v6520, %v6532
  %v6534 = vpop.f32.mrf.mxu0
  %6535 = vdwg.mxu0
  %6536 = vmatpush.bf16.msra.mxu0 %v4911
  %6537 = vmatpush.bf16.msra.mxu0 %v4898
  %6538 = vmatpush.bf16.msra.mxu0 %v4885
  %6539 = vmatpush.bf16.msra.mxu0 %v4872
  %6540 = vmatpush.bf16.msra.mxu0 %v4859
  %6541 = vmatpush.bf16.msra.mxu0 %v4846
  %6542 = vmatpush.bf16.msra.mxu0 %v4833
  %6543 = vmatpush.bf16.msra.mxu0 %v4820
  %6544 = vmatmul.bf16.gmra.mxu0 %v1188
  %v6545 = vpop.f32.mrf.mxu0
  %v6546 = vadd.f32 %v6533, %v6545
  %v6547 = vpop.f32.mrf.mxu0
  %6548 = vdwg.mxu0
  %6549 = vmatpush.bf16.msra.mxu0 %v5015
  %6550 = vmatpush.bf16.msra.mxu0 %v5002
  %6551 = vmatpush.bf16.msra.mxu0 %v4989
  %6552 = vmatpush.bf16.msra.mxu0 %v4976
  %6553 = vmatpush.bf16.msra.mxu0 %v4963
  %6554 = vmatpush.bf16.msra.mxu0 %v4950
  %6555 = vmatpush.bf16.msra.mxu0 %v4937
  %6556 = vmatpush.bf16.msra.mxu0 %v4924
  %6557 = vmatmul.bf16.gmra.mxu0 %v1189
  %v6558 = vpop.f32.mrf.mxu0
  %v6559 = vadd.f32 %v6546, %v6558
  %v6560 = vpop.f32.mrf.mxu0
  %6561 = vdwg.mxu0
  %6562 = vmatpush.bf16.msra.mxu0 %v5119
  %6563 = vmatpush.bf16.msra.mxu0 %v5106
  %6564 = vmatpush.bf16.msra.mxu0 %v5093
  %6565 = vmatpush.bf16.msra.mxu0 %v5080
  %6566 = vmatpush.bf16.msra.mxu0 %v5067
  %6567 = vmatpush.bf16.msra.mxu0 %v5054
  %6568 = vmatpush.bf16.msra.mxu0 %v5041
  %6569 = vmatpush.bf16.msra.mxu0 %v5028
  %6570 = vmatmul.bf16.gmra.mxu0 %v1190
  %v6571 = vpop.f32.mrf.mxu0
  %v6572 = vadd.f32 %v6559, %v6571
  %v6573 = vpop.f32.mrf.mxu0
  %6574 = vdwg.mxu0
  %6575 = vmatpush.bf16.msra.mxu0 %v5223
  %6576 = vmatpush.bf16.msra.mxu0 %v5210
  %6577 = vmatpush.bf16.msra.mxu0 %v5197
  %6578 = vmatpush.bf16.msra.mxu0 %v5184
  %6579 = vmatpush.bf16.msra.mxu0 %v5171
  %6580 = vmatpush.bf16.msra.mxu0 %v5158
  %6581 = vmatpush.bf16.msra.mxu0 %v5145
  %6582 = vmatpush.bf16.msra.mxu0 %v5132
  %6583 = vmatmul.bf16.gmra.mxu0 %v1191
  %v6584 = vpop.f32.mrf.mxu0
  %v6585 = vadd.f32 %v6572, %v6584
  %v6586 = vpop.f32.mrf.mxu0
  %6587 = vdwg.mxu0
  %6588 = vmatpush.bf16.msra.mxu0 %v5327
  %6589 = vmatpush.bf16.msra.mxu0 %v5314
  %6590 = vmatpush.bf16.msra.mxu0 %v5301
  %6591 = vmatpush.bf16.msra.mxu0 %v5288
  %6592 = vmatpush.bf16.msra.mxu0 %v5275
  %6593 = vmatpush.bf16.msra.mxu0 %v5262
  %6594 = vmatpush.bf16.msra.mxu0 %v5249
  %6595 = vmatpush.bf16.msra.mxu0 %v5236
  %6596 = vmatmul.bf16.gmra.mxu0 %v1192
  %v6597 = vpop.f32.mrf.mxu0
  %v6598 = vadd.f32 %v6585, %v6597
  %v6599 = vpop.f32.mrf.mxu0
  %6600 = vdwg.mxu0
  %6601 = vmatpush.bf16.msra.mxu0 %v5431
  %6602 = vmatpush.bf16.msra.mxu0 %v5418
  %6603 = vmatpush.bf16.msra.mxu0 %v5405
  %6604 = vmatpush.bf16.msra.mxu0 %v5392
  %6605 = vmatpush.bf16.msra.mxu0 %v5379
  %6606 = vmatpush.bf16.msra.mxu0 %v5366
  %6607 = vmatpush.bf16.msra.mxu0 %v5353
  %6608 = vmatpush.bf16.msra.mxu0 %v5340
  %6609 = vmatmul.bf16.gmra.mxu0 %v1193
  %v6610 = vpop.f32.mrf.mxu0
  %v6611 = vadd.f32 %v6598, %v6610
  %v6612 = vpop.f32.mrf.mxu0
  %6613 = vdwg.mxu0
  %6614 = vmatpush.bf16.msra.mxu0 %v4496
  %6615 = vmatpush.bf16.msra.mxu0 %v4483
  %6616 = vmatpush.bf16.msra.mxu0 %v4470
  %6617 = vmatpush.bf16.msra.mxu0 %v4457
  %6618 = vmatpush.bf16.msra.mxu0 %v4444
  %6619 = vmatpush.bf16.msra.mxu0 %v4431
  %6620 = vmatpush.bf16.msra.mxu0 %v4418
  %6621 = vmatpush.bf16.msra.mxu0 %v4405
  %6622 = vmatmul.bf16.gmra.mxu0 %v1184
  %v6623 = vpop.f32.mrf.mxu0
  %v6624 = vadd.f32 %v1144, %v6623
  %v6625 = vpop.f32.mrf.mxu0
  %6626 = vdwg.mxu0
  %6627 = vmatpush.bf16.msra.mxu0 %v4600
  %6628 = vmatpush.bf16.msra.mxu0 %v4587
  %6629 = vmatpush.bf16.msra.mxu0 %v4574
  %6630 = vmatpush.bf16.msra.mxu0 %v4561
  %6631 = vmatpush.bf16.msra.mxu0 %v4548
  %6632 = vmatpush.bf16.msra.mxu0 %v4535
  %6633 = vmatpush.bf16.msra.mxu0 %v4522
  %6634 = vmatpush.bf16.msra.mxu0 %v4509
  %6635 = vmatmul.bf16.gmra.mxu0 %v1185
  %v6636 = vpop.f32.mrf.mxu0
  %v6637 = vadd.f32 %v6624, %v6636
  %v6638 = vpop.f32.mrf.mxu0
  %6639 = vdwg.mxu0
  %6640 = vmatpush.bf16.msra.mxu0 %v4704
  %6641 = vmatpush.bf16.msra.mxu0 %v4691
  %6642 = vmatpush.bf16.msra.mxu0 %v4678
  %6643 = vmatpush.bf16.msra.mxu0 %v4665
  %6644 = vmatpush.bf16.msra.mxu0 %v4652
  %6645 = vmatpush.bf16.msra.mxu0 %v4639
  %6646 = vmatpush.bf16.msra.mxu0 %v4626
  %6647 = vmatpush.bf16.msra.mxu0 %v4613
  %6648 = vmatmul.bf16.gmra.mxu0 %v1186
  %v6649 = vpop.f32.mrf.mxu0
  %v6650 = vadd.f32 %v6637, %v6649
  %v6651 = vpop.f32.mrf.mxu0
  %6652 = vdwg.mxu0
  %6653 = vmatpush.bf16.msra.mxu0 %v4808
  %6654 = vmatpush.bf16.msra.mxu0 %v4795
  %6655 = vmatpush.bf16.msra.mxu0 %v4782
  %6656 = vmatpush.bf16.msra.mxu0 %v4769
  %6657 = vmatpush.bf16.msra.mxu0 %v4756
  %6658 = vmatpush.bf16.msra.mxu0 %v4743
  %6659 = vmatpush.bf16.msra.mxu0 %v4730
  %6660 = vmatpush.bf16.msra.mxu0 %v4717
  %6661 = vmatmul.bf16.gmra.mxu0 %v1187
  %v6662 = vpop.f32.mrf.mxu0
  %v6663 = vadd.f32 %v6650, %v6662
  %v6664 = vpop.f32.mrf.mxu0
  %6665 = vdwg.mxu0
  %6666 = vmatpush.bf16.msra.mxu0 %v4912
  %6667 = vmatpush.bf16.msra.mxu0 %v4899
  %6668 = vmatpush.bf16.msra.mxu0 %v4886
  %6669 = vmatpush.bf16.msra.mxu0 %v4873
  %6670 = vmatpush.bf16.msra.mxu0 %v4860
  %6671 = vmatpush.bf16.msra.mxu0 %v4847
  %6672 = vmatpush.bf16.msra.mxu0 %v4834
  %6673 = vmatpush.bf16.msra.mxu0 %v4821
  %6674 = vmatmul.bf16.gmra.mxu0 %v1188
  %v6675 = vpop.f32.mrf.mxu0
  %v6676 = vadd.f32 %v6663, %v6675
  %v6677 = vpop.f32.mrf.mxu0
  %6678 = vdwg.mxu0
  %6679 = vmatpush.bf16.msra.mxu0 %v5016
  %6680 = vmatpush.bf16.msra.mxu0 %v5003
  %6681 = vmatpush.bf16.msra.mxu0 %v4990
  %6682 = vmatpush.bf16.msra.mxu0 %v4977
  %6683 = vmatpush.bf16.msra.mxu0 %v4964
  %6684 = vmatpush.bf16.msra.mxu0 %v4951
  %6685 = vmatpush.bf16.msra.mxu0 %v4938
  %6686 = vmatpush.bf16.msra.mxu0 %v4925
  %6687 = vmatmul.bf16.gmra.mxu0 %v1189
  %v6688 = vpop.f32.mrf.mxu0
  %v6689 = vadd.f32 %v6676, %v6688
  %v6690 = vpop.f32.mrf.mxu0
  %6691 = vdwg.mxu0
  %6692 = vmatpush.bf16.msra.mxu0 %v5120
  %6693 = vmatpush.bf16.msra.mxu0 %v5107
  %6694 = vmatpush.bf16.msra.mxu0 %v5094
  %6695 = vmatpush.bf16.msra.mxu0 %v5081
  %6696 = vmatpush.bf16.msra.mxu0 %v5068
  %6697 = vmatpush.bf16.msra.mxu0 %v5055
  %6698 = vmatpush.bf16.msra.mxu0 %v5042
  %6699 = vmatpush.bf16.msra.mxu0 %v5029
  %6700 = vmatmul.bf16.gmra.mxu0 %v1190
  %v6701 = vpop.f32.mrf.mxu0
  %v6702 = vadd.f32 %v6689, %v6701
  %v6703 = vpop.f32.mrf.mxu0
  %6704 = vdwg.mxu0
  %6705 = vmatpush.bf16.msra.mxu0 %v5224
  %6706 = vmatpush.bf16.msra.mxu0 %v5211
  %6707 = vmatpush.bf16.msra.mxu0 %v5198
  %6708 = vmatpush.bf16.msra.mxu0 %v5185
  %6709 = vmatpush.bf16.msra.mxu0 %v5172
  %6710 = vmatpush.bf16.msra.mxu0 %v5159
  %6711 = vmatpush.bf16.msra.mxu0 %v5146
  %6712 = vmatpush.bf16.msra.mxu0 %v5133
  %6713 = vmatmul.bf16.gmra.mxu0 %v1191
  %v6714 = vpop.f32.mrf.mxu0
  %v6715 = vadd.f32 %v6702, %v6714
  %v6716 = vpop.f32.mrf.mxu0
  %6717 = vdwg.mxu0
  %6718 = vmatpush.bf16.msra.mxu0 %v5328
  %6719 = vmatpush.bf16.msra.mxu0 %v5315
  %6720 = vmatpush.bf16.msra.mxu0 %v5302
  %6721 = vmatpush.bf16.msra.mxu0 %v5289
  %6722 = vmatpush.bf16.msra.mxu0 %v5276
  %6723 = vmatpush.bf16.msra.mxu0 %v5263
  %6724 = vmatpush.bf16.msra.mxu0 %v5250
  %6725 = vmatpush.bf16.msra.mxu0 %v5237
  %6726 = vmatmul.bf16.gmra.mxu0 %v1192
  %v6727 = vpop.f32.mrf.mxu0
  %v6728 = vadd.f32 %v6715, %v6727
  %v6729 = vpop.f32.mrf.mxu0
  %6730 = vdwg.mxu0
  %6731 = vmatpush.bf16.msra.mxu0 %v5432
  %6732 = vmatpush.bf16.msra.mxu0 %v5419
  %6733 = vmatpush.bf16.msra.mxu0 %v5406
  %6734 = vmatpush.bf16.msra.mxu0 %v5393
  %6735 = vmatpush.bf16.msra.mxu0 %v5380
  %6736 = vmatpush.bf16.msra.mxu0 %v5367
  %6737 = vmatpush.bf16.msra.mxu0 %v5354
  %6738 = vmatpush.bf16.msra.mxu0 %v5341
  %6739 = vmatmul.bf16.gmra.mxu0 %v1193
  %v6740 = vpop.f32.mrf.mxu0
  %v6741 = vadd.f32 %v6728, %v6740
  %v6742 = vpop.f32.mrf.mxu0
  %6743 = vdwg.mxu0
  %6744 = vmatpush.bf16.msra.mxu0 %v4497
  %6745 = vmatpush.bf16.msra.mxu0 %v4484
  %6746 = vmatpush.bf16.msra.mxu0 %v4471
  %6747 = vmatpush.bf16.msra.mxu0 %v4458
  %6748 = vmatpush.bf16.msra.mxu0 %v4445
  %6749 = vmatpush.bf16.msra.mxu0 %v4432
  %6750 = vmatpush.bf16.msra.mxu0 %v4419
  %6751 = vmatpush.bf16.msra.mxu0 %v4406
  %6752 = vmatmul.bf16.gmra.mxu0 %v1184
  %v6753 = vpop.f32.mrf.mxu0
  %v6754 = vadd.f32 %v1145, %v6753
  %v6755 = vpop.f32.mrf.mxu0
  %6756 = vdwg.mxu0
  %6757 = vmatpush.bf16.msra.mxu0 %v4601
  %6758 = vmatpush.bf16.msra.mxu0 %v4588
  %6759 = vmatpush.bf16.msra.mxu0 %v4575
  %6760 = vmatpush.bf16.msra.mxu0 %v4562
  %6761 = vmatpush.bf16.msra.mxu0 %v4549
  %6762 = vmatpush.bf16.msra.mxu0 %v4536
  %6763 = vmatpush.bf16.msra.mxu0 %v4523
  %6764 = vmatpush.bf16.msra.mxu0 %v4510
  %6765 = vmatmul.bf16.gmra.mxu0 %v1185
  %v6766 = vpop.f32.mrf.mxu0
  %v6767 = vadd.f32 %v6754, %v6766
  %v6768 = vpop.f32.mrf.mxu0
  %6769 = vdwg.mxu0
  %6770 = vmatpush.bf16.msra.mxu0 %v4705
  %6771 = vmatpush.bf16.msra.mxu0 %v4692
  %6772 = vmatpush.bf16.msra.mxu0 %v4679
  %6773 = vmatpush.bf16.msra.mxu0 %v4666
  %6774 = vmatpush.bf16.msra.mxu0 %v4653
  %6775 = vmatpush.bf16.msra.mxu0 %v4640
  %6776 = vmatpush.bf16.msra.mxu0 %v4627
  %6777 = vmatpush.bf16.msra.mxu0 %v4614
  %6778 = vmatmul.bf16.gmra.mxu0 %v1186
  %v6779 = vpop.f32.mrf.mxu0
  %v6780 = vadd.f32 %v6767, %v6779
  %v6781 = vpop.f32.mrf.mxu0
  %6782 = vdwg.mxu0
  %6783 = vmatpush.bf16.msra.mxu0 %v4809
  %6784 = vmatpush.bf16.msra.mxu0 %v4796
  %6785 = vmatpush.bf16.msra.mxu0 %v4783
  %6786 = vmatpush.bf16.msra.mxu0 %v4770
  %6787 = vmatpush.bf16.msra.mxu0 %v4757
  %6788 = vmatpush.bf16.msra.mxu0 %v4744
  %6789 = vmatpush.bf16.msra.mxu0 %v4731
  %6790 = vmatpush.bf16.msra.mxu0 %v4718
  %6791 = vmatmul.bf16.gmra.mxu0 %v1187
  %v6792 = vpop.f32.mrf.mxu0
  %v6793 = vadd.f32 %v6780, %v6792
  %v6794 = vpop.f32.mrf.mxu0
  %6795 = vdwg.mxu0
  %6796 = vmatpush.bf16.msra.mxu0 %v4913
  %6797 = vmatpush.bf16.msra.mxu0 %v4900
  %6798 = vmatpush.bf16.msra.mxu0 %v4887
  %6799 = vmatpush.bf16.msra.mxu0 %v4874
  %6800 = vmatpush.bf16.msra.mxu0 %v4861
  %6801 = vmatpush.bf16.msra.mxu0 %v4848
  %6802 = vmatpush.bf16.msra.mxu0 %v4835
  %6803 = vmatpush.bf16.msra.mxu0 %v4822
  %6804 = vmatmul.bf16.gmra.mxu0 %v1188
  %v6805 = vpop.f32.mrf.mxu0
  %v6806 = vadd.f32 %v6793, %v6805
  %v6807 = vpop.f32.mrf.mxu0
  %6808 = vdwg.mxu0
  %6809 = vmatpush.bf16.msra.mxu0 %v5017
  %6810 = vmatpush.bf16.msra.mxu0 %v5004
  %6811 = vmatpush.bf16.msra.mxu0 %v4991
  %6812 = vmatpush.bf16.msra.mxu0 %v4978
  %6813 = vmatpush.bf16.msra.mxu0 %v4965
  %6814 = vmatpush.bf16.msra.mxu0 %v4952
  %6815 = vmatpush.bf16.msra.mxu0 %v4939
  %6816 = vmatpush.bf16.msra.mxu0 %v4926
  %6817 = vmatmul.bf16.gmra.mxu0 %v1189
  %v6818 = vpop.f32.mrf.mxu0
  %v6819 = vadd.f32 %v6806, %v6818
  %v6820 = vpop.f32.mrf.mxu0
  %6821 = vdwg.mxu0
  %6822 = vmatpush.bf16.msra.mxu0 %v5121
  %6823 = vmatpush.bf16.msra.mxu0 %v5108
  %6824 = vmatpush.bf16.msra.mxu0 %v5095
  %6825 = vmatpush.bf16.msra.mxu0 %v5082
  %6826 = vmatpush.bf16.msra.mxu0 %v5069
  %6827 = vmatpush.bf16.msra.mxu0 %v5056
  %6828 = vmatpush.bf16.msra.mxu0 %v5043
  %6829 = vmatpush.bf16.msra.mxu0 %v5030
  %6830 = vmatmul.bf16.gmra.mxu0 %v1190
  %v6831 = vpop.f32.mrf.mxu0
  %v6832 = vadd.f32 %v6819, %v6831
  %v6833 = vpop.f32.mrf.mxu0
  %6834 = vdwg.mxu0
  %6835 = vmatpush.bf16.msra.mxu0 %v5225
  %6836 = vmatpush.bf16.msra.mxu0 %v5212
  %6837 = vmatpush.bf16.msra.mxu0 %v5199
  %6838 = vmatpush.bf16.msra.mxu0 %v5186
  %6839 = vmatpush.bf16.msra.mxu0 %v5173
  %6840 = vmatpush.bf16.msra.mxu0 %v5160
  %6841 = vmatpush.bf16.msra.mxu0 %v5147
  %6842 = vmatpush.bf16.msra.mxu0 %v5134
  %6843 = vmatmul.bf16.gmra.mxu0 %v1191
  %v6844 = vpop.f32.mrf.mxu0
  %v6845 = vadd.f32 %v6832, %v6844
  %v6846 = vpop.f32.mrf.mxu0
  %6847 = vdwg.mxu0
  %6848 = vmatpush.bf16.msra.mxu0 %v5329
  %6849 = vmatpush.bf16.msra.mxu0 %v5316
  %6850 = vmatpush.bf16.msra.mxu0 %v5303
  %6851 = vmatpush.bf16.msra.mxu0 %v5290
  %6852 = vmatpush.bf16.msra.mxu0 %v5277
  %6853 = vmatpush.bf16.msra.mxu0 %v5264
  %6854 = vmatpush.bf16.msra.mxu0 %v5251
  %6855 = vmatpush.bf16.msra.mxu0 %v5238
  %6856 = vmatmul.bf16.gmra.mxu0 %v1192
  %v6857 = vpop.f32.mrf.mxu0
  %v6858 = vadd.f32 %v6845, %v6857
  %v6859 = vpop.f32.mrf.mxu0
  %6860 = vdwg.mxu0
  %6861 = vmatpush.bf16.msra.mxu0 %v5433
  %6862 = vmatpush.bf16.msra.mxu0 %v5420
  %6863 = vmatpush.bf16.msra.mxu0 %v5407
  %6864 = vmatpush.bf16.msra.mxu0 %v5394
  %6865 = vmatpush.bf16.msra.mxu0 %v5381
  %6866 = vmatpush.bf16.msra.mxu0 %v5368
  %6867 = vmatpush.bf16.msra.mxu0 %v5355
  %6868 = vmatpush.bf16.msra.mxu0 %v5342
  %6869 = vmatmul.bf16.gmra.mxu0 %v1193
  %v6870 = vpop.f32.mrf.mxu0
  %v6871 = vadd.f32 %v6858, %v6870
  %v6872 = vpop.f32.mrf.mxu0
  %6873 = vdwg.mxu0
  %6874 = vmatpush.bf16.msra.mxu0 %v4498
  %6875 = vmatpush.bf16.msra.mxu0 %v4485
  %6876 = vmatpush.bf16.msra.mxu0 %v4472
  %6877 = vmatpush.bf16.msra.mxu0 %v4459
  %6878 = vmatpush.bf16.msra.mxu0 %v4446
  %6879 = vmatpush.bf16.msra.mxu0 %v4433
  %6880 = vmatpush.bf16.msra.mxu0 %v4420
  %6881 = vmatpush.bf16.msra.mxu0 %v4407
  %6882 = vmatmul.bf16.gmra.mxu0 %v1184
  %v6883 = vpop.f32.mrf.mxu0
  %v6884 = vadd.f32 %v1146, %v6883
  %v6885 = vpop.f32.mrf.mxu0
  %6886 = vdwg.mxu0
  %6887 = vmatpush.bf16.msra.mxu0 %v4602
  %6888 = vmatpush.bf16.msra.mxu0 %v4589
  %6889 = vmatpush.bf16.msra.mxu0 %v4576
  %6890 = vmatpush.bf16.msra.mxu0 %v4563
  %6891 = vmatpush.bf16.msra.mxu0 %v4550
  %6892 = vmatpush.bf16.msra.mxu0 %v4537
  %6893 = vmatpush.bf16.msra.mxu0 %v4524
  %6894 = vmatpush.bf16.msra.mxu0 %v4511
  %6895 = vmatmul.bf16.gmra.mxu0 %v1185
  %v6896 = vpop.f32.mrf.mxu0
  %v6897 = vadd.f32 %v6884, %v6896
  %v6898 = vpop.f32.mrf.mxu0
  %6899 = vdwg.mxu0
  %6900 = vmatpush.bf16.msra.mxu0 %v4706
  %6901 = vmatpush.bf16.msra.mxu0 %v4693
  %6902 = vmatpush.bf16.msra.mxu0 %v4680
  %6903 = vmatpush.bf16.msra.mxu0 %v4667
  %6904 = vmatpush.bf16.msra.mxu0 %v4654
  %6905 = vmatpush.bf16.msra.mxu0 %v4641
  %6906 = vmatpush.bf16.msra.mxu0 %v4628
  %6907 = vmatpush.bf16.msra.mxu0 %v4615
  %6908 = vmatmul.bf16.gmra.mxu0 %v1186
  %v6909 = vpop.f32.mrf.mxu0
  %v6910 = vadd.f32 %v6897, %v6909
  %v6911 = vpop.f32.mrf.mxu0
  %6912 = vdwg.mxu0
  %6913 = vmatpush.bf16.msra.mxu0 %v4810
  %6914 = vmatpush.bf16.msra.mxu0 %v4797
  %6915 = vmatpush.bf16.msra.mxu0 %v4784
  %6916 = vmatpush.bf16.msra.mxu0 %v4771
  %6917 = vmatpush.bf16.msra.mxu0 %v4758
  %6918 = vmatpush.bf16.msra.mxu0 %v4745
  %6919 = vmatpush.bf16.msra.mxu0 %v4732
  %6920 = vmatpush.bf16.msra.mxu0 %v4719
  %6921 = vmatmul.bf16.gmra.mxu0 %v1187
  %v6922 = vpop.f32.mrf.mxu0
  %v6923 = vadd.f32 %v6910, %v6922
  %v6924 = vpop.f32.mrf.mxu0
  %6925 = vdwg.mxu0
  %6926 = vmatpush.bf16.msra.mxu0 %v4914
  %6927 = vmatpush.bf16.msra.mxu0 %v4901
  %6928 = vmatpush.bf16.msra.mxu0 %v4888
  %6929 = vmatpush.bf16.msra.mxu0 %v4875
  %6930 = vmatpush.bf16.msra.mxu0 %v4862
  %6931 = vmatpush.bf16.msra.mxu0 %v4849
  %6932 = vmatpush.bf16.msra.mxu0 %v4836
  %6933 = vmatpush.bf16.msra.mxu0 %v4823
  %6934 = vmatmul.bf16.gmra.mxu0 %v1188
  %v6935 = vpop.f32.mrf.mxu0
  %v6936 = vadd.f32 %v6923, %v6935
  %v6937 = vpop.f32.mrf.mxu0
  %6938 = vdwg.mxu0
  %6939 = vmatpush.bf16.msra.mxu0 %v5018
  %6940 = vmatpush.bf16.msra.mxu0 %v5005
  %6941 = vmatpush.bf16.msra.mxu0 %v4992
  %6942 = vmatpush.bf16.msra.mxu0 %v4979
  %6943 = vmatpush.bf16.msra.mxu0 %v4966
  %6944 = vmatpush.bf16.msra.mxu0 %v4953
  %6945 = vmatpush.bf16.msra.mxu0 %v4940
  %6946 = vmatpush.bf16.msra.mxu0 %v4927
  %6947 = vmatmul.bf16.gmra.mxu0 %v1189
  %v6948 = vpop.f32.mrf.mxu0
  %v6949 = vadd.f32 %v6936, %v6948
  %v6950 = vpop.f32.mrf.mxu0
  %6951 = vdwg.mxu0
  %6952 = vmatpush.bf16.msra.mxu0 %v5122
  %6953 = vmatpush.bf16.msra.mxu0 %v5109
  %6954 = vmatpush.bf16.msra.mxu0 %v5096
  %6955 = vmatpush.bf16.msra.mxu0 %v5083
  %6956 = vmatpush.bf16.msra.mxu0 %v5070
  %6957 = vmatpush.bf16.msra.mxu0 %v5057
  %6958 = vmatpush.bf16.msra.mxu0 %v5044
  %6959 = vmatpush.bf16.msra.mxu0 %v5031
  %6960 = vmatmul.bf16.gmra.mxu0 %v1190
  %v6961 = vpop.f32.mrf.mxu0
  %v6962 = vadd.f32 %v6949, %v6961
  %v6963 = vpop.f32.mrf.mxu0
  %6964 = vdwg.mxu0
  %6965 = vmatpush.bf16.msra.mxu0 %v5226
  %6966 = vmatpush.bf16.msra.mxu0 %v5213
  %6967 = vmatpush.bf16.msra.mxu0 %v5200
  %6968 = vmatpush.bf16.msra.mxu0 %v5187
  %6969 = vmatpush.bf16.msra.mxu0 %v5174
  %6970 = vmatpush.bf16.msra.mxu0 %v5161
  %6971 = vmatpush.bf16.msra.mxu0 %v5148
  %6972 = vmatpush.bf16.msra.mxu0 %v5135
  %6973 = vmatmul.bf16.gmra.mxu0 %v1191
  %v6974 = vpop.f32.mrf.mxu0
  %v6975 = vadd.f32 %v6962, %v6974
  %v6976 = vpop.f32.mrf.mxu0
  %6977 = vdwg.mxu0
  %6978 = vmatpush.bf16.msra.mxu0 %v5330
  %6979 = vmatpush.bf16.msra.mxu0 %v5317
  %6980 = vmatpush.bf16.msra.mxu0 %v5304
  %6981 = vmatpush.bf16.msra.mxu0 %v5291
  %6982 = vmatpush.bf16.msra.mxu0 %v5278
  %6983 = vmatpush.bf16.msra.mxu0 %v5265
  %6984 = vmatpush.bf16.msra.mxu0 %v5252
  %6985 = vmatpush.bf16.msra.mxu0 %v5239
  %6986 = vmatmul.bf16.gmra.mxu0 %v1192
  %v6987 = vpop.f32.mrf.mxu0
  %v6988 = vadd.f32 %v6975, %v6987
  %v6989 = vpop.f32.mrf.mxu0
  %6990 = vdwg.mxu0
  %6991 = vmatpush.bf16.msra.mxu0 %v5434
  %6992 = vmatpush.bf16.msra.mxu0 %v5421
  %6993 = vmatpush.bf16.msra.mxu0 %v5408
  %6994 = vmatpush.bf16.msra.mxu0 %v5395
  %6995 = vmatpush.bf16.msra.mxu0 %v5382
  %6996 = vmatpush.bf16.msra.mxu0 %v5369
  %6997 = vmatpush.bf16.msra.mxu0 %v5356
  %6998 = vmatpush.bf16.msra.mxu0 %v5343
  %6999 = vmatmul.bf16.gmra.mxu0 %v1193
  %v7000 = vpop.f32.mrf.mxu0
  %v7001 = vadd.f32 %v6988, %v7000
  %v7002 = vpop.f32.mrf.mxu0
  %7003 = vdwg.mxu0
  %7004 = vmatpush.bf16.msra.mxu0 %v4499
  %7005 = vmatpush.bf16.msra.mxu0 %v4486
  %7006 = vmatpush.bf16.msra.mxu0 %v4473
  %7007 = vmatpush.bf16.msra.mxu0 %v4460
  %7008 = vmatpush.bf16.msra.mxu0 %v4447
  %7009 = vmatpush.bf16.msra.mxu0 %v4434
  %7010 = vmatpush.bf16.msra.mxu0 %v4421
  %7011 = vmatpush.bf16.msra.mxu0 %v4408
  %7012 = vmatmul.bf16.gmra.mxu0 %v1184
  %v7013 = vpop.f32.mrf.mxu0
  %v7014 = vadd.f32 %v1147, %v7013
  %v7015 = vpop.f32.mrf.mxu0
  %7016 = vdwg.mxu0
  %7017 = vmatpush.bf16.msra.mxu0 %v4603
  %7018 = vmatpush.bf16.msra.mxu0 %v4590
  %7019 = vmatpush.bf16.msra.mxu0 %v4577
  %7020 = vmatpush.bf16.msra.mxu0 %v4564
  %7021 = vmatpush.bf16.msra.mxu0 %v4551
  %7022 = vmatpush.bf16.msra.mxu0 %v4538
  %7023 = vmatpush.bf16.msra.mxu0 %v4525
  %7024 = vmatpush.bf16.msra.mxu0 %v4512
  %7025 = vmatmul.bf16.gmra.mxu0 %v1185
  %v7026 = vpop.f32.mrf.mxu0
  %v7027 = vadd.f32 %v7014, %v7026
  %v7028 = vpop.f32.mrf.mxu0
  %7029 = vdwg.mxu0
  %7030 = vmatpush.bf16.msra.mxu0 %v4707
  %7031 = vmatpush.bf16.msra.mxu0 %v4694
  %7032 = vmatpush.bf16.msra.mxu0 %v4681
  %7033 = vmatpush.bf16.msra.mxu0 %v4668
  %7034 = vmatpush.bf16.msra.mxu0 %v4655
  %7035 = vmatpush.bf16.msra.mxu0 %v4642
  %7036 = vmatpush.bf16.msra.mxu0 %v4629
  %7037 = vmatpush.bf16.msra.mxu0 %v4616
  %7038 = vmatmul.bf16.gmra.mxu0 %v1186
  %v7039 = vpop.f32.mrf.mxu0
  %v7040 = vadd.f32 %v7027, %v7039
  %v7041 = vpop.f32.mrf.mxu0
  %7042 = vdwg.mxu0
  %7043 = vmatpush.bf16.msra.mxu0 %v4811
  %7044 = vmatpush.bf16.msra.mxu0 %v4798
  %7045 = vmatpush.bf16.msra.mxu0 %v4785
  %7046 = vmatpush.bf16.msra.mxu0 %v4772
  %7047 = vmatpush.bf16.msra.mxu0 %v4759
  %7048 = vmatpush.bf16.msra.mxu0 %v4746
  %7049 = vmatpush.bf16.msra.mxu0 %v4733
  %7050 = vmatpush.bf16.msra.mxu0 %v4720
  %7051 = vmatmul.bf16.gmra.mxu0 %v1187
  %v7052 = vpop.f32.mrf.mxu0
  %v7053 = vadd.f32 %v7040, %v7052
  %v7054 = vpop.f32.mrf.mxu0
  %7055 = vdwg.mxu0
  %7056 = vmatpush.bf16.msra.mxu0 %v4915
  %7057 = vmatpush.bf16.msra.mxu0 %v4902
  %7058 = vmatpush.bf16.msra.mxu0 %v4889
  %7059 = vmatpush.bf16.msra.mxu0 %v4876
  %7060 = vmatpush.bf16.msra.mxu0 %v4863
  %7061 = vmatpush.bf16.msra.mxu0 %v4850
  %7062 = vmatpush.bf16.msra.mxu0 %v4837
  %7063 = vmatpush.bf16.msra.mxu0 %v4824
  %7064 = vmatmul.bf16.gmra.mxu0 %v1188
  %v7065 = vpop.f32.mrf.mxu0
  %v7066 = vadd.f32 %v7053, %v7065
  %v7067 = vpop.f32.mrf.mxu0
  %7068 = vdwg.mxu0
  %7069 = vmatpush.bf16.msra.mxu0 %v5019
  %7070 = vmatpush.bf16.msra.mxu0 %v5006
  %7071 = vmatpush.bf16.msra.mxu0 %v4993
  %7072 = vmatpush.bf16.msra.mxu0 %v4980
  %7073 = vmatpush.bf16.msra.mxu0 %v4967
  %7074 = vmatpush.bf16.msra.mxu0 %v4954
  %7075 = vmatpush.bf16.msra.mxu0 %v4941
  %7076 = vmatpush.bf16.msra.mxu0 %v4928
  %7077 = vmatmul.bf16.gmra.mxu0 %v1189
  %v7078 = vpop.f32.mrf.mxu0
  %v7079 = vadd.f32 %v7066, %v7078
  %v7080 = vpop.f32.mrf.mxu0
  %7081 = vdwg.mxu0
  %7082 = vmatpush.bf16.msra.mxu0 %v5123
  %7083 = vmatpush.bf16.msra.mxu0 %v5110
  %7084 = vmatpush.bf16.msra.mxu0 %v5097
  %7085 = vmatpush.bf16.msra.mxu0 %v5084
  %7086 = vmatpush.bf16.msra.mxu0 %v5071
  %7087 = vmatpush.bf16.msra.mxu0 %v5058
  %7088 = vmatpush.bf16.msra.mxu0 %v5045
  %7089 = vmatpush.bf16.msra.mxu0 %v5032
  %7090 = vmatmul.bf16.gmra.mxu0 %v1190
  %v7091 = vpop.f32.mrf.mxu0
  %v7092 = vadd.f32 %v7079, %v7091
  %v7093 = vpop.f32.mrf.mxu0
  %7094 = vdwg.mxu0
  %7095 = vmatpush.bf16.msra.mxu0 %v5227
  %7096 = vmatpush.bf16.msra.mxu0 %v5214
  %7097 = vmatpush.bf16.msra.mxu0 %v5201
  %7098 = vmatpush.bf16.msra.mxu0 %v5188
  %7099 = vmatpush.bf16.msra.mxu0 %v5175
  %7100 = vmatpush.bf16.msra.mxu0 %v5162
  %7101 = vmatpush.bf16.msra.mxu0 %v5149
  %7102 = vmatpush.bf16.msra.mxu0 %v5136
  %7103 = vmatmul.bf16.gmra.mxu0 %v1191
  %v7104 = vpop.f32.mrf.mxu0
  %v7105 = vadd.f32 %v7092, %v7104
  %v7106 = vpop.f32.mrf.mxu0
  %7107 = vdwg.mxu0
  %7108 = vmatpush.bf16.msra.mxu0 %v5331
  %7109 = vmatpush.bf16.msra.mxu0 %v5318
  %7110 = vmatpush.bf16.msra.mxu0 %v5305
  %7111 = vmatpush.bf16.msra.mxu0 %v5292
  %7112 = vmatpush.bf16.msra.mxu0 %v5279
  %7113 = vmatpush.bf16.msra.mxu0 %v5266
  %7114 = vmatpush.bf16.msra.mxu0 %v5253
  %7115 = vmatpush.bf16.msra.mxu0 %v5240
  %7116 = vmatmul.bf16.gmra.mxu0 %v1192
  %v7117 = vpop.f32.mrf.mxu0
  %v7118 = vadd.f32 %v7105, %v7117
  %v7119 = vpop.f32.mrf.mxu0
  %7120 = vdwg.mxu0
  %7121 = vmatpush.bf16.msra.mxu0 %v5435
  %7122 = vmatpush.bf16.msra.mxu0 %v5422
  %7123 = vmatpush.bf16.msra.mxu0 %v5409
  %7124 = vmatpush.bf16.msra.mxu0 %v5396
  %7125 = vmatpush.bf16.msra.mxu0 %v5383
  %7126 = vmatpush.bf16.msra.mxu0 %v5370
  %7127 = vmatpush.bf16.msra.mxu0 %v5357
  %7128 = vmatpush.bf16.msra.mxu0 %v5344
  %7129 = vmatmul.bf16.gmra.mxu0 %v1193
  %v7130 = vpop.f32.mrf.mxu0
  %v7131 = vadd.f32 %v7118, %v7130
  %v7132 = vpop.f32.mrf.mxu0
  %7133 = vdwg.mxu0
  %7134 = vmatpush.bf16.msra.mxu0 %v4500
  %7135 = vmatpush.bf16.msra.mxu0 %v4487
  %7136 = vmatpush.bf16.msra.mxu0 %v4474
  %7137 = vmatpush.bf16.msra.mxu0 %v4461
  %7138 = vmatpush.bf16.msra.mxu0 %v4448
  %7139 = vmatpush.bf16.msra.mxu0 %v4435
  %7140 = vmatpush.bf16.msra.mxu0 %v4422
  %7141 = vmatpush.bf16.msra.mxu0 %v4409
  %7142 = vmatmul.bf16.gmra.mxu0 %v1184
  %v7143 = vpop.f32.mrf.mxu0
  %v7144 = vadd.f32 %v1148, %v7143
  %v7145 = vpop.f32.mrf.mxu0
  %7146 = vdwg.mxu0
  %7147 = vmatpush.bf16.msra.mxu0 %v4604
  %7148 = vmatpush.bf16.msra.mxu0 %v4591
  %7149 = vmatpush.bf16.msra.mxu0 %v4578
  %7150 = vmatpush.bf16.msra.mxu0 %v4565
  %7151 = vmatpush.bf16.msra.mxu0 %v4552
  %7152 = vmatpush.bf16.msra.mxu0 %v4539
  %7153 = vmatpush.bf16.msra.mxu0 %v4526
  %7154 = vmatpush.bf16.msra.mxu0 %v4513
  %7155 = vmatmul.bf16.gmra.mxu0 %v1185
  %v7156 = vpop.f32.mrf.mxu0
  %v7157 = vadd.f32 %v7144, %v7156
  %v7158 = vpop.f32.mrf.mxu0
  %7159 = vdwg.mxu0
  %7160 = vmatpush.bf16.msra.mxu0 %v4708
  %7161 = vmatpush.bf16.msra.mxu0 %v4695
  %7162 = vmatpush.bf16.msra.mxu0 %v4682
  %7163 = vmatpush.bf16.msra.mxu0 %v4669
  %7164 = vmatpush.bf16.msra.mxu0 %v4656
  %7165 = vmatpush.bf16.msra.mxu0 %v4643
  %7166 = vmatpush.bf16.msra.mxu0 %v4630
  %7167 = vmatpush.bf16.msra.mxu0 %v4617
  %7168 = vmatmul.bf16.gmra.mxu0 %v1186
  %v7169 = vpop.f32.mrf.mxu0
  %v7170 = vadd.f32 %v7157, %v7169
  %v7171 = vpop.f32.mrf.mxu0
  %7172 = vdwg.mxu0
  %7173 = vmatpush.bf16.msra.mxu0 %v4812
  %7174 = vmatpush.bf16.msra.mxu0 %v4799
  %7175 = vmatpush.bf16.msra.mxu0 %v4786
  %7176 = vmatpush.bf16.msra.mxu0 %v4773
  %7177 = vmatpush.bf16.msra.mxu0 %v4760
  %7178 = vmatpush.bf16.msra.mxu0 %v4747
  %7179 = vmatpush.bf16.msra.mxu0 %v4734
  %7180 = vmatpush.bf16.msra.mxu0 %v4721
  %7181 = vmatmul.bf16.gmra.mxu0 %v1187
  %v7182 = vpop.f32.mrf.mxu0
  %v7183 = vadd.f32 %v7170, %v7182
  %v7184 = vpop.f32.mrf.mxu0
  %7185 = vdwg.mxu0
  %7186 = vmatpush.bf16.msra.mxu0 %v4916
  %7187 = vmatpush.bf16.msra.mxu0 %v4903
  %7188 = vmatpush.bf16.msra.mxu0 %v4890
  %7189 = vmatpush.bf16.msra.mxu0 %v4877
  %7190 = vmatpush.bf16.msra.mxu0 %v4864
  %7191 = vmatpush.bf16.msra.mxu0 %v4851
  %7192 = vmatpush.bf16.msra.mxu0 %v4838
  %7193 = vmatpush.bf16.msra.mxu0 %v4825
  %7194 = vmatmul.bf16.gmra.mxu0 %v1188
  %v7195 = vpop.f32.mrf.mxu0
  %v7196 = vadd.f32 %v7183, %v7195
  %v7197 = vpop.f32.mrf.mxu0
  %7198 = vdwg.mxu0
  %7199 = vmatpush.bf16.msra.mxu0 %v5020
  %7200 = vmatpush.bf16.msra.mxu0 %v5007
  %7201 = vmatpush.bf16.msra.mxu0 %v4994
  %7202 = vmatpush.bf16.msra.mxu0 %v4981
  %7203 = vmatpush.bf16.msra.mxu0 %v4968
  %7204 = vmatpush.bf16.msra.mxu0 %v4955
  %7205 = vmatpush.bf16.msra.mxu0 %v4942
  %7206 = vmatpush.bf16.msra.mxu0 %v4929
  %7207 = vmatmul.bf16.gmra.mxu0 %v1189
  %v7208 = vpop.f32.mrf.mxu0
  %v7209 = vadd.f32 %v7196, %v7208
  %v7210 = vpop.f32.mrf.mxu0
  %7211 = vdwg.mxu0
  %7212 = vmatpush.bf16.msra.mxu0 %v5124
  %7213 = vmatpush.bf16.msra.mxu0 %v5111
  %7214 = vmatpush.bf16.msra.mxu0 %v5098
  %7215 = vmatpush.bf16.msra.mxu0 %v5085
  %7216 = vmatpush.bf16.msra.mxu0 %v5072
  %7217 = vmatpush.bf16.msra.mxu0 %v5059
  %7218 = vmatpush.bf16.msra.mxu0 %v5046
  %7219 = vmatpush.bf16.msra.mxu0 %v5033
  %7220 = vmatmul.bf16.gmra.mxu0 %v1190
  %v7221 = vpop.f32.mrf.mxu0
  %v7222 = vadd.f32 %v7209, %v7221
  %v7223 = vpop.f32.mrf.mxu0
  %7224 = vdwg.mxu0
  %7225 = vmatpush.bf16.msra.mxu0 %v5228
  %7226 = vmatpush.bf16.msra.mxu0 %v5215
  %7227 = vmatpush.bf16.msra.mxu0 %v5202
  %7228 = vmatpush.bf16.msra.mxu0 %v5189
  %7229 = vmatpush.bf16.msra.mxu0 %v5176
  %7230 = vmatpush.bf16.msra.mxu0 %v5163
  %7231 = vmatpush.bf16.msra.mxu0 %v5150
  %7232 = vmatpush.bf16.msra.mxu0 %v5137
  %7233 = vmatmul.bf16.gmra.mxu0 %v1191
  %v7234 = vpop.f32.mrf.mxu0
  %v7235 = vadd.f32 %v7222, %v7234
  %v7236 = vpop.f32.mrf.mxu0
  %7237 = vdwg.mxu0
  %7238 = vmatpush.bf16.msra.mxu0 %v5332
  %7239 = vmatpush.bf16.msra.mxu0 %v5319
  %7240 = vmatpush.bf16.msra.mxu0 %v5306
  %7241 = vmatpush.bf16.msra.mxu0 %v5293
  %7242 = vmatpush.bf16.msra.mxu0 %v5280
  %7243 = vmatpush.bf16.msra.mxu0 %v5267
  %7244 = vmatpush.bf16.msra.mxu0 %v5254
  %7245 = vmatpush.bf16.msra.mxu0 %v5241
  %7246 = vmatmul.bf16.gmra.mxu0 %v1192
  %v7247 = vpop.f32.mrf.mxu0
  %v7248 = vadd.f32 %v7235, %v7247
  %v7249 = vpop.f32.mrf.mxu0
  %7250 = vdwg.mxu0
  %7251 = vmatpush.bf16.msra.mxu0 %v5436
  %7252 = vmatpush.bf16.msra.mxu0 %v5423
  %7253 = vmatpush.bf16.msra.mxu0 %v5410
  %7254 = vmatpush.bf16.msra.mxu0 %v5397
  %7255 = vmatpush.bf16.msra.mxu0 %v5384
  %7256 = vmatpush.bf16.msra.mxu0 %v5371
  %7257 = vmatpush.bf16.msra.mxu0 %v5358
  %7258 = vmatpush.bf16.msra.mxu0 %v5345
  %7259 = vmatmul.bf16.gmra.mxu0 %v1193
  %v7260 = vpop.f32.mrf.mxu0
  %v7261 = vadd.f32 %v7248, %v7260
  %v7262 = vpop.f32.mrf.mxu0
  %7263 = vdwg.mxu0
  %7264 = vmatpush.bf16.msra.mxu0 %v4501
  %7265 = vmatpush.bf16.msra.mxu0 %v4488
  %7266 = vmatpush.bf16.msra.mxu0 %v4475
  %7267 = vmatpush.bf16.msra.mxu0 %v4462
  %7268 = vmatpush.bf16.msra.mxu0 %v4449
  %7269 = vmatpush.bf16.msra.mxu0 %v4436
  %7270 = vmatpush.bf16.msra.mxu0 %v4423
  %7271 = vmatpush.bf16.msra.mxu0 %v4410
  %7272 = vmatmul.bf16.gmra.mxu0 %v1184
  %v7273 = vpop.f32.mrf.mxu0
  %v7274 = vadd.f32 %v1149, %v7273
  %v7275 = vpop.f32.mrf.mxu0
  %7276 = vdwg.mxu0
  %7277 = vmatpush.bf16.msra.mxu0 %v4605
  %7278 = vmatpush.bf16.msra.mxu0 %v4592
  %7279 = vmatpush.bf16.msra.mxu0 %v4579
  %7280 = vmatpush.bf16.msra.mxu0 %v4566
  %7281 = vmatpush.bf16.msra.mxu0 %v4553
  %7282 = vmatpush.bf16.msra.mxu0 %v4540
  %7283 = vmatpush.bf16.msra.mxu0 %v4527
  %7284 = vmatpush.bf16.msra.mxu0 %v4514
  %7285 = vmatmul.bf16.gmra.mxu0 %v1185
  %v7286 = vpop.f32.mrf.mxu0
  %v7287 = vadd.f32 %v7274, %v7286
  %v7288 = vpop.f32.mrf.mxu0
  %7289 = vdwg.mxu0
  %7290 = vmatpush.bf16.msra.mxu0 %v4709
  %7291 = vmatpush.bf16.msra.mxu0 %v4696
  %7292 = vmatpush.bf16.msra.mxu0 %v4683
  %7293 = vmatpush.bf16.msra.mxu0 %v4670
  %7294 = vmatpush.bf16.msra.mxu0 %v4657
  %7295 = vmatpush.bf16.msra.mxu0 %v4644
  %7296 = vmatpush.bf16.msra.mxu0 %v4631
  %7297 = vmatpush.bf16.msra.mxu0 %v4618
  %7298 = vmatmul.bf16.gmra.mxu0 %v1186
  %v7299 = vpop.f32.mrf.mxu0
  %v7300 = vadd.f32 %v7287, %v7299
  %v7301 = vpop.f32.mrf.mxu0
  %7302 = vdwg.mxu0
  %7303 = vmatpush.bf16.msra.mxu0 %v4813
  %7304 = vmatpush.bf16.msra.mxu0 %v4800
  %7305 = vmatpush.bf16.msra.mxu0 %v4787
  %7306 = vmatpush.bf16.msra.mxu0 %v4774
  %7307 = vmatpush.bf16.msra.mxu0 %v4761
  %7308 = vmatpush.bf16.msra.mxu0 %v4748
  %7309 = vmatpush.bf16.msra.mxu0 %v4735
  %7310 = vmatpush.bf16.msra.mxu0 %v4722
  %7311 = vmatmul.bf16.gmra.mxu0 %v1187
  %v7312 = vpop.f32.mrf.mxu0
  %v7313 = vadd.f32 %v7300, %v7312
  %v7314 = vpop.f32.mrf.mxu0
  %7315 = vdwg.mxu0
  %7316 = vmatpush.bf16.msra.mxu0 %v4917
  %7317 = vmatpush.bf16.msra.mxu0 %v4904
  %7318 = vmatpush.bf16.msra.mxu0 %v4891
  %7319 = vmatpush.bf16.msra.mxu0 %v4878
  %7320 = vmatpush.bf16.msra.mxu0 %v4865
  %7321 = vmatpush.bf16.msra.mxu0 %v4852
  %7322 = vmatpush.bf16.msra.mxu0 %v4839
  %7323 = vmatpush.bf16.msra.mxu0 %v4826
  %7324 = vmatmul.bf16.gmra.mxu0 %v1188
  %v7325 = vpop.f32.mrf.mxu0
  %v7326 = vadd.f32 %v7313, %v7325
  %v7327 = vpop.f32.mrf.mxu0
  %7328 = vdwg.mxu0
  %7329 = vmatpush.bf16.msra.mxu0 %v5021
  %7330 = vmatpush.bf16.msra.mxu0 %v5008
  %7331 = vmatpush.bf16.msra.mxu0 %v4995
  %7332 = vmatpush.bf16.msra.mxu0 %v4982
  %7333 = vmatpush.bf16.msra.mxu0 %v4969
  %7334 = vmatpush.bf16.msra.mxu0 %v4956
  %7335 = vmatpush.bf16.msra.mxu0 %v4943
  %7336 = vmatpush.bf16.msra.mxu0 %v4930
  %7337 = vmatmul.bf16.gmra.mxu0 %v1189
  %v7338 = vpop.f32.mrf.mxu0
  %v7339 = vadd.f32 %v7326, %v7338
  %v7340 = vpop.f32.mrf.mxu0
  %7341 = vdwg.mxu0
  %7342 = vmatpush.bf16.msra.mxu0 %v5125
  %7343 = vmatpush.bf16.msra.mxu0 %v5112
  %7344 = vmatpush.bf16.msra.mxu0 %v5099
  %7345 = vmatpush.bf16.msra.mxu0 %v5086
  %7346 = vmatpush.bf16.msra.mxu0 %v5073
  %7347 = vmatpush.bf16.msra.mxu0 %v5060
  %7348 = vmatpush.bf16.msra.mxu0 %v5047
  %7349 = vmatpush.bf16.msra.mxu0 %v5034
  %7350 = vmatmul.bf16.gmra.mxu0 %v1190
  %v7351 = vpop.f32.mrf.mxu0
  %v7352 = vadd.f32 %v7339, %v7351
  %v7353 = vpop.f32.mrf.mxu0
  %7354 = vdwg.mxu0
  %7355 = vmatpush.bf16.msra.mxu0 %v5229
  %7356 = vmatpush.bf16.msra.mxu0 %v5216
  %7357 = vmatpush.bf16.msra.mxu0 %v5203
  %7358 = vmatpush.bf16.msra.mxu0 %v5190
  %7359 = vmatpush.bf16.msra.mxu0 %v5177
  %7360 = vmatpush.bf16.msra.mxu0 %v5164
  %7361 = vmatpush.bf16.msra.mxu0 %v5151
  %7362 = vmatpush.bf16.msra.mxu0 %v5138
  %7363 = vmatmul.bf16.gmra.mxu0 %v1191
  %v7364 = vpop.f32.mrf.mxu0
  %v7365 = vadd.f32 %v7352, %v7364
  %v7366 = vpop.f32.mrf.mxu0
  %7367 = vdwg.mxu0
  %7368 = vmatpush.bf16.msra.mxu0 %v5333
  %7369 = vmatpush.bf16.msra.mxu0 %v5320
  %7370 = vmatpush.bf16.msra.mxu0 %v5307
  %7371 = vmatpush.bf16.msra.mxu0 %v5294
  %7372 = vmatpush.bf16.msra.mxu0 %v5281
  %7373 = vmatpush.bf16.msra.mxu0 %v5268
  %7374 = vmatpush.bf16.msra.mxu0 %v5255
  %7375 = vmatpush.bf16.msra.mxu0 %v5242
  %7376 = vmatmul.bf16.gmra.mxu0 %v1192
  %v7377 = vpop.f32.mrf.mxu0
  %v7378 = vadd.f32 %v7365, %v7377
  %v7379 = vpop.f32.mrf.mxu0
  %7380 = vdwg.mxu0
  %7381 = vmatpush.bf16.msra.mxu0 %v5437
  %7382 = vmatpush.bf16.msra.mxu0 %v5424
  %7383 = vmatpush.bf16.msra.mxu0 %v5411
  %7384 = vmatpush.bf16.msra.mxu0 %v5398
  %7385 = vmatpush.bf16.msra.mxu0 %v5385
  %7386 = vmatpush.bf16.msra.mxu0 %v5372
  %7387 = vmatpush.bf16.msra.mxu0 %v5359
  %7388 = vmatpush.bf16.msra.mxu0 %v5346
  %7389 = vmatmul.bf16.gmra.mxu0 %v1193
  %v7390 = vpop.f32.mrf.mxu0
  %v7391 = vadd.f32 %v7378, %v7390
  %v7392 = vpop.f32.mrf.mxu0
  %7393 = vdwg.mxu0
  %7394 = vmatpush.bf16.msra.mxu0 %v4502
  %7395 = vmatpush.bf16.msra.mxu0 %v4489
  %7396 = vmatpush.bf16.msra.mxu0 %v4476
  %7397 = vmatpush.bf16.msra.mxu0 %v4463
  %7398 = vmatpush.bf16.msra.mxu0 %v4450
  %7399 = vmatpush.bf16.msra.mxu0 %v4437
  %7400 = vmatpush.bf16.msra.mxu0 %v4424
  %7401 = vmatpush.bf16.msra.mxu0 %v4411
  %7402 = vmatmul.bf16.gmra.mxu0 %v1184
  %v7403 = vpop.f32.mrf.mxu0
  %v7404 = vadd.f32 %v1150, %v7403
  %v7405 = vpop.f32.mrf.mxu0
  %7406 = vdwg.mxu0
  %7407 = vmatpush.bf16.msra.mxu0 %v4606
  %7408 = vmatpush.bf16.msra.mxu0 %v4593
  %7409 = vmatpush.bf16.msra.mxu0 %v4580
  %7410 = vmatpush.bf16.msra.mxu0 %v4567
  %7411 = vmatpush.bf16.msra.mxu0 %v4554
  %7412 = vmatpush.bf16.msra.mxu0 %v4541
  %7413 = vmatpush.bf16.msra.mxu0 %v4528
  %7414 = vmatpush.bf16.msra.mxu0 %v4515
  %7415 = vmatmul.bf16.gmra.mxu0 %v1185
  %v7416 = vpop.f32.mrf.mxu0
  %v7417 = vadd.f32 %v7404, %v7416
  %v7418 = vpop.f32.mrf.mxu0
  %7419 = vdwg.mxu0
  %7420 = vmatpush.bf16.msra.mxu0 %v4710
  %7421 = vmatpush.bf16.msra.mxu0 %v4697
  %7422 = vmatpush.bf16.msra.mxu0 %v4684
  %7423 = vmatpush.bf16.msra.mxu0 %v4671
  %7424 = vmatpush.bf16.msra.mxu0 %v4658
  %7425 = vmatpush.bf16.msra.mxu0 %v4645
  %7426 = vmatpush.bf16.msra.mxu0 %v4632
  %7427 = vmatpush.bf16.msra.mxu0 %v4619
  %7428 = vmatmul.bf16.gmra.mxu0 %v1186
  %v7429 = vpop.f32.mrf.mxu0
  %v7430 = vadd.f32 %v7417, %v7429
  %v7431 = vpop.f32.mrf.mxu0
  %7432 = vdwg.mxu0
  %7433 = vmatpush.bf16.msra.mxu0 %v4814
  %7434 = vmatpush.bf16.msra.mxu0 %v4801
  %7435 = vmatpush.bf16.msra.mxu0 %v4788
  %7436 = vmatpush.bf16.msra.mxu0 %v4775
  %7437 = vmatpush.bf16.msra.mxu0 %v4762
  %7438 = vmatpush.bf16.msra.mxu0 %v4749
  %7439 = vmatpush.bf16.msra.mxu0 %v4736
  %7440 = vmatpush.bf16.msra.mxu0 %v4723
  %7441 = vmatmul.bf16.gmra.mxu0 %v1187
  %v7442 = vpop.f32.mrf.mxu0
  %v7443 = vadd.f32 %v7430, %v7442
  %v7444 = vpop.f32.mrf.mxu0
  %7445 = vdwg.mxu0
  %7446 = vmatpush.bf16.msra.mxu0 %v4918
  %7447 = vmatpush.bf16.msra.mxu0 %v4905
  %7448 = vmatpush.bf16.msra.mxu0 %v4892
  %7449 = vmatpush.bf16.msra.mxu0 %v4879
  %7450 = vmatpush.bf16.msra.mxu0 %v4866
  %7451 = vmatpush.bf16.msra.mxu0 %v4853
  %7452 = vmatpush.bf16.msra.mxu0 %v4840
  %7453 = vmatpush.bf16.msra.mxu0 %v4827
  %7454 = vmatmul.bf16.gmra.mxu0 %v1188
  %v7455 = vpop.f32.mrf.mxu0
  %v7456 = vadd.f32 %v7443, %v7455
  %v7457 = vpop.f32.mrf.mxu0
  %7458 = vdwg.mxu0
  %7459 = vmatpush.bf16.msra.mxu0 %v5022
  %7460 = vmatpush.bf16.msra.mxu0 %v5009
  %7461 = vmatpush.bf16.msra.mxu0 %v4996
  %7462 = vmatpush.bf16.msra.mxu0 %v4983
  %7463 = vmatpush.bf16.msra.mxu0 %v4970
  %7464 = vmatpush.bf16.msra.mxu0 %v4957
  %7465 = vmatpush.bf16.msra.mxu0 %v4944
  %7466 = vmatpush.bf16.msra.mxu0 %v4931
  %7467 = vmatmul.bf16.gmra.mxu0 %v1189
  %v7468 = vpop.f32.mrf.mxu0
  %v7469 = vadd.f32 %v7456, %v7468
  %v7470 = vpop.f32.mrf.mxu0
  %7471 = vdwg.mxu0
  %7472 = vmatpush.bf16.msra.mxu0 %v5126
  %7473 = vmatpush.bf16.msra.mxu0 %v5113
  %7474 = vmatpush.bf16.msra.mxu0 %v5100
  %7475 = vmatpush.bf16.msra.mxu0 %v5087
  %7476 = vmatpush.bf16.msra.mxu0 %v5074
  %7477 = vmatpush.bf16.msra.mxu0 %v5061
  %7478 = vmatpush.bf16.msra.mxu0 %v5048
  %7479 = vmatpush.bf16.msra.mxu0 %v5035
  %7480 = vmatmul.bf16.gmra.mxu0 %v1190
  %v7481 = vpop.f32.mrf.mxu0
  %v7482 = vadd.f32 %v7469, %v7481
  %v7483 = vpop.f32.mrf.mxu0
  %7484 = vdwg.mxu0
  %7485 = vmatpush.bf16.msra.mxu0 %v5230
  %7486 = vmatpush.bf16.msra.mxu0 %v5217
  %7487 = vmatpush.bf16.msra.mxu0 %v5204
  %7488 = vmatpush.bf16.msra.mxu0 %v5191
  %7489 = vmatpush.bf16.msra.mxu0 %v5178
  %7490 = vmatpush.bf16.msra.mxu0 %v5165
  %7491 = vmatpush.bf16.msra.mxu0 %v5152
  %7492 = vmatpush.bf16.msra.mxu0 %v5139
  %7493 = vmatmul.bf16.gmra.mxu0 %v1191
  %v7494 = vpop.f32.mrf.mxu0
  %v7495 = vadd.f32 %v7482, %v7494
  %v7496 = vpop.f32.mrf.mxu0
  %7497 = vdwg.mxu0
  %7498 = vmatpush.bf16.msra.mxu0 %v5334
  %7499 = vmatpush.bf16.msra.mxu0 %v5321
  %7500 = vmatpush.bf16.msra.mxu0 %v5308
  %7501 = vmatpush.bf16.msra.mxu0 %v5295
  %7502 = vmatpush.bf16.msra.mxu0 %v5282
  %7503 = vmatpush.bf16.msra.mxu0 %v5269
  %7504 = vmatpush.bf16.msra.mxu0 %v5256
  %7505 = vmatpush.bf16.msra.mxu0 %v5243
  %7506 = vmatmul.bf16.gmra.mxu0 %v1192
  %v7507 = vpop.f32.mrf.mxu0
  %v7508 = vadd.f32 %v7495, %v7507
  %v7509 = vpop.f32.mrf.mxu0
  %7510 = vdwg.mxu0
  %7511 = vmatpush.bf16.msra.mxu0 %v5438
  %7512 = vmatpush.bf16.msra.mxu0 %v5425
  %7513 = vmatpush.bf16.msra.mxu0 %v5412
  %7514 = vmatpush.bf16.msra.mxu0 %v5399
  %7515 = vmatpush.bf16.msra.mxu0 %v5386
  %7516 = vmatpush.bf16.msra.mxu0 %v5373
  %7517 = vmatpush.bf16.msra.mxu0 %v5360
  %7518 = vmatpush.bf16.msra.mxu0 %v5347
  %7519 = vmatmul.bf16.gmra.mxu0 %v1193
  %v7520 = vpop.f32.mrf.mxu0
  %v7521 = vadd.f32 %v7508, %v7520
  %v7522 = vpop.f32.mrf.mxu0
  %7523 = vdwg.mxu0
  %7524 = vmatpush.bf16.msra.mxu0 %v4503
  %7525 = vmatpush.bf16.msra.mxu0 %v4490
  %7526 = vmatpush.bf16.msra.mxu0 %v4477
  %7527 = vmatpush.bf16.msra.mxu0 %v4464
  %7528 = vmatpush.bf16.msra.mxu0 %v4451
  %7529 = vmatpush.bf16.msra.mxu0 %v4438
  %7530 = vmatpush.bf16.msra.mxu0 %v4425
  %7531 = vmatpush.bf16.msra.mxu0 %v4412
  %7532 = vmatmul.bf16.gmra.mxu0 %v1184
  %v7533 = vpop.f32.mrf.mxu0
  %v7534 = vadd.f32 %v1151, %v7533
  %v7535 = vpop.f32.mrf.mxu0
  %7536 = vdwg.mxu0
  %7537 = vmatpush.bf16.msra.mxu0 %v4607
  %7538 = vmatpush.bf16.msra.mxu0 %v4594
  %7539 = vmatpush.bf16.msra.mxu0 %v4581
  %7540 = vmatpush.bf16.msra.mxu0 %v4568
  %7541 = vmatpush.bf16.msra.mxu0 %v4555
  %7542 = vmatpush.bf16.msra.mxu0 %v4542
  %7543 = vmatpush.bf16.msra.mxu0 %v4529
  %7544 = vmatpush.bf16.msra.mxu0 %v4516
  %7545 = vmatmul.bf16.gmra.mxu0 %v1185
  %v7546 = vpop.f32.mrf.mxu0
  %v7547 = vadd.f32 %v7534, %v7546
  %v7548 = vpop.f32.mrf.mxu0
  %7549 = vdwg.mxu0
  %7550 = vmatpush.bf16.msra.mxu0 %v4711
  %7551 = vmatpush.bf16.msra.mxu0 %v4698
  %7552 = vmatpush.bf16.msra.mxu0 %v4685
  %7553 = vmatpush.bf16.msra.mxu0 %v4672
  %7554 = vmatpush.bf16.msra.mxu0 %v4659
  %7555 = vmatpush.bf16.msra.mxu0 %v4646
  %7556 = vmatpush.bf16.msra.mxu0 %v4633
  %7557 = vmatpush.bf16.msra.mxu0 %v4620
  %7558 = vmatmul.bf16.gmra.mxu0 %v1186
  %v7559 = vpop.f32.mrf.mxu0
  %v7560 = vadd.f32 %v7547, %v7559
  %v7561 = vpop.f32.mrf.mxu0
  %7562 = vdwg.mxu0
  %7563 = vmatpush.bf16.msra.mxu0 %v4815
  %7564 = vmatpush.bf16.msra.mxu0 %v4802
  %7565 = vmatpush.bf16.msra.mxu0 %v4789
  %7566 = vmatpush.bf16.msra.mxu0 %v4776
  %7567 = vmatpush.bf16.msra.mxu0 %v4763
  %7568 = vmatpush.bf16.msra.mxu0 %v4750
  %7569 = vmatpush.bf16.msra.mxu0 %v4737
  %7570 = vmatpush.bf16.msra.mxu0 %v4724
  %7571 = vmatmul.bf16.gmra.mxu0 %v1187
  %v7572 = vpop.f32.mrf.mxu0
  %v7573 = vadd.f32 %v7560, %v7572
  %v7574 = vpop.f32.mrf.mxu0
  %7575 = vdwg.mxu0
  %7576 = vmatpush.bf16.msra.mxu0 %v4919
  %7577 = vmatpush.bf16.msra.mxu0 %v4906
  %7578 = vmatpush.bf16.msra.mxu0 %v4893
  %7579 = vmatpush.bf16.msra.mxu0 %v4880
  %7580 = vmatpush.bf16.msra.mxu0 %v4867
  %7581 = vmatpush.bf16.msra.mxu0 %v4854
  %7582 = vmatpush.bf16.msra.mxu0 %v4841
  %7583 = vmatpush.bf16.msra.mxu0 %v4828
  %7584 = vmatmul.bf16.gmra.mxu0 %v1188
  %v7585 = vpop.f32.mrf.mxu0
  %v7586 = vadd.f32 %v7573, %v7585
  %v7587 = vpop.f32.mrf.mxu0
  %7588 = vdwg.mxu0
  %7589 = vmatpush.bf16.msra.mxu0 %v5023
  %7590 = vmatpush.bf16.msra.mxu0 %v5010
  %7591 = vmatpush.bf16.msra.mxu0 %v4997
  %7592 = vmatpush.bf16.msra.mxu0 %v4984
  %7593 = vmatpush.bf16.msra.mxu0 %v4971
  %7594 = vmatpush.bf16.msra.mxu0 %v4958
  %7595 = vmatpush.bf16.msra.mxu0 %v4945
  %7596 = vmatpush.bf16.msra.mxu0 %v4932
  %7597 = vmatmul.bf16.gmra.mxu0 %v1189
  %v7598 = vpop.f32.mrf.mxu0
  %v7599 = vadd.f32 %v7586, %v7598
  %v7600 = vpop.f32.mrf.mxu0
  %7601 = vdwg.mxu0
  %7602 = vmatpush.bf16.msra.mxu0 %v5127
  %7603 = vmatpush.bf16.msra.mxu0 %v5114
  %7604 = vmatpush.bf16.msra.mxu0 %v5101
  %7605 = vmatpush.bf16.msra.mxu0 %v5088
  %7606 = vmatpush.bf16.msra.mxu0 %v5075
  %7607 = vmatpush.bf16.msra.mxu0 %v5062
  %7608 = vmatpush.bf16.msra.mxu0 %v5049
  %7609 = vmatpush.bf16.msra.mxu0 %v5036
  %7610 = vmatmul.bf16.gmra.mxu0 %v1190
  %v7611 = vpop.f32.mrf.mxu0
  %v7612 = vadd.f32 %v7599, %v7611
  %v7613 = vpop.f32.mrf.mxu0
  %7614 = vdwg.mxu0
  %7615 = vmatpush.bf16.msra.mxu0 %v5231
  %7616 = vmatpush.bf16.msra.mxu0 %v5218
  %7617 = vmatpush.bf16.msra.mxu0 %v5205
  %7618 = vmatpush.bf16.msra.mxu0 %v5192
  %7619 = vmatpush.bf16.msra.mxu0 %v5179
  %7620 = vmatpush.bf16.msra.mxu0 %v5166
  %7621 = vmatpush.bf16.msra.mxu0 %v5153
  %7622 = vmatpush.bf16.msra.mxu0 %v5140
  %7623 = vmatmul.bf16.gmra.mxu0 %v1191
  %v7624 = vpop.f32.mrf.mxu0
  %v7625 = vadd.f32 %v7612, %v7624
  %v7626 = vpop.f32.mrf.mxu0
  %7627 = vdwg.mxu0
  %7628 = vmatpush.bf16.msra.mxu0 %v5335
  %7629 = vmatpush.bf16.msra.mxu0 %v5322
  %7630 = vmatpush.bf16.msra.mxu0 %v5309
  %7631 = vmatpush.bf16.msra.mxu0 %v5296
  %7632 = vmatpush.bf16.msra.mxu0 %v5283
  %7633 = vmatpush.bf16.msra.mxu0 %v5270
  %7634 = vmatpush.bf16.msra.mxu0 %v5257
  %7635 = vmatpush.bf16.msra.mxu0 %v5244
  %7636 = vmatmul.bf16.gmra.mxu0 %v1192
  %v7637 = vpop.f32.mrf.mxu0
  %v7638 = vadd.f32 %v7625, %v7637
  %v7639 = vpop.f32.mrf.mxu0
  %7640 = vdwg.mxu0
  %7641 = vmatpush.bf16.msra.mxu0 %v5439
  %7642 = vmatpush.bf16.msra.mxu0 %v5426
  %7643 = vmatpush.bf16.msra.mxu0 %v5413
  %7644 = vmatpush.bf16.msra.mxu0 %v5400
  %7645 = vmatpush.bf16.msra.mxu0 %v5387
  %7646 = vmatpush.bf16.msra.mxu0 %v5374
  %7647 = vmatpush.bf16.msra.mxu0 %v5361
  %7648 = vmatpush.bf16.msra.mxu0 %v5348
  %7649 = vmatmul.bf16.gmra.mxu0 %v1193
  %v7650 = vpop.f32.mrf.mxu0
  %v7651 = vadd.f32 %v7638, %v7650
  %v7652 = vpop.f32.mrf.mxu0
  %7653 = vdwg.mxu0
  %7654 = vmatpush.bf16.msra.mxu0 %v4504
  %7655 = vmatpush.bf16.msra.mxu0 %v4491
  %7656 = vmatpush.bf16.msra.mxu0 %v4478
  %7657 = vmatpush.bf16.msra.mxu0 %v4465
  %7658 = vmatpush.bf16.msra.mxu0 %v4452
  %7659 = vmatpush.bf16.msra.mxu0 %v4439
  %7660 = vmatpush.bf16.msra.mxu0 %v4426
  %7661 = vmatpush.bf16.msra.mxu0 %v4413
  %7662 = vmatmul.bf16.gmra.mxu0 %v1184
  %v7663 = vpop.f32.mrf.mxu0
  %v7664 = vadd.f32 %v1152, %v7663
  %v7665 = vpop.f32.mrf.mxu0
  %7666 = vdwg.mxu0
  %7667 = vmatpush.bf16.msra.mxu0 %v4608
  %7668 = vmatpush.bf16.msra.mxu0 %v4595
  %7669 = vmatpush.bf16.msra.mxu0 %v4582
  %7670 = vmatpush.bf16.msra.mxu0 %v4569
  %7671 = vmatpush.bf16.msra.mxu0 %v4556
  %7672 = vmatpush.bf16.msra.mxu0 %v4543
  %7673 = vmatpush.bf16.msra.mxu0 %v4530
  %7674 = vmatpush.bf16.msra.mxu0 %v4517
  %7675 = vmatmul.bf16.gmra.mxu0 %v1185
  %v7676 = vpop.f32.mrf.mxu0
  %v7677 = vadd.f32 %v7664, %v7676
  %v7678 = vpop.f32.mrf.mxu0
  %7679 = vdwg.mxu0
  %7680 = vmatpush.bf16.msra.mxu0 %v4712
  %7681 = vmatpush.bf16.msra.mxu0 %v4699
  %7682 = vmatpush.bf16.msra.mxu0 %v4686
  %7683 = vmatpush.bf16.msra.mxu0 %v4673
  %7684 = vmatpush.bf16.msra.mxu0 %v4660
  %7685 = vmatpush.bf16.msra.mxu0 %v4647
  %7686 = vmatpush.bf16.msra.mxu0 %v4634
  %7687 = vmatpush.bf16.msra.mxu0 %v4621
  %7688 = vmatmul.bf16.gmra.mxu0 %v1186
  %v7689 = vpop.f32.mrf.mxu0
  %v7690 = vadd.f32 %v7677, %v7689
  %v7691 = vpop.f32.mrf.mxu0
  %7692 = vdwg.mxu0
  %7693 = vmatpush.bf16.msra.mxu0 %v4816
  %7694 = vmatpush.bf16.msra.mxu0 %v4803
  %7695 = vmatpush.bf16.msra.mxu0 %v4790
  %7696 = vmatpush.bf16.msra.mxu0 %v4777
  %7697 = vmatpush.bf16.msra.mxu0 %v4764
  %7698 = vmatpush.bf16.msra.mxu0 %v4751
  %7699 = vmatpush.bf16.msra.mxu0 %v4738
  %7700 = vmatpush.bf16.msra.mxu0 %v4725
  %7701 = vmatmul.bf16.gmra.mxu0 %v1187
  %v7702 = vpop.f32.mrf.mxu0
  %v7703 = vadd.f32 %v7690, %v7702
  %v7704 = vpop.f32.mrf.mxu0
  %7705 = vdwg.mxu0
  %7706 = vmatpush.bf16.msra.mxu0 %v4920
  %7707 = vmatpush.bf16.msra.mxu0 %v4907
  %7708 = vmatpush.bf16.msra.mxu0 %v4894
  %7709 = vmatpush.bf16.msra.mxu0 %v4881
  %7710 = vmatpush.bf16.msra.mxu0 %v4868
  %7711 = vmatpush.bf16.msra.mxu0 %v4855
  %7712 = vmatpush.bf16.msra.mxu0 %v4842
  %7713 = vmatpush.bf16.msra.mxu0 %v4829
  %7714 = vmatmul.bf16.gmra.mxu0 %v1188
  %v7715 = vpop.f32.mrf.mxu0
  %v7716 = vadd.f32 %v7703, %v7715
  %v7717 = vpop.f32.mrf.mxu0
  %7718 = vdwg.mxu0
  %7719 = vmatpush.bf16.msra.mxu0 %v5024
  %7720 = vmatpush.bf16.msra.mxu0 %v5011
  %7721 = vmatpush.bf16.msra.mxu0 %v4998
  %7722 = vmatpush.bf16.msra.mxu0 %v4985
  %7723 = vmatpush.bf16.msra.mxu0 %v4972
  %7724 = vmatpush.bf16.msra.mxu0 %v4959
  %7725 = vmatpush.bf16.msra.mxu0 %v4946
  %7726 = vmatpush.bf16.msra.mxu0 %v4933
  %7727 = vmatmul.bf16.gmra.mxu0 %v1189
  %v7728 = vpop.f32.mrf.mxu0
  %v7729 = vadd.f32 %v7716, %v7728
  %v7730 = vpop.f32.mrf.mxu0
  %7731 = vdwg.mxu0
  %7732 = vmatpush.bf16.msra.mxu0 %v5128
  %7733 = vmatpush.bf16.msra.mxu0 %v5115
  %7734 = vmatpush.bf16.msra.mxu0 %v5102
  %7735 = vmatpush.bf16.msra.mxu0 %v5089
  %7736 = vmatpush.bf16.msra.mxu0 %v5076
  %7737 = vmatpush.bf16.msra.mxu0 %v5063
  %7738 = vmatpush.bf16.msra.mxu0 %v5050
  %7739 = vmatpush.bf16.msra.mxu0 %v5037
  %7740 = vmatmul.bf16.gmra.mxu0 %v1190
  %v7741 = vpop.f32.mrf.mxu0
  %v7742 = vadd.f32 %v7729, %v7741
  %v7743 = vpop.f32.mrf.mxu0
  %7744 = vdwg.mxu0
  %7745 = vmatpush.bf16.msra.mxu0 %v5232
  %7746 = vmatpush.bf16.msra.mxu0 %v5219
  %7747 = vmatpush.bf16.msra.mxu0 %v5206
  %7748 = vmatpush.bf16.msra.mxu0 %v5193
  %7749 = vmatpush.bf16.msra.mxu0 %v5180
  %7750 = vmatpush.bf16.msra.mxu0 %v5167
  %7751 = vmatpush.bf16.msra.mxu0 %v5154
  %7752 = vmatpush.bf16.msra.mxu0 %v5141
  %7753 = vmatmul.bf16.gmra.mxu0 %v1191
  %v7754 = vpop.f32.mrf.mxu0
  %v7755 = vadd.f32 %v7742, %v7754
  %v7756 = vpop.f32.mrf.mxu0
  %7757 = vdwg.mxu0
  %7758 = vmatpush.bf16.msra.mxu0 %v5336
  %7759 = vmatpush.bf16.msra.mxu0 %v5323
  %7760 = vmatpush.bf16.msra.mxu0 %v5310
  %7761 = vmatpush.bf16.msra.mxu0 %v5297
  %7762 = vmatpush.bf16.msra.mxu0 %v5284
  %7763 = vmatpush.bf16.msra.mxu0 %v5271
  %7764 = vmatpush.bf16.msra.mxu0 %v5258
  %7765 = vmatpush.bf16.msra.mxu0 %v5245
  %7766 = vmatmul.bf16.gmra.mxu0 %v1192
  %v7767 = vpop.f32.mrf.mxu0
  %v7768 = vadd.f32 %v7755, %v7767
  %v7769 = vpop.f32.mrf.mxu0
  %7770 = vdwg.mxu0
  %7771 = vmatpush.bf16.msra.mxu0 %v5440
  %7772 = vmatpush.bf16.msra.mxu0 %v5427
  %7773 = vmatpush.bf16.msra.mxu0 %v5414
  %7774 = vmatpush.bf16.msra.mxu0 %v5401
  %7775 = vmatpush.bf16.msra.mxu0 %v5388
  %7776 = vmatpush.bf16.msra.mxu0 %v5375
  %7777 = vmatpush.bf16.msra.mxu0 %v5362
  %7778 = vmatpush.bf16.msra.mxu0 %v5349
  %7779 = vmatmul.bf16.gmra.mxu0 %v1193
  %v7780 = vpop.f32.mrf.mxu0
  %v7781 = vadd.f32 %v7768, %v7780
  %v7782 = vpop.f32.mrf.mxu0
  %7783 = vdwg.mxu0
  %7784 = vmatpush.bf16.msra.mxu0 %v4505
  %7785 = vmatpush.bf16.msra.mxu0 %v4492
  %7786 = vmatpush.bf16.msra.mxu0 %v4479
  %7787 = vmatpush.bf16.msra.mxu0 %v4466
  %7788 = vmatpush.bf16.msra.mxu0 %v4453
  %7789 = vmatpush.bf16.msra.mxu0 %v4440
  %7790 = vmatpush.bf16.msra.mxu0 %v4427
  %7791 = vmatpush.bf16.msra.mxu0 %v4414
  %7792 = vmatmul.bf16.gmra.mxu0 %v1184
  %v7793 = vpop.f32.mrf.mxu0
  %v7794 = vadd.f32 %v1153, %v7793
  %v7795 = vpop.f32.mrf.mxu0
  %7796 = vdwg.mxu0
  %7797 = vmatpush.bf16.msra.mxu0 %v4609
  %7798 = vmatpush.bf16.msra.mxu0 %v4596
  %7799 = vmatpush.bf16.msra.mxu0 %v4583
  %7800 = vmatpush.bf16.msra.mxu0 %v4570
  %7801 = vmatpush.bf16.msra.mxu0 %v4557
  %7802 = vmatpush.bf16.msra.mxu0 %v4544
  %7803 = vmatpush.bf16.msra.mxu0 %v4531
  %7804 = vmatpush.bf16.msra.mxu0 %v4518
  %7805 = vmatmul.bf16.gmra.mxu0 %v1185
  %v7806 = vpop.f32.mrf.mxu0
  %v7807 = vadd.f32 %v7794, %v7806
  %v7808 = vpop.f32.mrf.mxu0
  %7809 = vdwg.mxu0
  %7810 = vmatpush.bf16.msra.mxu0 %v4713
  %7811 = vmatpush.bf16.msra.mxu0 %v4700
  %7812 = vmatpush.bf16.msra.mxu0 %v4687
  %7813 = vmatpush.bf16.msra.mxu0 %v4674
  %7814 = vmatpush.bf16.msra.mxu0 %v4661
  %7815 = vmatpush.bf16.msra.mxu0 %v4648
  %7816 = vmatpush.bf16.msra.mxu0 %v4635
  %7817 = vmatpush.bf16.msra.mxu0 %v4622
  %7818 = vmatmul.bf16.gmra.mxu0 %v1186
  %v7819 = vpop.f32.mrf.mxu0
  %v7820 = vadd.f32 %v7807, %v7819
  %v7821 = vpop.f32.mrf.mxu0
  %7822 = vdwg.mxu0
  %7823 = vmatpush.bf16.msra.mxu0 %v4817
  %7824 = vmatpush.bf16.msra.mxu0 %v4804
  %7825 = vmatpush.bf16.msra.mxu0 %v4791
  %7826 = vmatpush.bf16.msra.mxu0 %v4778
  %7827 = vmatpush.bf16.msra.mxu0 %v4765
  %7828 = vmatpush.bf16.msra.mxu0 %v4752
  %7829 = vmatpush.bf16.msra.mxu0 %v4739
  %7830 = vmatpush.bf16.msra.mxu0 %v4726
  %7831 = vmatmul.bf16.gmra.mxu0 %v1187
  %v7832 = vpop.f32.mrf.mxu0
  %v7833 = vadd.f32 %v7820, %v7832
  %v7834 = vpop.f32.mrf.mxu0
  %7835 = vdwg.mxu0
  %7836 = vmatpush.bf16.msra.mxu0 %v4921
  %7837 = vmatpush.bf16.msra.mxu0 %v4908
  %7838 = vmatpush.bf16.msra.mxu0 %v4895
  %7839 = vmatpush.bf16.msra.mxu0 %v4882
  %7840 = vmatpush.bf16.msra.mxu0 %v4869
  %7841 = vmatpush.bf16.msra.mxu0 %v4856
  %7842 = vmatpush.bf16.msra.mxu0 %v4843
  %7843 = vmatpush.bf16.msra.mxu0 %v4830
  %7844 = vmatmul.bf16.gmra.mxu0 %v1188
  %v7845 = vpop.f32.mrf.mxu0
  %v7846 = vadd.f32 %v7833, %v7845
  %v7847 = vpop.f32.mrf.mxu0
  %7848 = vdwg.mxu0
  %7849 = vmatpush.bf16.msra.mxu0 %v5025
  %7850 = vmatpush.bf16.msra.mxu0 %v5012
  %7851 = vmatpush.bf16.msra.mxu0 %v4999
  %7852 = vmatpush.bf16.msra.mxu0 %v4986
  %7853 = vmatpush.bf16.msra.mxu0 %v4973
  %7854 = vmatpush.bf16.msra.mxu0 %v4960
  %7855 = vmatpush.bf16.msra.mxu0 %v4947
  %7856 = vmatpush.bf16.msra.mxu0 %v4934
  %7857 = vmatmul.bf16.gmra.mxu0 %v1189
  %v7858 = vpop.f32.mrf.mxu0
  %v7859 = vadd.f32 %v7846, %v7858
  %v7860 = vpop.f32.mrf.mxu0
  %7861 = vdwg.mxu0
  %7862 = vmatpush.bf16.msra.mxu0 %v5129
  %7863 = vmatpush.bf16.msra.mxu0 %v5116
  %7864 = vmatpush.bf16.msra.mxu0 %v5103
  %7865 = vmatpush.bf16.msra.mxu0 %v5090
  %7866 = vmatpush.bf16.msra.mxu0 %v5077
  %7867 = vmatpush.bf16.msra.mxu0 %v5064
  %7868 = vmatpush.bf16.msra.mxu0 %v5051
  %7869 = vmatpush.bf16.msra.mxu0 %v5038
  %7870 = vmatmul.bf16.gmra.mxu0 %v1190
  %v7871 = vpop.f32.mrf.mxu0
  %v7872 = vadd.f32 %v7859, %v7871
  %v7873 = vpop.f32.mrf.mxu0
  %7874 = vdwg.mxu0
  %7875 = vmatpush.bf16.msra.mxu0 %v5233
  %7876 = vmatpush.bf16.msra.mxu0 %v5220
  %7877 = vmatpush.bf16.msra.mxu0 %v5207
  %7878 = vmatpush.bf16.msra.mxu0 %v5194
  %7879 = vmatpush.bf16.msra.mxu0 %v5181
  %7880 = vmatpush.bf16.msra.mxu0 %v5168
  %7881 = vmatpush.bf16.msra.mxu0 %v5155
  %7882 = vmatpush.bf16.msra.mxu0 %v5142
  %7883 = vmatmul.bf16.gmra.mxu0 %v1191
  %v7884 = vpop.f32.mrf.mxu0
  %v7885 = vadd.f32 %v7872, %v7884
  %v7886 = vpop.f32.mrf.mxu0
  %7887 = vdwg.mxu0
  %7888 = vmatpush.bf16.msra.mxu0 %v5337
  %7889 = vmatpush.bf16.msra.mxu0 %v5324
  %7890 = vmatpush.bf16.msra.mxu0 %v5311
  %7891 = vmatpush.bf16.msra.mxu0 %v5298
  %7892 = vmatpush.bf16.msra.mxu0 %v5285
  %7893 = vmatpush.bf16.msra.mxu0 %v5272
  %7894 = vmatpush.bf16.msra.mxu0 %v5259
  %7895 = vmatpush.bf16.msra.mxu0 %v5246
  %7896 = vmatmul.bf16.gmra.mxu0 %v1192
  %v7897 = vpop.f32.mrf.mxu0
  %v7898 = vadd.f32 %v7885, %v7897
  %v7899 = vpop.f32.mrf.mxu0
  %7900 = vdwg.mxu0
  %7901 = vmatpush.bf16.msra.mxu0 %v5441
  %7902 = vmatpush.bf16.msra.mxu0 %v5428
  %7903 = vmatpush.bf16.msra.mxu0 %v5415
  %7904 = vmatpush.bf16.msra.mxu0 %v5402
  %7905 = vmatpush.bf16.msra.mxu0 %v5389
  %7906 = vmatpush.bf16.msra.mxu0 %v5376
  %7907 = vmatpush.bf16.msra.mxu0 %v5363
  %7908 = vmatpush.bf16.msra.mxu0 %v5350
  %7909 = vmatmul.bf16.gmra.mxu0 %v1193
  %v7910 = vpop.f32.mrf.mxu0
  %v7911 = vadd.f32 %v7898, %v7910
  %v7912 = vpop.f32.mrf.mxu0
  %7913 = vdwg.mxu0
  %7914 = vmatpush.bf16.msra.mxu0 %v4506
  %7915 = vmatpush.bf16.msra.mxu0 %v4493
  %7916 = vmatpush.bf16.msra.mxu0 %v4480
  %7917 = vmatpush.bf16.msra.mxu0 %v4467
  %7918 = vmatpush.bf16.msra.mxu0 %v4454
  %7919 = vmatpush.bf16.msra.mxu0 %v4441
  %7920 = vmatpush.bf16.msra.mxu0 %v4428
  %7921 = vmatpush.bf16.msra.mxu0 %v4415
  %7922 = vmatmul.bf16.gmra.mxu0 %v1184
  %v7923 = vpop.f32.mrf.mxu0
  %v7924 = vadd.f32 %v1154, %v7923
  %v7925 = vpop.f32.mrf.mxu0
  %7926 = vdwg.mxu0
  %7927 = vmatpush.bf16.msra.mxu0 %v4610
  %7928 = vmatpush.bf16.msra.mxu0 %v4597
  %7929 = vmatpush.bf16.msra.mxu0 %v4584
  %7930 = vmatpush.bf16.msra.mxu0 %v4571
  %7931 = vmatpush.bf16.msra.mxu0 %v4558
  %7932 = vmatpush.bf16.msra.mxu0 %v4545
  %7933 = vmatpush.bf16.msra.mxu0 %v4532
  %7934 = vmatpush.bf16.msra.mxu0 %v4519
  %7935 = vmatmul.bf16.gmra.mxu0 %v1185
  %v7936 = vpop.f32.mrf.mxu0
  %v7937 = vadd.f32 %v7924, %v7936
  %v7938 = vpop.f32.mrf.mxu0
  %7939 = vdwg.mxu0
  %7940 = vmatpush.bf16.msra.mxu0 %v4714
  %7941 = vmatpush.bf16.msra.mxu0 %v4701
  %7942 = vmatpush.bf16.msra.mxu0 %v4688
  %7943 = vmatpush.bf16.msra.mxu0 %v4675
  %7944 = vmatpush.bf16.msra.mxu0 %v4662
  %7945 = vmatpush.bf16.msra.mxu0 %v4649
  %7946 = vmatpush.bf16.msra.mxu0 %v4636
  %7947 = vmatpush.bf16.msra.mxu0 %v4623
  %7948 = vmatmul.bf16.gmra.mxu0 %v1186
  %v7949 = vpop.f32.mrf.mxu0
  %v7950 = vadd.f32 %v7937, %v7949
  %v7951 = vpop.f32.mrf.mxu0
  %7952 = vdwg.mxu0
  %7953 = vmatpush.bf16.msra.mxu0 %v4818
  %7954 = vmatpush.bf16.msra.mxu0 %v4805
  %7955 = vmatpush.bf16.msra.mxu0 %v4792
  %7956 = vmatpush.bf16.msra.mxu0 %v4779
  %7957 = vmatpush.bf16.msra.mxu0 %v4766
  %7958 = vmatpush.bf16.msra.mxu0 %v4753
  %7959 = vmatpush.bf16.msra.mxu0 %v4740
  %7960 = vmatpush.bf16.msra.mxu0 %v4727
  %7961 = vmatmul.bf16.gmra.mxu0 %v1187
  %v7962 = vpop.f32.mrf.mxu0
  %v7963 = vadd.f32 %v7950, %v7962
  %v7964 = vpop.f32.mrf.mxu0
  %7965 = vdwg.mxu0
  %7966 = vmatpush.bf16.msra.mxu0 %v4922
  %7967 = vmatpush.bf16.msra.mxu0 %v4909
  %7968 = vmatpush.bf16.msra.mxu0 %v4896
  %7969 = vmatpush.bf16.msra.mxu0 %v4883
  %7970 = vmatpush.bf16.msra.mxu0 %v4870
  %7971 = vmatpush.bf16.msra.mxu0 %v4857
  %7972 = vmatpush.bf16.msra.mxu0 %v4844
  %7973 = vmatpush.bf16.msra.mxu0 %v4831
  %7974 = vmatmul.bf16.gmra.mxu0 %v1188
  %v7975 = vpop.f32.mrf.mxu0
  %v7976 = vadd.f32 %v7963, %v7975
  %v7977 = vpop.f32.mrf.mxu0
  %7978 = vdwg.mxu0
  %7979 = vmatpush.bf16.msra.mxu0 %v5026
  %7980 = vmatpush.bf16.msra.mxu0 %v5013
  %7981 = vmatpush.bf16.msra.mxu0 %v5000
  %7982 = vmatpush.bf16.msra.mxu0 %v4987
  %7983 = vmatpush.bf16.msra.mxu0 %v4974
  %7984 = vmatpush.bf16.msra.mxu0 %v4961
  %7985 = vmatpush.bf16.msra.mxu0 %v4948
  %7986 = vmatpush.bf16.msra.mxu0 %v4935
  %7987 = vmatmul.bf16.gmra.mxu0 %v1189
  %v7988 = vpop.f32.mrf.mxu0
  %v7989 = vadd.f32 %v7976, %v7988
  %v7990 = vpop.f32.mrf.mxu0
  %7991 = vdwg.mxu0
  %7992 = vmatpush.bf16.msra.mxu0 %v5130
  %7993 = vmatpush.bf16.msra.mxu0 %v5117
  %7994 = vmatpush.bf16.msra.mxu0 %v5104
  %7995 = vmatpush.bf16.msra.mxu0 %v5091
  %7996 = vmatpush.bf16.msra.mxu0 %v5078
  %7997 = vmatpush.bf16.msra.mxu0 %v5065
  %7998 = vmatpush.bf16.msra.mxu0 %v5052
  %7999 = vmatpush.bf16.msra.mxu0 %v5039
  %8000 = vmatmul.bf16.gmra.mxu0 %v1190
  %v8001 = vpop.f32.mrf.mxu0
  %v8002 = vadd.f32 %v7989, %v8001
  %v8003 = vpop.f32.mrf.mxu0
  %8004 = vdwg.mxu0
  %8005 = vmatpush.bf16.msra.mxu0 %v5234
  %8006 = vmatpush.bf16.msra.mxu0 %v5221
  %8007 = vmatpush.bf16.msra.mxu0 %v5208
  %8008 = vmatpush.bf16.msra.mxu0 %v5195
  %8009 = vmatpush.bf16.msra.mxu0 %v5182
  %8010 = vmatpush.bf16.msra.mxu0 %v5169
  %8011 = vmatpush.bf16.msra.mxu0 %v5156
  %8012 = vmatpush.bf16.msra.mxu0 %v5143
  %8013 = vmatmul.bf16.gmra.mxu0 %v1191
  %v8014 = vpop.f32.mrf.mxu0
  %v8015 = vadd.f32 %v8002, %v8014
  %v8016 = vpop.f32.mrf.mxu0
  %8017 = vdwg.mxu0
  %8018 = vmatpush.bf16.msra.mxu0 %v5338
  %8019 = vmatpush.bf16.msra.mxu0 %v5325
  %8020 = vmatpush.bf16.msra.mxu0 %v5312
  %8021 = vmatpush.bf16.msra.mxu0 %v5299
  %8022 = vmatpush.bf16.msra.mxu0 %v5286
  %8023 = vmatpush.bf16.msra.mxu0 %v5273
  %8024 = vmatpush.bf16.msra.mxu0 %v5260
  %8025 = vmatpush.bf16.msra.mxu0 %v5247
  %8026 = vmatmul.bf16.gmra.mxu0 %v1192
  %v8027 = vpop.f32.mrf.mxu0
  %v8028 = vadd.f32 %v8015, %v8027
  %v8029 = vpop.f32.mrf.mxu0
  %8030 = vdwg.mxu0
  %8031 = vmatpush.bf16.msra.mxu0 %v5442
  %8032 = vmatpush.bf16.msra.mxu0 %v5429
  %8033 = vmatpush.bf16.msra.mxu0 %v5416
  %8034 = vmatpush.bf16.msra.mxu0 %v5403
  %8035 = vmatpush.bf16.msra.mxu0 %v5390
  %8036 = vmatpush.bf16.msra.mxu0 %v5377
  %8037 = vmatpush.bf16.msra.mxu0 %v5364
  %8038 = vmatpush.bf16.msra.mxu0 %v5351
  %8039 = vmatmul.bf16.gmra.mxu0 %v1193
  %v8040 = vpop.f32.mrf.mxu0
  %v8041 = vadd.f32 %v8028, %v8040
  %v8042 = vpop.f32.mrf.mxu0
  %8043 = vdwg.mxu0
  %8044 = vmatpush.bf16.msra.mxu0 %v4507
  %8045 = vmatpush.bf16.msra.mxu0 %v4494
  %8046 = vmatpush.bf16.msra.mxu0 %v4481
  %8047 = vmatpush.bf16.msra.mxu0 %v4468
  %8048 = vmatpush.bf16.msra.mxu0 %v4455
  %8049 = vmatpush.bf16.msra.mxu0 %v4442
  %8050 = vmatpush.bf16.msra.mxu0 %v4429
  %8051 = vmatpush.bf16.msra.mxu0 %v4416
  %8052 = vmatmul.bf16.gmra.mxu0 %v1184
  %v8053 = vpop.f32.mrf.mxu0
  %v8054 = vadd.f32 %v1155, %v8053
  %v8055 = vpop.f32.mrf.mxu0
  %8056 = vdwg.mxu0
  %8057 = vmatpush.bf16.msra.mxu0 %v4611
  %8058 = vmatpush.bf16.msra.mxu0 %v4598
  %8059 = vmatpush.bf16.msra.mxu0 %v4585
  %8060 = vmatpush.bf16.msra.mxu0 %v4572
  %8061 = vmatpush.bf16.msra.mxu0 %v4559
  %8062 = vmatpush.bf16.msra.mxu0 %v4546
  %8063 = vmatpush.bf16.msra.mxu0 %v4533
  %8064 = vmatpush.bf16.msra.mxu0 %v4520
  %8065 = vmatmul.bf16.gmra.mxu0 %v1185
  %v8066 = vpop.f32.mrf.mxu0
  %v8067 = vadd.f32 %v8054, %v8066
  %v8068 = vpop.f32.mrf.mxu0
  %8069 = vdwg.mxu0
  %8070 = vmatpush.bf16.msra.mxu0 %v4715
  %8071 = vmatpush.bf16.msra.mxu0 %v4702
  %8072 = vmatpush.bf16.msra.mxu0 %v4689
  %8073 = vmatpush.bf16.msra.mxu0 %v4676
  %8074 = vmatpush.bf16.msra.mxu0 %v4663
  %8075 = vmatpush.bf16.msra.mxu0 %v4650
  %8076 = vmatpush.bf16.msra.mxu0 %v4637
  %8077 = vmatpush.bf16.msra.mxu0 %v4624
  %8078 = vmatmul.bf16.gmra.mxu0 %v1186
  %v8079 = vpop.f32.mrf.mxu0
  %v8080 = vadd.f32 %v8067, %v8079
  %v8081 = vpop.f32.mrf.mxu0
  %8082 = vdwg.mxu0
  %8083 = vmatpush.bf16.msra.mxu0 %v4819
  %8084 = vmatpush.bf16.msra.mxu0 %v4806
  %8085 = vmatpush.bf16.msra.mxu0 %v4793
  %8086 = vmatpush.bf16.msra.mxu0 %v4780
  %8087 = vmatpush.bf16.msra.mxu0 %v4767
  %8088 = vmatpush.bf16.msra.mxu0 %v4754
  %8089 = vmatpush.bf16.msra.mxu0 %v4741
  %8090 = vmatpush.bf16.msra.mxu0 %v4728
  %8091 = vmatmul.bf16.gmra.mxu0 %v1187
  %v8092 = vpop.f32.mrf.mxu0
  %v8093 = vadd.f32 %v8080, %v8092
  %v8094 = vpop.f32.mrf.mxu0
  %8095 = vdwg.mxu0
  %8096 = vmatpush.bf16.msra.mxu0 %v4923
  %8097 = vmatpush.bf16.msra.mxu0 %v4910
  %8098 = vmatpush.bf16.msra.mxu0 %v4897
  %8099 = vmatpush.bf16.msra.mxu0 %v4884
  %8100 = vmatpush.bf16.msra.mxu0 %v4871
  %8101 = vmatpush.bf16.msra.mxu0 %v4858
  %8102 = vmatpush.bf16.msra.mxu0 %v4845
  %8103 = vmatpush.bf16.msra.mxu0 %v4832
  %8104 = vmatmul.bf16.gmra.mxu0 %v1188
  %v8105 = vpop.f32.mrf.mxu0
  %v8106 = vadd.f32 %v8093, %v8105
  %v8107 = vpop.f32.mrf.mxu0
  %8108 = vdwg.mxu0
  %8109 = vmatpush.bf16.msra.mxu0 %v5027
  %8110 = vmatpush.bf16.msra.mxu0 %v5014
  %8111 = vmatpush.bf16.msra.mxu0 %v5001
  %8112 = vmatpush.bf16.msra.mxu0 %v4988
  %8113 = vmatpush.bf16.msra.mxu0 %v4975
  %8114 = vmatpush.bf16.msra.mxu0 %v4962
  %8115 = vmatpush.bf16.msra.mxu0 %v4949
  %8116 = vmatpush.bf16.msra.mxu0 %v4936
  %8117 = vmatmul.bf16.gmra.mxu0 %v1189
  %v8118 = vpop.f32.mrf.mxu0
  %v8119 = vadd.f32 %v8106, %v8118
  %v8120 = vpop.f32.mrf.mxu0
  %8121 = vdwg.mxu0
  %8122 = vmatpush.bf16.msra.mxu0 %v5131
  %8123 = vmatpush.bf16.msra.mxu0 %v5118
  %8124 = vmatpush.bf16.msra.mxu0 %v5105
  %8125 = vmatpush.bf16.msra.mxu0 %v5092
  %8126 = vmatpush.bf16.msra.mxu0 %v5079
  %8127 = vmatpush.bf16.msra.mxu0 %v5066
  %8128 = vmatpush.bf16.msra.mxu0 %v5053
  %8129 = vmatpush.bf16.msra.mxu0 %v5040
  %8130 = vmatmul.bf16.gmra.mxu0 %v1190
  %v8131 = vpop.f32.mrf.mxu0
  %v8132 = vadd.f32 %v8119, %v8131
  %v8133 = vpop.f32.mrf.mxu0
  %8134 = vdwg.mxu0
  %8135 = vmatpush.bf16.msra.mxu0 %v5235
  %8136 = vmatpush.bf16.msra.mxu0 %v5222
  %8137 = vmatpush.bf16.msra.mxu0 %v5209
  %8138 = vmatpush.bf16.msra.mxu0 %v5196
  %8139 = vmatpush.bf16.msra.mxu0 %v5183
  %8140 = vmatpush.bf16.msra.mxu0 %v5170
  %8141 = vmatpush.bf16.msra.mxu0 %v5157
  %8142 = vmatpush.bf16.msra.mxu0 %v5144
  %8143 = vmatmul.bf16.gmra.mxu0 %v1191
  %v8144 = vpop.f32.mrf.mxu0
  %v8145 = vadd.f32 %v8132, %v8144
  %v8146 = vpop.f32.mrf.mxu0
  %8147 = vdwg.mxu0
  %8148 = vmatpush.bf16.msra.mxu0 %v5339
  %8149 = vmatpush.bf16.msra.mxu0 %v5326
  %8150 = vmatpush.bf16.msra.mxu0 %v5313
  %8151 = vmatpush.bf16.msra.mxu0 %v5300
  %8152 = vmatpush.bf16.msra.mxu0 %v5287
  %8153 = vmatpush.bf16.msra.mxu0 %v5274
  %8154 = vmatpush.bf16.msra.mxu0 %v5261
  %8155 = vmatpush.bf16.msra.mxu0 %v5248
  %8156 = vmatmul.bf16.gmra.mxu0 %v1192
  %v8157 = vpop.f32.mrf.mxu0
  %v8158 = vadd.f32 %v8145, %v8157
  %v8159 = vpop.f32.mrf.mxu0
  %8160 = vdwg.mxu0
  %8161 = vmatpush.bf16.msra.mxu0 %v5443
  %8162 = vmatpush.bf16.msra.mxu0 %v5430
  %8163 = vmatpush.bf16.msra.mxu0 %v5417
  %8164 = vmatpush.bf16.msra.mxu0 %v5404
  %8165 = vmatpush.bf16.msra.mxu0 %v5391
  %8166 = vmatpush.bf16.msra.mxu0 %v5378
  %8167 = vmatpush.bf16.msra.mxu0 %v5365
  %8168 = vmatpush.bf16.msra.mxu0 %v5352
  %8169 = vmatmul.bf16.gmra.mxu0 %v1193
  %v8170 = vpop.f32.mrf.mxu0
  %v8171 = vadd.f32 %v8158, %v8170
  %v8172 = vpop.f32.mrf.mxu0
  %8173 = vdwg.mxu0
  %8174 = vst [vmem:[%s3] sm:$0xff] %v6611
  %8175 = vst [vmem:[%s3 + $0x8] sm:$0xff] %v6741
  %8176 = vst [vmem:[%s3 + $0x10] sm:$0xff] %v6871
  %8177 = vst [vmem:[%s3 + $0x18] sm:$0xff] %v7001
  %8178 = vst [vmem:[%s3 + $0x20] sm:$0xff] %v7131
  %8179 = vst [vmem:[%s3 + $0x28] sm:$0xff] %v7261
  %8180 = vst [vmem:[%s3 + $0x30] sm:$0xff] %v7391
  %8181 = vst [vmem:[%s3 + $0x38] sm:$0xff] %v7521
  %8182 = vst [vmem:[%s3 + $0x40] sm:$0xff] %v7651
  %8183 = vst [vmem:[%s3 + $0x48] sm:$0xff] %v7781
  %8184 = vst [vmem:[%s3 + $0x50] sm:$0xff] %v7911
  %8185 = vst [vmem:[%s3 + $0x58] sm:$0xff] %v8041
  %8186 = vst [vmem:[%s3 + $0x60] sm:$0xff] %v8171
  // Predicated region
  $region14: #{pip_mbnetv2_forward.1} parent=0 // pred_check
    _
  $region15: #{pip_mbnetv2_forward.1} parent=0 // pred_check_branch
    %8188 = sbr.rel (0) target = $region17
  $region16: #{pip_mbnetv2_forward.1} parent=0 // pred_region
    _
  $region17: #{pip_mbnetv2_forward.1} parent=0 // pred_fallthru
    _
  // Predicated region
  $region18: #{pip_mbnetv2_forward.1} parent=0 // pred_check
    _
  $region19: #{pip_mbnetv2_forward.1} parent=0 // pred_check_branch
    %8190 = sbr.rel (0) target = $region21
  $region20: #{pip_mbnetv2_forward.1} parent=0 // pred_region
    _
  $region21: #{pip_mbnetv2_forward.1} parent=0 // pred_fallthru
    _

</llo_original>
